<compile_context>
chip_gen: v6e
topology: v6e:2x2x1
jax: 0.10.0
libtpu: 0.0.40
codegen_flags: <defaults>
</compile_context>

<pallas_src>
import functools
import math

import jax
import jax.numpy as jnp
from jax.experimental import pallas as pl
from jax.experimental.pallas import tpu as pltpu


# ----------------------------- small helpers ---------------------------------
def _softplus(x):
    return jnp.maximum(x, 0.0) + jnp.log1p(jnp.exp(-jnp.abs(x)))


def _silu(x):
    return x / (1.0 + jnp.exp(-x))


def _block_diag(*mats):
    rows = sum(m.shape[0] for m in mats)
    cols = sum(m.shape[1] for m in mats)
    out = jnp.zeros((rows, cols), mats[0].dtype)
    r = c = 0
    for m in mats:
        out = out.at[r:r + m.shape[0], c:c + m.shape[1]].set(m)
        r += m.shape[0]
        c += m.shape[1]
    return out


# ----------------------------- fused RatLayer kernel --------------------------
def rat_layer_kernel(s_ref, nz_ref,
                     w_ra_ref, gnw_a_ref, gnb_a_ref,
                     w_qkv_ref, bqkv_ref,
                     w_oe_a_ref, b_oe_a_ref,
                     wt_a_ref, btu_a_ref, e_ka_ref,
                     w_rm_ref, gnw_m_ref, gnb_m_ref,
                     w_gu_ref, w_de_ref,
                     wt_m_ref, btu_m_ref, e_km_ref,
                     s_out_ref, nz_out_ref,
                     *, hidden, num_heads, mlp_size, eps):
    H = hidden
    s = s_ref[0].astype(jnp.float32)          # (l, H*C)  lane-dense state
    nz = nz_ref[0].astype(jnp.float32)
    l = s.shape[0]

    def reader(s, nz, w_r_ref, gnw_ref, gnb_ref, num_groups):
        # Numerator and denominator reductions over residual channels for all
        # groups share ONE MXU matmul against the precomputed block-diagonal
        # softplus(q) weight (s and nz stacked along sublanes).
        snz = jnp.concatenate([s, nz], axis=0)                               # (2l, HC)
        yd = jnp.dot(snz, w_r_ref[...], preferred_element_type=jnp.float32)  # (2l, N*H)
        y = yd[:l] / (yd[l:] + 1.0)
        parts = []
        for n in range(num_groups):            # static, 2 or 3 groups
            yn = y[:, n * H:(n + 1) * H]
            mean = jnp.mean(yn, axis=-1, keepdims=True)
            var = jnp.mean(jnp.square(yn - mean), axis=-1, keepdims=True)
            parts.append((yn - mean) * jax.lax.rsqrt(var + eps))
        return jnp.concatenate(parts, axis=-1) * gnw_ref[...] + gnb_ref[...]

    # ---------------- attention block: reader -> causal MHA -> writer --------
    x = reader(s, nz, w_ra_ref, gnw_a_ref, gnb_a_ref, 3)                    # (l, 3H)
    # grouped kernel-size-1 conv == one block-diagonal (3H, 3H) matmul
    qkv = jnp.dot(x, w_qkv_ref[...], preferred_element_type=jnp.float32) + bqkv_ref[...]
    q, k, v = qkv[:, :H], qkv[:, H:2 * H], qkv[:, 2 * H:]
    hd = H // num_heads
    qh = jnp.stack([q[:, h * hd:(h + 1) * hd] for h in range(num_heads)], axis=0)
    kh = jnp.stack([k[:, h * hd:(h + 1) * hd] for h in range(num_heads)], axis=0)
    vh = jnp.stack([v[:, h * hd:(h + 1) * hd] for h in range(num_heads)], axis=0)
    sc = jax.lax.dot_general(qh, kh, (((2,), (2,)), ((0,), (0,))),
                             preferred_element_type=jnp.float32)            # (nh, l, l)
    sc = sc * (1.0 / float(hd) ** 0.5)
    row = jax.lax.broadcasted_iota(jnp.int32, (l, l), 0)
    col = jax.lax.broadcasted_iota(jnp.int32, (l, l), 1)
    sc = jnp.where((col <= row)[None, :, :], sc, -1e30)
    sc = sc - jnp.max(sc, axis=-1, keepdims=True)
    p = jnp.exp(sc)
    p = p / jnp.sum(p, axis=-1, keepdims=True)
    ah = jax.lax.dot_general(p, vh, (((2,), (1,)), ((0,), (0,))),
                             preferred_element_type=jnp.float32)            # (nh, l, hd)
    attn = jnp.concatenate([ah[h] for h in range(num_heads)], axis=-1)      # (l, H) == raw

    # writer (attention): precombined low-rank timescale matrix, softplus(k)
    # scaling folded into the (H -> H*C) expansion, o_proj folded with the
    # channel-broadcast so the output of the matmul is already lane-dense (HC).
    t = jnp.dot(attn, wt_a_ref[...], preferred_element_type=jnp.float32) + btu_a_ref[...]
    k_curr = jnp.dot(_softplus(t), e_ka_ref[...], preferred_element_type=jnp.float32)   # (l, HC)
    y_exp = jnp.dot(attn, w_oe_a_ref[...], preferred_element_type=jnp.float32) + b_oe_a_ref[...]
    s = s + y_exp * k_curr
    nz = nz + k_curr

    # ---------------- MLP block: reader -> gated MLP -> writer ---------------
    x2 = reader(s, nz, w_rm_ref, gnw_m_ref, gnb_m_ref, 2)                   # (l, 2H)
    gu = jnp.dot(x2, w_gu_ref[...], preferred_element_type=jnp.float32)     # (l, 2*mlp)
    h_act = _silu(gu[:, :mlp_size]) * gu[:, mlp_size:]                      # (l, mlp) == raw
    t2 = jnp.dot(h_act, wt_m_ref[...], preferred_element_type=jnp.float32) + btu_m_ref[...]
    k_curr2 = jnp.dot(_softplus(t2), e_km_ref[...], preferred_element_type=jnp.float32)
    y2_exp = jnp.dot(h_act, w_de_ref[...], preferred_element_type=jnp.float32)

    s_out_ref[0] = (s + y2_exp * k_curr2).astype(s_out_ref.dtype)
    nz_out_ref[0] = (nz + k_curr2).astype(nz_out_ref.dtype)


# ----------------------------- wrapper ----------------------------------------
def rat_layer_forward(params, s, nz, *, num_heads, eps):
    bs, l, H, C = s.shape
    HC = H * C
    mlp = params["wg"].shape[0]
    f32 = jnp.float32

    # --- grid-invariant parameter preprocessing (hoisted out of the kernel) ---
    eye_h = jnp.eye(H, dtype=f32)

    def reader_weight(q):
        # (N, H, C) -> block-diagonal (H*C, N*H):
        #   W[h*C + c, n*H + k] = softplus(q)[n, h, c] * delta(h, k)
        qp = _softplus(q.astype(f32))
        return jnp.einsum("nhc,hk->hcnk", qp, eye_h).reshape(HC, q.shape[0] * H)

    w_ra = reader_weight(params["q_a"])                       # (HC, 3H)
    w_rm = reader_weight(params["q_m"])                       # (HC, 2H)
    e_ones = jnp.repeat(eye_h, C, axis=1)                     # (H, HC): broadcast H -> H*C
    e_ka = e_ones * _softplus(params["k_a"].astype(f32)).reshape(1, HC)
    e_km = e_ones * _softplus(params["k_m"].astype(f32)).reshape(1, HC)
    w_qkv = _block_diag(params["wq"].T.astype(f32), params["wk"].T.astype(f32),
                        params["wv"].T.astype(f32))           # (3H, 3H)
    w_gu = _block_diag(params["wg"].T.astype(f32), params["wu"].T.astype(f32))  # (2H, 2*mlp)

    # low-rank timescale projections precombined into a single matrix
    wt_a = params["wtd_a"].T.astype(f32) @ params["wtu_a"].T.astype(f32)   # (H, H)
    wt_m = params["wtd_m"].T.astype(f32) @ params["wtu_m"].T.astype(f32)   # (mlp, H)
    # o_proj / down_proj fused with the H -> H*C channel-broadcast expansion
    w_oe_a = params["wo"].T.astype(f32) @ e_ones                            # (H, HC)
    b_oe_a = params["bo"].reshape(1, H).astype(f32) @ e_ones                # (1, HC)
    w_de = params["wd"].T.astype(f32) @ e_ones                              # (mlp, HC)

    args = (
        s.reshape(bs, l, HC), nz.reshape(bs, l, HC),
        w_ra, params["gnw_a"].reshape(1, 3 * H).astype(f32),
        params["gnb_a"].reshape(1, 3 * H).astype(f32),
        w_qkv, params["bqkv"].reshape(1, 3 * H).astype(f32),
        w_oe_a, b_oe_a,
        wt_a, params["btu_a"].reshape(1, H).astype(f32), e_ka,
        w_rm, params["gnw_m"].reshape(1, 2 * H).astype(f32),
        params["gnb_m"].reshape(1, 2 * H).astype(f32),
        w_gu, w_de,
        wt_m, params["btu_m"].reshape(1, H).astype(f32), e_km,
    )

    def _const(shape):
        return pl.BlockSpec(shape, lambda b: (0,) * len(shape))

    state_spec = pl.BlockSpec((1, l, HC), lambda b: (b, 0, 0))
    in_specs = [state_spec, state_spec] + [_const(a.shape) for a in args[2:]]

    s_new, nz_new = pl.pallas_call(
        functools.partial(rat_layer_kernel, hidden=H, num_heads=num_heads,
                          mlp_size=mlp, eps=eps),
        out_shape=(jax.ShapeDtypeStruct((bs, l, HC), s.dtype),
                   jax.ShapeDtypeStruct((bs, l, HC), s.dtype)),
        grid=(bs,),
        in_specs=in_specs,
        out_specs=(state_spec, state_spec),
        compiler_params=pltpu.CompilerParams(
            dimension_semantics=("parallel",),          # shards over both v7x TCs
            vmem_limit_bytes=32 * 1024 * 1024),         # safe on v5e/v6e/v7x
    )(*args)
    return s_new.reshape(bs, l, H, C), nz_new.reshape(bs, l, H, C)


# ----------------------------- pure-JAX reference ------------------------------
def ref_rat_layer(params, s, nz, *, num_heads, eps):
    H = s.shape[2]

    def reader(s, nz, q, gnw, gnb):
        qp = _softplus(jnp.transpose(q, (1, 2, 0)))[None, None]       # (1,1,H,C,N)
        y = (s[..., None] * qp).sum(axis=-2)
        d = (nz[..., None] * qp).sum(axis=-2)
        y = y / (d + 1.0)
        bs, l, _, N = y.shape
        y = jnp.transpose(y, (0, 1, 3, 2))                            # (bs,l,N,H)
        mean = y.mean(axis=-1, keepdims=True)
        var = ((y - mean) ** 2).mean(axis=-1, keepdims=True)
        y = (y - mean) / jnp.sqrt(var + eps)
        return y.reshape(bs, l, N * H) * gnw + gnb

    def attention(x):
        bs, l, _ = x.shape
        q = x[..., :H] @ params["wq"].T + params["bqkv"][:H]
        k = x[..., H:2 * H] @ params["wk"].T + params["bqkv"][H:2 * H]
        v = x[..., 2 * H:] @ params["wv"].T + params["bqkv"][2 * H:]
        hd = H // num_heads
        q = q.reshape(bs, l, num_heads, hd).transpose(0, 2, 1, 3)
        k = k.reshape(bs, l, num_heads, hd).transpose(0, 2, 1, 3)
        v = v.reshape(bs, l, num_heads, hd).transpose(0, 2, 1, 3)
        sc = jnp.einsum("bhqd,bhkd->bhqk", q, k) / (hd ** 0.5)
        mask = jnp.tril(jnp.ones((l, l), bool))
        sc = jnp.where(mask, sc, -1e30)
        p = jax.nn.softmax(sc, axis=-1)
        o = jnp.einsum("bhqk,bhkd->bhqd", p, v).transpose(0, 2, 1, 3).reshape(bs, l, H)
        return o @ params["wo"].T + params["bo"], o

    def mlp(x):
        g = x[..., :H] @ params["wg"].T
        u = x[..., H:] @ params["wu"].T
        h = _silu(g) * u
        return h @ params["wd"].T, h

    def writer(y, raw, s, nz, k, wtd, wtu, btu):
        t = (raw @ wtd.T) @ wtu.T + btu
        k_curr = _softplus(t)[..., None] * _softplus(k)[None, None]
        return s + y[..., None] * k_curr, nz + k_curr

    x = reader(s, nz, params["q_a"], params["gnw_a"], params["gnb_a"])
    y, raw = attention(x)
    s, nz = writer(y, raw, s, nz, params["k_a"], params["wtd_a"], params["wtu_a"], params["btu_a"])
    x = reader(s, nz, params["q_m"], params["gnw_m"], params["gnb_m"])
    y, raw = mlp(x)
    s, nz = writer(y, raw, s, nz, params["k_m"], params["wtd_m"], params["wtu_m"], params["btu_m"])
    return s, nz


# ----------------------------- params ------------------------------------------
def init_params(key, H, C, mlp, rank, softplus_init_min=0.1):
    ks = jax.random.split(key, 16)

    def inv_softplus_init(k, shape):
        v = jnp.abs(jax.random.normal(k, shape, jnp.float32)) / (C ** 0.5) + softplus_init_min
        return jnp.log(jnp.expm1(v))

    p = {}
    # attention block (num_inputs=3, raw_size=H)
    p["q_a"] = inv_softplus_init(ks[0], (3, H, C))          # stored as (N,H,C); torch: (1,1,H,C,N)
    p["gnw_a"] = jnp.ones((3 * H,), jnp.float32)
    p["gnb_a"] = jnp.zeros((3 * H,), jnp.float32)
    p["wq"] = 0.05 * jax.random.normal(ks[1], (H, H), jnp.float32)
    p["wk"] = 0.05 * jax.random.normal(ks[2], (H, H), jnp.float32)
    p["wv"] = 0.05 * jax.random.normal(ks[3], (H, H), jnp.float32)
    p["bqkv"] = 0.01 * jax.random.normal(ks[4], (3 * H,), jnp.float32)
    p["wo"] = 0.05 * jax.random.normal(ks[5], (H, H), jnp.float32)
    p["bo"] = jnp.zeros((H,), jnp.float32)
    p["k_a"] = inv_softplus_init(ks[6], (H, C))
    p["wtd_a"] = 0.05 * jax.random.normal(ks[7], (rank, H), jnp.float32)
    p["wtu_a"] = 0.05 * jax.random.normal(ks[8], (H, rank), jnp.float32)
    p["btu_a"] = jnp.full((H,), math.log(math.e - 1), jnp.float32)
    # MLP block (num_inputs=2, raw_size=mlp)
    p["q_m"] = inv_softplus_init(ks[9], (2, H, C))
    p["gnw_m"] = jnp.ones((2 * H,), jnp.float32)
    p["gnb_m"] = jnp.zeros((2 * H,), jnp.float32)
    p["wg"] = 0.05 * jax.random.normal(ks[10], (mlp, H), jnp.float32)
    p["wu"] = 0.05 * jax.random.normal(ks[11], (mlp, H), jnp.float32)
    p["wd"] = 0.05 * jax.random.normal(ks[12], (H, mlp), jnp.float32)
    p["k_m"] = inv_softplus_init(ks[13], (H, C))
    p["wtd_m"] = 0.05 * jax.random.normal(ks[14], (rank, mlp), jnp.float32)
    p["wtu_m"] = 0.05 * jax.random.normal(ks[15], (H, rank), jnp.float32)
    p["btu_m"] = jnp.full((H,), math.log(math.e - 1), jnp.float32)
    return p


# ----------------------------- main --------------------------------------------
if __name__ == "__main__":
    bs, l = 2, 8
    H, C, NHEADS, MLP, RANK = 32, 4, 4, 64, 8
    EPS = 1e-5

    key = jax.random.PRNGKey(0)
    kp, ks, kn = jax.random.split(key, 3)
    params = init_params(kp, H, C, MLP, RANK)
    hidden_states = jax.random.normal(ks, (bs, l, H, C), jnp.float32)
    normalizer = jnp.abs(jax.random.normal(kn, (bs, l, H, C), jnp.float32))
    position_ids = jnp.arange(l, dtype=jnp.int32)[None].repeat(bs, 0)  # unused (no rotary in synthetic BaseAttention)

    fwd = jax.jit(functools.partial(rat_layer_forward, num_heads=NHEADS, eps=EPS))
    s_new, nz_new = fwd(params, hidden_states, normalizer)
    jax.block_until_ready((s_new, nz_new))

    assert s_new.shape == (bs, l, H, C) and nz_new.shape == (bs, l, H, C)

    s_ref, nz_ref = ref_rat_layer(params, hidden_states, normalizer, num_heads=NHEADS, eps=EPS)
    assert jnp.allclose(s_new, s_ref, rtol=5e-2, atol=5e-2), "hidden_states mismatch vs reference"
    assert jnp.allclose(nz_new, nz_ref, rtol=5e-2, atol=5e-2), "normalizer mismatch vs reference"

    print("KERNEL_OK")
</pallas_src>

<mosaic_0001>
module attributes {stable_mosaic.version = 11 : i64} {
  func.func @rat_layer_kernel(%arg0: i32, %arg1: memref<1x8x128xf32, #tpu.memory_space<vmem>>, %arg2: memref<1x8x128xf32, #tpu.memory_space<vmem>>, %arg3: memref<128x96xf32, #tpu.memory_space<vmem>>, %arg4: memref<1x96xf32, #tpu.memory_space<vmem>>, %arg5: memref<1x96xf32, #tpu.memory_space<vmem>>, %arg6: memref<96x96xf32, #tpu.memory_space<vmem>>, %arg7: memref<1x96xf32, #tpu.memory_space<vmem>>, %arg8: memref<32x128xf32, #tpu.memory_space<vmem>>, %arg9: memref<1x128xf32, #tpu.memory_space<vmem>>, %arg10: memref<32x32xf32, #tpu.memory_space<vmem>>, %arg11: memref<1x32xf32, #tpu.memory_space<vmem>>, %arg12: memref<32x128xf32, #tpu.memory_space<vmem>>, %arg13: memref<128x64xf32, #tpu.memory_space<vmem>>, %arg14: memref<1x64xf32, #tpu.memory_space<vmem>>, %arg15: memref<1x64xf32, #tpu.memory_space<vmem>>, %arg16: memref<64x128xf32, #tpu.memory_space<vmem>>, %arg17: memref<64x128xf32, #tpu.memory_space<vmem>>, %arg18: memref<64x32xf32, #tpu.memory_space<vmem>>, %arg19: memref<1x32xf32, #tpu.memory_space<vmem>>, %arg20: memref<32x128xf32, #tpu.memory_space<vmem>>, %arg21: memref<1x8x128xf32, #tpu.memory_space<vmem>>, %arg22: memref<1x8x128xf32, #tpu.memory_space<vmem>>) attributes {dimension_semantics = [#tpu.dimension_semantics<parallel>], iteration_bounds = array<i64: 2>, scalar_prefetch = 0 : i64, scratch_operands = 0 : i64, tpu.core_type = #tpu.core_type<tc>, window_params = [{transform_indices = @transform_0, window_bounds = array<i64: 1, 8, 128>}, {transform_indices = @transform_1, window_bounds = array<i64: 1, 8, 128>}, {pipeline_mode = #tpu.pipeline_mode<synchronous>, transform_indices = @transform_2, window_bounds = array<i64: 128, 96>}, {pipeline_mode = #tpu.pipeline_mode<synchronous>, transform_indices = @transform_3, window_bounds = array<i64: 1, 96>}, {pipeline_mode = #tpu.pipeline_mode<synchronous>, transform_indices = @transform_4, window_bounds = array<i64: 1, 96>}, {pipeline_mode = #tpu.pipeline_mode<synchronous>, transform_indices = @transform_5, window_bounds = array<i64: 96, 96>}, {pipeline_mode = #tpu.pipeline_mode<synchronous>, transform_indices = @transform_6, window_bounds = array<i64: 1, 96>}, {pipeline_mode = #tpu.pipeline_mode<synchronous>, transform_indices = @transform_7, window_bounds = array<i64: 32, 128>}, {pipeline_mode = #tpu.pipeline_mode<synchronous>, transform_indices = @transform_8, window_bounds = array<i64: 1, 128>}, {pipeline_mode = #tpu.pipeline_mode<synchronous>, transform_indices = @transform_9, window_bounds = array<i64: 32, 32>}, {pipeline_mode = #tpu.pipeline_mode<synchronous>, transform_indices = @transform_10, window_bounds = array<i64: 1, 32>}, {pipeline_mode = #tpu.pipeline_mode<synchronous>, transform_indices = @transform_11, window_bounds = array<i64: 32, 128>}, {pipeline_mode = #tpu.pipeline_mode<synchronous>, transform_indices = @transform_12, window_bounds = array<i64: 128, 64>}, {pipeline_mode = #tpu.pipeline_mode<synchronous>, transform_indices = @transform_13, window_bounds = array<i64: 1, 64>}, {pipeline_mode = #tpu.pipeline_mode<synchronous>, transform_indices = @transform_14, window_bounds = array<i64: 1, 64>}, {pipeline_mode = #tpu.pipeline_mode<synchronous>, transform_indices = @transform_15, window_bounds = array<i64: 64, 128>}, {pipeline_mode = #tpu.pipeline_mode<synchronous>, transform_indices = @transform_16, window_bounds = array<i64: 64, 128>}, {pipeline_mode = #tpu.pipeline_mode<synchronous>, transform_indices = @transform_17, window_bounds = array<i64: 64, 32>}, {pipeline_mode = #tpu.pipeline_mode<synchronous>, transform_indices = @transform_18, window_bounds = array<i64: 1, 32>}, {pipeline_mode = #tpu.pipeline_mode<synchronous>, transform_indices = @transform_19, window_bounds = array<i64: 32, 128>}, {transform_indices = @transform_20, window_bounds = array<i64: 1, 8, 128>}, {transform_indices = @transform_21, window_bounds = array<i64: 1, 8, 128>}]} {
    %c0 = arith.constant 0 : index
    %c0_0 = arith.constant 0 : index
    %c0_1 = arith.constant 0 : index
    %0 = vector.load %arg1[%c0, %c0_0, %c0_1] : memref<1x8x128xf32, #tpu.memory_space<vmem>>, vector<1x8x128xf32>
    %1 = vector.shape_cast %0 : vector<1x8x128xf32> to vector<8x128xf32>
    %c0_2 = arith.constant 0 : index
    %c0_3 = arith.constant 0 : index
    %c0_4 = arith.constant 0 : index
    %2 = vector.load %arg2[%c0_2, %c0_3, %c0_4] : memref<1x8x128xf32, #tpu.memory_space<vmem>>, vector<1x8x128xf32>
    %3 = vector.shape_cast %2 : vector<1x8x128xf32> to vector<8x128xf32>
    %4 = tpu.concatenate %1, %3 in 0 : vector<8x128xf32>, vector<8x128xf32> -> vector<16x128xf32>
    %c0_5 = arith.constant 0 : index
    %c0_6 = arith.constant 0 : index
    %5 = vector.load %arg3[%c0_5, %c0_6] : memref<128x96xf32, #tpu.memory_space<vmem>>, vector<128x96xf32>
    %cst = arith.constant dense<0.000000e+00> : vector<16x96xf32>
    %6 = tpu.matmul %4, %5, %cst {dimension_numbers = #tpu.dot_dimension_numbers<[1], [0], [0], [1], [0, 0, 1, 1], [], []>} : vector<16x128xf32>, vector<128x96xf32>, vector<16x96xf32> -> vector<16x96xf32>
    %7 = vector.extract_strided_slice %6 {offsets = [0, 0], sizes = [8, 96], strides = [1, 1]} : vector<16x96xf32> to vector<8x96xf32>
    %8 = vector.extract_strided_slice %6 {offsets = [8, 0], sizes = [8, 96], strides = [1, 1]} : vector<16x96xf32> to vector<8x96xf32>
    %cst_7 = arith.constant 1.000000e+00 : f32
    %9 = vector.broadcast %cst_7 : f32 to vector<8x96xf32>
    %10 = arith.addf %8, %9 : vector<8x96xf32>
    %11 = arith.divf %7, %10 : vector<8x96xf32>
    %12 = vector.extract_strided_slice %11 {offsets = [0, 0], sizes = [8, 32], strides = [1, 1]} : vector<8x96xf32> to vector<8x32xf32>
    %cst_8 = arith.constant dense<0.000000e+00> : vector<8xf32>
    %13 = vector.multi_reduction <add>, %12, %cst_8 [1] : vector<8x32xf32> to vector<8xf32>
    %14 = vector.shape_cast %13 : vector<8xf32> to vector<8x1xf32>
    %cst_9 = arith.constant 3.200000e+01 : f32
    %15 = vector.broadcast %cst_9 : f32 to vector<8x1xf32>
    %16 = arith.divf %14, %15 : vector<8x1xf32>
    %17 = vector.broadcast %16 : vector<8x1xf32> to vector<8x32xf32>
    %18 = arith.subf %12, %17 : vector<8x32xf32>
    %19 = arith.mulf %18, %18 : vector<8x32xf32>
    %cst_10 = arith.constant dense<0.000000e+00> : vector<8xf32>
    %20 = vector.multi_reduction <add>, %19, %cst_10 [1] : vector<8x32xf32> to vector<8xf32>
    %21 = vector.shape_cast %20 : vector<8xf32> to vector<8x1xf32>
    %cst_11 = arith.constant 3.200000e+01 : f32
    %22 = vector.broadcast %cst_11 : f32 to vector<8x1xf32>
    %23 = arith.divf %21, %22 : vector<8x1xf32>
    %24 = vector.broadcast %16 : vector<8x1xf32> to vector<8x32xf32>
    %25 = arith.subf %12, %24 : vector<8x32xf32>
    %cst_12 = arith.constant 9.99999974E-6 : f32
    %26 = vector.broadcast %cst_12 : f32 to vector<8x1xf32>
    %27 = arith.addf %23, %26 : vector<8x1xf32>
    %28 = math.rsqrt %27 : vector<8x1xf32>
    %29 = vector.broadcast %28 : vector<8x1xf32> to vector<8x32xf32>
    %30 = arith.mulf %25, %29 : vector<8x32xf32>
    %31 = vector.extract_strided_slice %11 {offsets = [0, 32], sizes = [8, 32], strides = [1, 1]} : vector<8x96xf32> to vector<8x32xf32>
    %cst_13 = arith.constant dense<0.000000e+00> : vector<8xf32>
    %32 = vector.multi_reduction <add>, %31, %cst_13 [1] : vector<8x32xf32> to vector<8xf32>
    %33 = vector.shape_cast %32 : vector<8xf32> to vector<8x1xf32>
    %cst_14 = arith.constant 3.200000e+01 : f32
    %34 = vector.broadcast %cst_14 : f32 to vector<8x1xf32>
    %35 = arith.divf %33, %34 : vector<8x1xf32>
    %36 = vector.broadcast %35 : vector<8x1xf32> to vector<8x32xf32>
    %37 = arith.subf %31, %36 : vector<8x32xf32>
    %38 = arith.mulf %37, %37 : vector<8x32xf32>
    %cst_15 = arith.constant dense<0.000000e+00> : vector<8xf32>
    %39 = vector.multi_reduction <add>, %38, %cst_15 [1] : vector<8x32xf32> to vector<8xf32>
    %40 = vector.shape_cast %39 : vector<8xf32> to vector<8x1xf32>
    %cst_16 = arith.constant 3.200000e+01 : f32
    %41 = vector.broadcast %cst_16 : f32 to vector<8x1xf32>
    %42 = arith.divf %40, %41 : vector<8x1xf32>
    %43 = vector.broadcast %35 : vector<8x1xf32> to vector<8x32xf32>
    %44 = arith.subf %31, %43 : vector<8x32xf32>
    %cst_17 = arith.constant 9.99999974E-6 : f32
    %45 = vector.broadcast %cst_17 : f32 to vector<8x1xf32>
    %46 = arith.addf %42, %45 : vector<8x1xf32>
    %47 = math.rsqrt %46 : vector<8x1xf32>
    %48 = vector.broadcast %47 : vector<8x1xf32> to vector<8x32xf32>
    %49 = arith.mulf %44, %48 : vector<8x32xf32>
    %50 = vector.extract_strided_slice %11 {offsets = [0, 64], sizes = [8, 32], strides = [1, 1]} : vector<8x96xf32> to vector<8x32xf32>
    %cst_18 = arith.constant dense<0.000000e+00> : vector<8xf32>
    %51 = vector.multi_reduction <add>, %50, %cst_18 [1] : vector<8x32xf32> to vector<8xf32>
    %52 = vector.shape_cast %51 : vector<8xf32> to vector<8x1xf32>
    %cst_19 = arith.constant 3.200000e+01 : f32
    %53 = vector.broadcast %cst_19 : f32 to vector<8x1xf32>
    %54 = arith.divf %52, %53 : vector<8x1xf32>
    %55 = vector.broadcast %54 : vector<8x1xf32> to vector<8x32xf32>
    %56 = arith.subf %50, %55 : vector<8x32xf32>
    %57 = arith.mulf %56, %56 : vector<8x32xf32>
    %cst_20 = arith.constant dense<0.000000e+00> : vector<8xf32>
    %58 = vector.multi_reduction <add>, %57, %cst_20 [1] : vector<8x32xf32> to vector<8xf32>
    %59 = vector.shape_cast %58 : vector<8xf32> to vector<8x1xf32>
    %cst_21 = arith.constant 3.200000e+01 : f32
    %60 = vector.broadcast %cst_21 : f32 to vector<8x1xf32>
    %61 = arith.divf %59, %60 : vector<8x1xf32>
    %62 = vector.broadcast %54 : vector<8x1xf32> to vector<8x32xf32>
    %63 = arith.subf %50, %62 : vector<8x32xf32>
    %cst_22 = arith.constant 9.99999974E-6 : f32
    %64 = vector.broadcast %cst_22 : f32 to vector<8x1xf32>
    %65 = arith.addf %61, %64 : vector<8x1xf32>
    %66 = math.rsqrt %65 : vector<8x1xf32>
    %67 = vector.broadcast %66 : vector<8x1xf32> to vector<8x32xf32>
    %68 = arith.mulf %63, %67 : vector<8x32xf32>
    %69 = tpu.concatenate %30, %49, %68 in 1 : vector<8x32xf32>, vector<8x32xf32>, vector<8x32xf32> -> vector<8x96xf32>
    %c0_23 = arith.constant 0 : index
    %c0_24 = arith.constant 0 : index
    %70 = vector.load %arg4[%c0_23, %c0_24] : memref<1x96xf32, #tpu.memory_space<vmem>>, vector<1x96xf32>
    %71 = vector.broadcast %70 : vector<1x96xf32> to vector<8x96xf32>
    %72 = arith.mulf %69, %71 : vector<8x96xf32>
    %c0_25 = arith.constant 0 : index
    %c0_26 = arith.constant 0 : index
    %73 = vector.load %arg5[%c0_25, %c0_26] : memref<1x96xf32, #tpu.memory_space<vmem>>, vector<1x96xf32>
    %74 = vector.broadcast %73 : vector<1x96xf32> to vector<8x96xf32>
    %75 = arith.addf %72, %74 : vector<8x96xf32>
    %c0_27 = arith.constant 0 : index
    %c0_28 = arith.constant 0 : index
    %76 = vector.load %arg6[%c0_27, %c0_28] : memref<96x96xf32, #tpu.memory_space<vmem>>, vector<96x96xf32>
    %cst_29 = arith.constant dense<0.000000e+00> : vector<8x96xf32>
    %77 = tpu.matmul %75, %76, %cst_29 {dimension_numbers = #tpu.dot_dimension_numbers<[1], [0], [0], [1], [0, 0, 1, 1], [], []>} : vector<8x96xf32>, vector<96x96xf32>, vector<8x96xf32> -> vector<8x96xf32>
    %c0_30 = arith.constant 0 : index
    %c0_31 = arith.constant 0 : index
    %78 = vector.load %arg7[%c0_30, %c0_31] : memref<1x96xf32, #tpu.memory_space<vmem>>, vector<1x96xf32>
    %79 = vector.broadcast %78 : vector<1x96xf32> to vector<8x96xf32>
    %80 = arith.addf %77, %79 : vector<8x96xf32>
    %81 = vector.extract_strided_slice %80 {offsets = [0, 0], sizes = [8, 32], strides = [1, 1]} : vector<8x96xf32> to vector<8x32xf32>
    %82 = vector.extract_strided_slice %80 {offsets = [0, 32], sizes = [8, 32], strides = [1, 1]} : vector<8x96xf32> to vector<8x32xf32>
    %83 = vector.extract_strided_slice %80 {offsets = [0, 64], sizes = [8, 32], strides = [1, 1]} : vector<8x96xf32> to vector<8x32xf32>
    %84 = vector.extract_strided_slice %81 {offsets = [0, 0], sizes = [8, 8], strides = [1, 1]} : vector<8x32xf32> to vector<8x8xf32>
    %85 = vector.extract_strided_slice %81 {offsets = [0, 8], sizes = [8, 8], strides = [1, 1]} : vector<8x32xf32> to vector<8x8xf32>
    %86 = vector.extract_strided_slice %81 {offsets = [0, 16], sizes = [8, 8], strides = [1, 1]} : vector<8x32xf32> to vector<8x8xf32>
    %87 = vector.extract_strided_slice %81 {offsets = [0, 24], sizes = [8, 8], strides = [1, 1]} : vector<8x32xf32> to vector<8x8xf32>
    %88 = vector.shape_cast %84 : vector<8x8xf32> to vector<1x8x8xf32>
    %89 = vector.shape_cast %85 : vector<8x8xf32> to vector<1x8x8xf32>
    %90 = vector.shape_cast %86 : vector<8x8xf32> to vector<1x8x8xf32>
    %91 = vector.shape_cast %87 : vector<8x8xf32> to vector<1x8x8xf32>
    %92 = tpu.concatenate %88, %89, %90, %91 in 0 : vector<1x8x8xf32>, vector<1x8x8xf32>, vector<1x8x8xf32>, vector<1x8x8xf32> -> vector<4x8x8xf32>
    %93 = vector.extract_strided_slice %82 {offsets = [0, 0], sizes = [8, 8], strides = [1, 1]} : vector<8x32xf32> to vector<8x8xf32>
    %94 = vector.extract_strided_slice %82 {offsets = [0, 8], sizes = [8, 8], strides = [1, 1]} : vector<8x32xf32> to vector<8x8xf32>
    %95 = vector.extract_strided_slice %82 {offsets = [0, 16], sizes = [8, 8], strides = [1, 1]} : vector<8x32xf32> to vector<8x8xf32>
    %96 = vector.extract_strided_slice %82 {offsets = [0, 24], sizes = [8, 8], strides = [1, 1]} : vector<8x32xf32> to vector<8x8xf32>
    %97 = vector.shape_cast %93 : vector<8x8xf32> to vector<1x8x8xf32>
    %98 = vector.shape_cast %94 : vector<8x8xf32> to vector<1x8x8xf32>
    %99 = vector.shape_cast %95 : vector<8x8xf32> to vector<1x8x8xf32>
    %100 = vector.shape_cast %96 : vector<8x8xf32> to vector<1x8x8xf32>
    %101 = tpu.concatenate %97, %98, %99, %100 in 0 : vector<1x8x8xf32>, vector<1x8x8xf32>, vector<1x8x8xf32>, vector<1x8x8xf32> -> vector<4x8x8xf32>
    %102 = vector.extract_strided_slice %83 {offsets = [0, 0], sizes = [8, 8], strides = [1, 1]} : vector<8x32xf32> to vector<8x8xf32>
    %103 = vector.extract_strided_slice %83 {offsets = [0, 8], sizes = [8, 8], strides = [1, 1]} : vector<8x32xf32> to vector<8x8xf32>
    %104 = vector.extract_strided_slice %83 {offsets = [0, 16], sizes = [8, 8], strides = [1, 1]} : vector<8x32xf32> to vector<8x8xf32>
    %105 = vector.extract_strided_slice %83 {offsets = [0, 24], sizes = [8, 8], strides = [1, 1]} : vector<8x32xf32> to vector<8x8xf32>
    %106 = vector.shape_cast %102 : vector<8x8xf32> to vector<1x8x8xf32>
    %107 = vector.shape_cast %103 : vector<8x8xf32> to vector<1x8x8xf32>
    %108 = vector.shape_cast %104 : vector<8x8xf32> to vector<1x8x8xf32>
    %109 = vector.shape_cast %105 : vector<8x8xf32> to vector<1x8x8xf32>
    %110 = tpu.concatenate %106, %107, %108, %109 in 0 : vector<1x8x8xf32>, vector<1x8x8xf32>, vector<1x8x8xf32>, vector<1x8x8xf32> -> vector<4x8x8xf32>
    %cst_32 = arith.constant dense<0.000000e+00> : vector<4x8x8xf32>
    %111 = tpu.matmul %92, %101, %cst_32 {dimension_numbers = #tpu.dot_dimension_numbers<[2], [2], [1], [1], [0, 0, 0, 1, 1, 1], [0], [0]>} : vector<4x8x8xf32>, vector<4x8x8xf32>, vector<4x8x8xf32> -> vector<4x8x8xf32>
    %cst_33 = arith.constant 0.353553385 : f32
    %112 = vector.broadcast %cst_33 : f32 to vector<4x8x8xf32>
    %113 = arith.mulf %111, %112 : vector<4x8x8xf32>
    %114 = tpu.iota {dimensions = array<i32: 0>} : vector<8x8xi32>
    %115 = tpu.iota {dimensions = array<i32: 1>} : vector<8x8xi32>
    %116 = arith.cmpi sle, %115, %114 : vector<8x8xi32>
    %117 = vector.shape_cast %116 : vector<8x8xi1> to vector<1x8x8xi1>
    %cst_34 = arith.constant -1.000000e+30 : f32
    %118 = vector.shape_cast %117 : vector<1x8x8xi1> to vector<1x8x8xi1>
    %119 = vector.broadcast %118 : vector<1x8x8xi1> to vector<4x8x8xi1>
    %120 = vector.broadcast %cst_34 : f32 to vector<4x8x8xf32>
    %121 = arith.select %119, %113, %120 : vector<4x8x8xi1>, vector<4x8x8xf32>
    %cst_35 = arith.constant dense<0xFF800000> : vector<4x8xf32>
    %122 = vector.multi_reduction <maximumf>, %121, %cst_35 [2] : vector<4x8x8xf32> to vector<4x8xf32>
    %123 = vector.shape_cast %122 : vector<4x8xf32> to vector<4x8x1xf32>
    %124 = vector.broadcast %123 : vector<4x8x1xf32> to vector<4x8x8xf32>
    %125 = arith.subf %121, %124 : vector<4x8x8xf32>
    %126 = math.exp %125 : vector<4x8x8xf32>
    %cst_36 = arith.constant dense<0.000000e+00> : vector<4x8xf32>
    %127 = vector.multi_reduction <add>, %126, %cst_36 [2] : vector<4x8x8xf32> to vector<4x8xf32>
    %128 = vector.shape_cast %127 : vector<4x8xf32> to vector<4x8x1xf32>
    %129 = vector.broadcast %128 : vector<4x8x1xf32> to vector<4x8x8xf32>
    %130 = arith.divf %126, %129 : vector<4x8x8xf32>
    %cst_37 = arith.constant dense<0.000000e+00> : vector<4x8x8xf32>
    %131 = tpu.matmul %130, %110, %cst_37 {dimension_numbers = #tpu.dot_dimension_numbers<[2], [1], [1], [2], [0, 0, 0, 1, 1, 2], [0], [0]>} : vector<4x8x8xf32>, vector<4x8x8xf32>, vector<4x8x8xf32> -> vector<4x8x8xf32>
    %132 = vector.extract_strided_slice %131 {offsets = [0, 0, 0], sizes = [1, 8, 8], strides = [1, 1, 1]} : vector<4x8x8xf32> to vector<1x8x8xf32>
    %133 = vector.shape_cast %132 : vector<1x8x8xf32> to vector<8x8xf32>
    %134 = vector.extract_strided_slice %131 {offsets = [1, 0, 0], sizes = [1, 8, 8], strides = [1, 1, 1]} : vector<4x8x8xf32> to vector<1x8x8xf32>
    %135 = vector.shape_cast %134 : vector<1x8x8xf32> to vector<8x8xf32>
    %136 = vector.extract_strided_slice %131 {offsets = [2, 0, 0], sizes = [1, 8, 8], strides = [1, 1, 1]} : vector<4x8x8xf32> to vector<1x8x8xf32>
    %137 = vector.shape_cast %136 : vector<1x8x8xf32> to vector<8x8xf32>
    %138 = vector.extract_strided_slice %131 {offsets = [3, 0, 0], sizes = [1, 8, 8], strides = [1, 1, 1]} : vector<4x8x8xf32> to vector<1x8x8xf32>
    %139 = vector.shape_cast %138 : vector<1x8x8xf32> to vector<8x8xf32>
    %140 = tpu.concatenate %133, %135, %137, %139 in 1 : vector<8x8xf32>, vector<8x8xf32>, vector<8x8xf32>, vector<8x8xf32> -> vector<8x32xf32>
    %c0_38 = arith.constant 0 : index
    %c0_39 = arith.constant 0 : index
    %141 = vector.load %arg10[%c0_38, %c0_39] : memref<32x32xf32, #tpu.memory_space<vmem>>, vector<32x32xf32>
    %cst_40 = arith.constant dense<0.000000e+00> : vector<8x32xf32>
    %142 = tpu.matmul %140, %141, %cst_40 {dimension_numbers = #tpu.dot_dimension_numbers<[1], [0], [0], [1], [0, 0, 1, 1], [], []>} : vector<8x32xf32>, vector<32x32xf32>, vector<8x32xf32> -> vector<8x32xf32>
    %c0_41 = arith.constant 0 : index
    %c0_42 = arith.constant 0 : index
    %143 = vector.load %arg11[%c0_41, %c0_42] : memref<1x32xf32, #tpu.memory_space<vmem>>, vector<1x32xf32>
    %144 = vector.broadcast %143 : vector<1x32xf32> to vector<8x32xf32>
    %145 = arith.addf %142, %144 : vector<8x32xf32>
    %cst_43 = arith.constant 0.000000e+00 : f32
    %146 = vector.broadcast %cst_43 : f32 to vector<8x32xf32>
    %147 = arith.maximumf %145, %146 : vector<8x32xf32>
    %148 = math.absf %145 : vector<8x32xf32>
    %cst_44 = arith.constant 0.000000e+00 : f32
    %149 = vector.broadcast %cst_44 : f32 to vector<8x32xf32>
    %150 = arith.subf %149, %148 : vector<8x32xf32>
    %151 = math.exp %150 : vector<8x32xf32>
    %152 = math.log1p %151 : vector<8x32xf32>
    %153 = arith.addf %147, %152 : vector<8x32xf32>
    %c0_45 = arith.constant 0 : index
    %c0_46 = arith.constant 0 : index
    %154 = vector.load %arg12[%c0_45, %c0_46] : memref<32x128xf32, #tpu.memory_space<vmem>>, vector<32x128xf32>
    %cst_47 = arith.constant dense<0.000000e+00> : vector<8x128xf32>
    %155 = tpu.matmul %153, %154, %cst_47 {dimension_numbers = #tpu.dot_dimension_numbers<[1], [0], [0], [1], [0, 0, 1, 1], [], []>} : vector<8x32xf32>, vector<32x128xf32>, vector<8x128xf32> -> vector<8x128xf32>
    %c0_48 = arith.constant 0 : index
    %c0_49 = arith.constant 0 : index
    %156 = vector.load %arg8[%c0_48, %c0_49] : memref<32x128xf32, #tpu.memory_space<vmem>>, vector<32x128xf32>
    %cst_50 = arith.constant dense<0.000000e+00> : vector<8x128xf32>
    %157 = tpu.matmul %140, %156, %cst_50 {dimension_numbers = #tpu.dot_dimension_numbers<[1], [0], [0], [1], [0, 0, 1, 1], [], []>} : vector<8x32xf32>, vector<32x128xf32>, vector<8x128xf32> -> vector<8x128xf32>
    %c0_51 = arith.constant 0 : index
    %c0_52 = arith.constant 0 : index
    %158 = vector.load %arg9[%c0_51, %c0_52] : memref<1x128xf32, #tpu.memory_space<vmem>>, vector<1x128xf32>
    %159 = vector.broadcast %158 : vector<1x128xf32> to vector<8x128xf32>
    %160 = arith.addf %157, %159 : vector<8x128xf32>
    %161 = arith.mulf %160, %155 : vector<8x128xf32>
    %162 = arith.addf %1, %161 : vector<8x128xf32>
    %163 = arith.addf %3, %155 : vector<8x128xf32>
    %164 = tpu.concatenate %162, %163 in 0 : vector<8x128xf32>, vector<8x128xf32> -> vector<16x128xf32>
    %c0_53 = arith.constant 0 : index
    %c0_54 = arith.constant 0 : index
    %165 = vector.load %arg13[%c0_53, %c0_54] : memref<128x64xf32, #tpu.memory_space<vmem>>, vector<128x64xf32>
    %cst_55 = arith.constant dense<0.000000e+00> : vector<16x64xf32>
    %166 = tpu.matmul %164, %165, %cst_55 {dimension_numbers = #tpu.dot_dimension_numbers<[1], [0], [0], [1], [0, 0, 1, 1], [], []>} : vector<16x128xf32>, vector<128x64xf32>, vector<16x64xf32> -> vector<16x64xf32>
    %167 = vector.extract_strided_slice %166 {offsets = [0, 0], sizes = [8, 64], strides = [1, 1]} : vector<16x64xf32> to vector<8x64xf32>
    %168 = vector.extract_strided_slice %166 {offsets = [8, 0], sizes = [8, 64], strides = [1, 1]} : vector<16x64xf32> to vector<8x64xf32>
    %cst_56 = arith.constant 1.000000e+00 : f32
    %169 = vector.broadcast %cst_56 : f32 to vector<8x64xf32>
    %170 = arith.addf %168, %169 : vector<8x64xf32>
    %171 = arith.divf %167, %170 : vector<8x64xf32>
    %172 = vector.extract_strided_slice %171 {offsets = [0, 0], sizes = [8, 32], strides = [1, 1]} : vector<8x64xf32> to vector<8x32xf32>
    %cst_57 = arith.constant dense<0.000000e+00> : vector<8xf32>
    %173 = vector.multi_reduction <add>, %172, %cst_57 [1] : vector<8x32xf32> to vector<8xf32>
    %174 = vector.shape_cast %173 : vector<8xf32> to vector<8x1xf32>
    %cst_58 = arith.constant 3.200000e+01 : f32
    %175 = vector.broadcast %cst_58 : f32 to vector<8x1xf32>
    %176 = arith.divf %174, %175 : vector<8x1xf32>
    %177 = vector.broadcast %176 : vector<8x1xf32> to vector<8x32xf32>
    %178 = arith.subf %172, %177 : vector<8x32xf32>
    %179 = arith.mulf %178, %178 : vector<8x32xf32>
    %cst_59 = arith.constant dense<0.000000e+00> : vector<8xf32>
    %180 = vector.multi_reduction <add>, %179, %cst_59 [1] : vector<8x32xf32> to vector<8xf32>
    %181 = vector.shape_cast %180 : vector<8xf32> to vector<8x1xf32>
    %cst_60 = arith.constant 3.200000e+01 : f32
    %182 = vector.broadcast %cst_60 : f32 to vector<8x1xf32>
    %183 = arith.divf %181, %182 : vector<8x1xf32>
    %184 = vector.broadcast %176 : vector<8x1xf32> to vector<8x32xf32>
    %185 = arith.subf %172, %184 : vector<8x32xf32>
    %cst_61 = arith.constant 9.99999974E-6 : f32
    %186 = vector.broadcast %cst_61 : f32 to vector<8x1xf32>
    %187 = arith.addf %183, %186 : vector<8x1xf32>
    %188 = math.rsqrt %187 : vector<8x1xf32>
    %189 = vector.broadcast %188 : vector<8x1xf32> to vector<8x32xf32>
    %190 = arith.mulf %185, %189 : vector<8x32xf32>
    %191 = vector.extract_strided_slice %171 {offsets = [0, 32], sizes = [8, 32], strides = [1, 1]} : vector<8x64xf32> to vector<8x32xf32>
    %cst_62 = arith.constant dense<0.000000e+00> : vector<8xf32>
    %192 = vector.multi_reduction <add>, %191, %cst_62 [1] : vector<8x32xf32> to vector<8xf32>
    %193 = vector.shape_cast %192 : vector<8xf32> to vector<8x1xf32>
    %cst_63 = arith.constant 3.200000e+01 : f32
    %194 = vector.broadcast %cst_63 : f32 to vector<8x1xf32>
    %195 = arith.divf %193, %194 : vector<8x1xf32>
    %196 = vector.broadcast %195 : vector<8x1xf32> to vector<8x32xf32>
    %197 = arith.subf %191, %196 : vector<8x32xf32>
    %198 = arith.mulf %197, %197 : vector<8x32xf32>
    %cst_64 = arith.constant dense<0.000000e+00> : vector<8xf32>
    %199 = vector.multi_reduction <add>, %198, %cst_64 [1] : vector<8x32xf32> to vector<8xf32>
    %200 = vector.shape_cast %199 : vector<8xf32> to vector<8x1xf32>
    %cst_65 = arith.constant 3.200000e+01 : f32
    %201 = vector.broadcast %cst_65 : f32 to vector<8x1xf32>
    %202 = arith.divf %200, %201 : vector<8x1xf32>
    %203 = vector.broadcast %195 : vector<8x1xf32> to vector<8x32xf32>
    %204 = arith.subf %191, %203 : vector<8x32xf32>
    %cst_66 = arith.constant 9.99999974E-6 : f32
    %205 = vector.broadcast %cst_66 : f32 to vector<8x1xf32>
    %206 = arith.addf %202, %205 : vector<8x1xf32>
    %207 = math.rsqrt %206 : vector<8x1xf32>
    %208 = vector.broadcast %207 : vector<8x1xf32> to vector<8x32xf32>
    %209 = arith.mulf %204, %208 : vector<8x32xf32>
    %210 = tpu.concatenate %190, %209 in 1 : vector<8x32xf32>, vector<8x32xf32> -> vector<8x64xf32>
    %c0_67 = arith.constant 0 : index
    %c0_68 = arith.constant 0 : index
    %211 = vector.load %arg14[%c0_67, %c0_68] : memref<1x64xf32, #tpu.memory_space<vmem>>, vector<1x64xf32>
    %212 = vector.broadcast %211 : vector<1x64xf32> to vector<8x64xf32>
    %213 = arith.mulf %210, %212 : vector<8x64xf32>
    %c0_69 = arith.constant 0 : index
    %c0_70 = arith.constant 0 : index
    %214 = vector.load %arg15[%c0_69, %c0_70] : memref<1x64xf32, #tpu.memory_space<vmem>>, vector<1x64xf32>
    %215 = vector.broadcast %214 : vector<1x64xf32> to vector<8x64xf32>
    %216 = arith.addf %213, %215 : vector<8x64xf32>
    %c0_71 = arith.constant 0 : index
    %c0_72 = arith.constant 0 : index
    %217 = vector.load %arg16[%c0_71, %c0_72] : memref<64x128xf32, #tpu.memory_space<vmem>>, vector<64x128xf32>
    %cst_73 = arith.constant dense<0.000000e+00> : vector<8x128xf32>
    %218 = tpu.matmul %216, %217, %cst_73 {dimension_numbers = #tpu.dot_dimension_numbers<[1], [0], [0], [1], [0, 0, 1, 1], [], []>} : vector<8x64xf32>, vector<64x128xf32>, vector<8x128xf32> -> vector<8x128xf32>
    %219 = vector.extract_strided_slice %218 {offsets = [0, 0], sizes = [8, 64], strides = [1, 1]} : vector<8x128xf32> to vector<8x64xf32>
    %cst_74 = arith.constant 0.000000e+00 : f32
    %220 = vector.broadcast %cst_74 : f32 to vector<8x64xf32>
    %221 = arith.subf %220, %219 : vector<8x64xf32>
    %222 = math.exp %221 : vector<8x64xf32>
    %cst_75 = arith.constant 1.000000e+00 : f32
    %223 = vector.broadcast %cst_75 : f32 to vector<8x64xf32>
    %224 = arith.addf %223, %222 : vector<8x64xf32>
    %225 = arith.divf %219, %224 : vector<8x64xf32>
    %226 = vector.extract_strided_slice %218 {offsets = [0, 64], sizes = [8, 64], strides = [1, 1]} : vector<8x128xf32> to vector<8x64xf32>
    %227 = arith.mulf %225, %226 : vector<8x64xf32>
    %c0_76 = arith.constant 0 : index
    %c0_77 = arith.constant 0 : index
    %228 = vector.load %arg18[%c0_76, %c0_77] : memref<64x32xf32, #tpu.memory_space<vmem>>, vector<64x32xf32>
    %cst_78 = arith.constant dense<0.000000e+00> : vector<8x32xf32>
    %229 = tpu.matmul %227, %228, %cst_78 {dimension_numbers = #tpu.dot_dimension_numbers<[1], [0], [0], [1], [0, 0, 1, 1], [], []>} : vector<8x64xf32>, vector<64x32xf32>, vector<8x32xf32> -> vector<8x32xf32>
    %c0_79 = arith.constant 0 : index
    %c0_80 = arith.constant 0 : index
    %230 = vector.load %arg19[%c0_79, %c0_80] : memref<1x32xf32, #tpu.memory_space<vmem>>, vector<1x32xf32>
    %231 = vector.broadcast %230 : vector<1x32xf32> to vector<8x32xf32>
    %232 = arith.addf %229, %231 : vector<8x32xf32>
    %cst_81 = arith.constant 0.000000e+00 : f32
    %233 = vector.broadcast %cst_81 : f32 to vector<8x32xf32>
    %234 = arith.maximumf %232, %233 : vector<8x32xf32>
    %235 = math.absf %232 : vector<8x32xf32>
    %cst_82 = arith.constant 0.000000e+00 : f32
    %236 = vector.broadcast %cst_82 : f32 to vector<8x32xf32>
    %237 = arith.subf %236, %235 : vector<8x32xf32>
    %238 = math.exp %237 : vector<8x32xf32>
    %239 = math.log1p %238 : vector<8x32xf32>
    %240 = arith.addf %234, %239 : vector<8x32xf32>
    %c0_83 = arith.constant 0 : index
    %c0_84 = arith.constant 0 : index
    %241 = vector.load %arg20[%c0_83, %c0_84] : memref<32x128xf32, #tpu.memory_space<vmem>>, vector<32x128xf32>
    %cst_85 = arith.constant dense<0.000000e+00> : vector<8x128xf32>
    %242 = tpu.matmul %240, %241, %cst_85 {dimension_numbers = #tpu.dot_dimension_numbers<[1], [0], [0], [1], [0, 0, 1, 1], [], []>} : vector<8x32xf32>, vector<32x128xf32>, vector<8x128xf32> -> vector<8x128xf32>
    %c0_86 = arith.constant 0 : index
    %c0_87 = arith.constant 0 : index
    %243 = vector.load %arg17[%c0_86, %c0_87] : memref<64x128xf32, #tpu.memory_space<vmem>>, vector<64x128xf32>
    %cst_88 = arith.constant dense<0.000000e+00> : vector<8x128xf32>
    %244 = tpu.matmul %227, %243, %cst_88 {dimension_numbers = #tpu.dot_dimension_numbers<[1], [0], [0], [1], [0, 0, 1, 1], [], []>} : vector<8x64xf32>, vector<64x128xf32>, vector<8x128xf32> -> vector<8x128xf32>
    %245 = arith.mulf %244, %242 : vector<8x128xf32>
    %246 = arith.addf %162, %245 : vector<8x128xf32>
    %c0_89 = arith.constant 0 : index
    %c0_90 = arith.constant 0 : index
    %c0_91 = arith.constant 0 : index
    %247 = vector.load %arg21[%c0_89, %c0_90, %c0_91] : memref<1x8x128xf32, #tpu.memory_space<vmem>>, vector<1x8x128xf32>
    %248 = vector.shape_cast %247 : vector<1x8x128xf32> to vector<8x128xf32>
    %249 = vector.shape_cast %246 : vector<8x128xf32> to vector<1x8x128xf32>
    tpu.vector_store %arg21[%c0_89, %c0_90, %c0_91], %249 {strides = array<i32>} : memref<1x8x128xf32, #tpu.memory_space<vmem>>, vector<1x8x128xf32>,
    %250 = arith.addf %163, %242 : vector<8x128xf32>
    %c0_92 = arith.constant 0 : index
    %c0_93 = arith.constant 0 : index
    %c0_94 = arith.constant 0 : index
    %251 = vector.load %arg22[%c0_92, %c0_93, %c0_94] : memref<1x8x128xf32, #tpu.memory_space<vmem>>, vector<1x8x128xf32>
    %252 = vector.shape_cast %251 : vector<1x8x128xf32> to vector<8x128xf32>
    %253 = vector.shape_cast %250 : vector<8x128xf32> to vector<1x8x128xf32>
    tpu.vector_store %arg22[%c0_92, %c0_93, %c0_94], %253 {strides = array<i32>} : memref<1x8x128xf32, #tpu.memory_space<vmem>>, vector<1x8x128xf32>,
    return
  }
  func.func @transform_0(%arg0: i32) -> (i32, i32, i32) {
    %c0_i32 = arith.constant 0 : i32
    %c0_i32_0 = arith.constant 0 : i32
    %c0_i32_1 = arith.constant 0 : i32
    return %arg0, %c0_i32, %c0_i32_0 : i32, i32, i32
  }
  func.func @transform_1(%arg0: i32) -> (i32, i32, i32) {
    %c0_i32 = arith.constant 0 : i32
    %c0_i32_0 = arith.constant 0 : i32
    %c0_i32_1 = arith.constant 0 : i32
    return %arg0, %c0_i32, %c0_i32_0 : i32, i32, i32
  }
  func.func @transform_2(%arg0: i32) -> (i32, i32) {
    %c0_i32 = arith.constant 0 : i32
    %c0_i32_0 = arith.constant 0 : i32
    %c0_i32_1 = arith.constant 0 : i32
    return %c0_i32, %c0_i32_0 : i32, i32
  }
  func.func @transform_3(%arg0: i32) -> (i32, i32) {
    %c0_i32 = arith.constant 0 : i32
    %c0_i32_0 = arith.constant 0 : i32
    %c0_i32_1 = arith.constant 0 : i32
    return %c0_i32, %c0_i32_0 : i32, i32
  }
  func.func @transform_4(%arg0: i32) -> (i32, i32) {
    %c0_i32 = arith.constant 0 : i32
    %c0_i32_0 = arith.constant 0 : i32
    %c0_i32_1 = arith.constant 0 : i32
    return %c0_i32, %c0_i32_0 : i32, i32
  }
  func.func @transform_5(%arg0: i32) -> (i32, i32) {
    %c0_i32 = arith.constant 0 : i32
    %c0_i32_0 = arith.constant 0 : i32
    %c0_i32_1 = arith.constant 0 : i32
    return %c0_i32, %c0_i32_0 : i32, i32
  }
  func.func @transform_6(%arg0: i32) -> (i32, i32) {
    %c0_i32 = arith.constant 0 : i32
    %c0_i32_0 = arith.constant 0 : i32
    %c0_i32_1 = arith.constant 0 : i32
    return %c0_i32, %c0_i32_0 : i32, i32
  }
  func.func @transform_7(%arg0: i32) -> (i32, i32) {
    %c0_i32 = arith.constant 0 : i32
    %c0_i32_0 = arith.constant 0 : i32
    %c0_i32_1 = arith.constant 0 : i32
    return %c0_i32, %c0_i32_0 : i32, i32
  }
  func.func @transform_8(%arg0: i32) -> (i32, i32) {
    %c0_i32 = arith.constant 0 : i32
    %c0_i32_0 = arith.constant 0 : i32
    %c0_i32_1 = arith.constant 0 : i32
    return %c0_i32, %c0_i32_0 : i32, i32
  }
  func.func @transform_9(%arg0: i32) -> (i32, i32) {
    %c0_i32 = arith.constant 0 : i32
    %c0_i32_0 = arith.constant 0 : i32
    %c0_i32_1 = arith.constant 0 : i32
    return %c0_i32, %c0_i32_0 : i32, i32
  }
  func.func @transform_10(%arg0: i32) -> (i32, i32) {
    %c0_i32 = arith.constant 0 : i32
    %c0_i32_0 = arith.constant 0 : i32
    %c0_i32_1 = arith.constant 0 : i32
    return %c0_i32, %c0_i32_0 : i32, i32
  }
  func.func @transform_11(%arg0: i32) -> (i32, i32) {
    %c0_i32 = arith.constant 0 : i32
    %c0_i32_0 = arith.constant 0 : i32
    %c0_i32_1 = arith.constant 0 : i32
    return %c0_i32, %c0_i32_0 : i32, i32
  }
  func.func @transform_12(%arg0: i32) -> (i32, i32) {
    %c0_i32 = arith.constant 0 : i32
    %c0_i32_0 = arith.constant 0 : i32
    %c0_i32_1 = arith.constant 0 : i32
    return %c0_i32, %c0_i32_0 : i32, i32
  }
  func.func @transform_13(%arg0: i32) -> (i32, i32) {
    %c0_i32 = arith.constant 0 : i32
    %c0_i32_0 = arith.constant 0 : i32
    %c0_i32_1 = arith.constant 0 : i32
    return %c0_i32, %c0_i32_0 : i32, i32
  }
  func.func @transform_14(%arg0: i32) -> (i32, i32) {
    %c0_i32 = arith.constant 0 : i32
    %c0_i32_0 = arith.constant 0 : i32
    %c0_i32_1 = arith.constant 0 : i32
    return %c0_i32, %c0_i32_0 : i32, i32
  }
  func.func @transform_15(%arg0: i32) -> (i32, i32) {
    %c0_i32 = arith.constant 0 : i32
    %c0_i32_0 = arith.constant 0 : i32
    %c0_i32_1 = arith.constant 0 : i32
    return %c0_i32, %c0_i32_0 : i32, i32
  }
  func.func @transform_16(%arg0: i32) -> (i32, i32) {
    %c0_i32 = arith.constant 0 : i32
    %c0_i32_0 = arith.constant 0 : i32
    %c0_i32_1 = arith.constant 0 : i32
    return %c0_i32, %c0_i32_0 : i32, i32
  }
  func.func @transform_17(%arg0: i32) -> (i32, i32) {
    %c0_i32 = arith.constant 0 : i32
    %c0_i32_0 = arith.constant 0 : i32
    %c0_i32_1 = arith.constant 0 : i32
    return %c0_i32, %c0_i32_0 : i32, i32
  }
  func.func @transform_18(%arg0: i32) -> (i32, i32) {
    %c0_i32 = arith.constant 0 : i32
    %c0_i32_0 = arith.constant 0 : i32
    %c0_i32_1 = arith.constant 0 : i32
    return %c0_i32, %c0_i32_0 : i32, i32
  }
  func.func @transform_19(%arg0: i32) -> (i32, i32) {
    %c0_i32 = arith.constant 0 : i32
    %c0_i32_0 = arith.constant 0 : i32
    %c0_i32_1 = arith.constant 0 : i32
    return %c0_i32, %c0_i32_0 : i32, i32
  }
  func.func @transform_20(%arg0: i32) -> (i32, i32, i32) {
    %c0_i32 = arith.constant 0 : i32
    %c0_i32_0 = arith.constant 0 : i32
    %c0_i32_1 = arith.constant 0 : i32
    return %arg0, %c0_i32, %c0_i32_0 : i32, i32, i32
  }
  func.func @transform_21(%arg0: i32) -> (i32, i32, i32) {
    %c0_i32 = arith.constant 0 : i32
    %c0_i32_0 = arith.constant 0 : i32
    %c0_i32_1 = arith.constant 0 : i32
    return %arg0, %c0_i32, %c0_i32_0 : i32, i32, i32
  }
}

</mosaic_0001>

<llo_original>
// kernel: mul.13
$region0: #{mul.13}
  %s0 = inlined_call_operand.vmem [shape: f32[32,4], index: 0, kind: input, shape index: {}]
  %s1 = inlined_call_operand.vmem [shape: f32[128], index: 1, kind: output, shape index: {}]
  $region1: #{mul.13} parent=0
    #allocation0 [shape = 'u8[4096]{0}', space=vmem, size = 0x1000, scoped, tag = 'scoped mem for output reshape']
    %v2 = vld [vmem:[%s0] sm:$0x1]
    %vm3 = vcmask 31744
    %4 = vst.msk [vmem:[#allocation0] sm:$0x1] %vm3, %v2
    %s5 = scalar_lea.vmem %s0, 31
    %v6 = vld [vmem:[%s5] sm:$0x1]
    %7 = vrot.lane.b32.xlu0 %v6, 124
    %v8 = vpop.permute.xlu0 %7
    %vm9 = vcmask 1048544
    %10 = vst.msk [vmem:[#allocation0] sm:$0x1] %vm9, %v8
    %s11 = scalar_lea.vmem %s0, 30
    %v12 = vld [vmem:[%s11] sm:$0x1]
    %13 = vrot.lane.b32.xlu0 %v12, 120
    %v14 = vpop.permute.xlu0 %13
    %vm15 = vcmask 1015744
    %16 = vst.msk [vmem:[#allocation0] sm:$0x1] %vm15, %v14
    %s17 = scalar_lea.vmem %s0, 29
    %v18 = vld [vmem:[%s17] sm:$0x1]
    %19 = vrot.lane.b32.xlu0 %v18, 116
    %v20 = vpop.permute.xlu0 %19
    %vm21 = vcmask 982944
    %22 = vst.msk [vmem:[#allocation0] sm:$0x1] %vm21, %v20
    %s23 = scalar_lea.vmem %s0, 28
    %v24 = vld [vmem:[%s23] sm:$0x1]
    %25 = vrot.lane.b32.xlu0 %v24, 112
    %v26 = vpop.permute.xlu0 %25
    %vm27 = vcmask 950144
    %28 = vst.msk [vmem:[#allocation0] sm:$0x1] %vm27, %v26
    %s29 = scalar_lea.vmem %s0, 27
    %v30 = vld [vmem:[%s29] sm:$0x1]
    %31 = vrot.lane.b32.xlu0 %v30, 108
    %v32 = vpop.permute.xlu0 %31
    %vm33 = vcmask 917344
    %34 = vst.msk [vmem:[#allocation0] sm:$0x1] %vm33, %v32
    %s35 = scalar_lea.vmem %s0, 26
    %v36 = vld [vmem:[%s35] sm:$0x1]
    %37 = vrot.lane.b32.xlu0 %v36, 104
    %v38 = vpop.permute.xlu0 %37
    %vm39 = vcmask 884544
    %40 = vst.msk [vmem:[#allocation0] sm:$0x1] %vm39, %v38
    %s41 = scalar_lea.vmem %s0, 25
    %v42 = vld [vmem:[%s41] sm:$0x1]
    %43 = vrot.lane.b32.xlu0 %v42, 100
    %v44 = vpop.permute.xlu0 %43
    %vm45 = vcmask 851744
    %46 = vst.msk [vmem:[#allocation0] sm:$0x1] %vm45, %v44
    %s47 = scalar_lea.vmem %s0, 24
    %v48 = vld [vmem:[%s47] sm:$0x1]
    %49 = vrot.lane.b32.xlu0 %v48, 96
    %v50 = vpop.permute.xlu0 %49
    %vm51 = vcmask 818944
    %52 = vst.msk [vmem:[#allocation0] sm:$0x1] %vm51, %v50
    %s53 = scalar_lea.vmem %s0, 23
    %v54 = vld [vmem:[%s53] sm:$0x1]
    %55 = vrot.lane.b32.xlu0 %v54, 92
    %v56 = vpop.permute.xlu0 %55
    %vm57 = vcmask 786144
    %58 = vst.msk [vmem:[#allocation0] sm:$0x1] %vm57, %v56
    %s59 = scalar_lea.vmem %s0, 22
    %v60 = vld [vmem:[%s59] sm:$0x1]
    %61 = vrot.lane.b32.xlu0 %v60, 88
    %v62 = vpop.permute.xlu0 %61
    %vm63 = vcmask 753344
    %64 = vst.msk [vmem:[#allocation0] sm:$0x1] %vm63, %v62
    %s65 = scalar_lea.vmem %s0, 21
    %v66 = vld [vmem:[%s65] sm:$0x1]
    %67 = vrot.lane.b32.xlu0 %v66, 84
    %v68 = vpop.permute.xlu0 %67
    %vm69 = vcmask 720544
    %70 = vst.msk [vmem:[#allocation0] sm:$0x1] %vm69, %v68
    %s71 = scalar_lea.vmem %s0, 20
    %v72 = vld [vmem:[%s71] sm:$0x1]
    %73 = vrot.lane.b32.xlu0 %v72, 80
    %v74 = vpop.permute.xlu0 %73
    %vm75 = vcmask 687744
    %76 = vst.msk [vmem:[#allocation0] sm:$0x1] %vm75, %v74
    %s77 = scalar_lea.vmem %s0, 19
    %v78 = vld [vmem:[%s77] sm:$0x1]
    %79 = vrot.lane.b32.xlu0 %v78, 76
    %v80 = vpop.permute.xlu0 %79
    %vm81 = vcmask 654944
    %82 = vst.msk [vmem:[#allocation0] sm:$0x1] %vm81, %v80
    %s83 = scalar_lea.vmem %s0, 18
    %v84 = vld [vmem:[%s83] sm:$0x1]
    %85 = vrot.lane.b32.xlu0 %v84, 72
    %v86 = vpop.permute.xlu0 %85
    %vm87 = vcmask 622144
    %88 = vst.msk [vmem:[#allocation0] sm:$0x1] %vm87, %v86
    %s89 = scalar_lea.vmem %s0, 17
    %v90 = vld [vmem:[%s89] sm:$0x1]
    %91 = vrot.lane.b32.xlu0 %v90, 68
    %v92 = vpop.permute.xlu0 %91
    %vm93 = vcmask 589344
    %94 = vst.msk [vmem:[#allocation0] sm:$0x1] %vm93, %v92
    %s95 = scalar_lea.vmem %s0, 16
    %v96 = vld [vmem:[%s95] sm:$0x1]
    %97 = vrot.lane.b32.xlu0 %v96, 64
    %v98 = vpop.permute.xlu0 %97
    %vm99 = vcmask 556544
    %100 = vst.msk [vmem:[#allocation0] sm:$0x1] %vm99, %v98
    %s101 = scalar_lea.vmem %s0, 15
    %v102 = vld [vmem:[%s101] sm:$0x1]
    %103 = vrot.lane.b32.xlu0 %v102, 60
    %v104 = vpop.permute.xlu0 %103
    %vm105 = vcmask 523744
    %106 = vst.msk [vmem:[#allocation0] sm:$0x1] %vm105, %v104
    %s107 = scalar_lea.vmem %s0, 14
    %v108 = vld [vmem:[%s107] sm:$0x1]
    %109 = vrot.lane.b32.xlu0 %v108, 56
    %v110 = vpop.permute.xlu0 %109
    %vm111 = vcmask 490944
    %112 = vst.msk [vmem:[#allocation0] sm:$0x1] %vm111, %v110
    %s113 = scalar_lea.vmem %s0, 13
    %v114 = vld [vmem:[%s113] sm:$0x1]
    %115 = vrot.lane.b32.xlu0 %v114, 52
    %v116 = vpop.permute.xlu0 %115
    %vm117 = vcmask 458144
    %118 = vst.msk [vmem:[#allocation0] sm:$0x1] %vm117, %v116
    %s119 = scalar_lea.vmem %s0, 12
    %v120 = vld [vmem:[%s119] sm:$0x1]
    %121 = vrot.lane.b32.xlu0 %v120, 48
    %v122 = vpop.permute.xlu0 %121
    %vm123 = vcmask 425344
    %124 = vst.msk [vmem:[#allocation0] sm:$0x1] %vm123, %v122
    %s125 = scalar_lea.vmem %s0, 11
    %v126 = vld [vmem:[%s125] sm:$0x1]
    %127 = vrot.lane.b32.xlu0 %v126, 44
    %v128 = vpop.permute.xlu0 %127
    %vm129 = vcmask 392544
    %130 = vst.msk [vmem:[#allocation0] sm:$0x1] %vm129, %v128
    %s131 = scalar_lea.vmem %s0, 10
    %v132 = vld [vmem:[%s131] sm:$0x1]
    %133 = vrot.lane.b32.xlu0 %v132, 40
    %v134 = vpop.permute.xlu0 %133
    %vm135 = vcmask 359744
    %136 = vst.msk [vmem:[#allocation0] sm:$0x1] %vm135, %v134
    %s137 = scalar_lea.vmem %s0, 9
    %v138 = vld [vmem:[%s137] sm:$0x1]
    %139 = vrot.lane.b32.xlu0 %v138, 36
    %v140 = vpop.permute.xlu0 %139
    %vm141 = vcmask 326944
    %142 = vst.msk [vmem:[#allocation0] sm:$0x1] %vm141, %v140
    %s143 = scalar_lea.vmem %s0, 8
    %v144 = vld [vmem:[%s143] sm:$0x1]
    %145 = vrot.lane.b32.xlu0 %v144, 32
    %v146 = vpop.permute.xlu0 %145
    %vm147 = vcmask 294144
    %148 = vst.msk [vmem:[#allocation0] sm:$0x1] %vm147, %v146
    %s149 = scalar_lea.vmem %s0, 7
    %v150 = vld [vmem:[%s149] sm:$0x1]
    %151 = vrot.lane.b32.xlu0 %v150, 28
    %v152 = vpop.permute.xlu0 %151
    %vm153 = vcmask 261344
    %154 = vst.msk [vmem:[#allocation0] sm:$0x1] %vm153, %v152
    %s155 = scalar_lea.vmem %s0, 6
    %v156 = vld [vmem:[%s155] sm:$0x1]
    %157 = vrot.lane.b32.xlu0 %v156, 24
    %v158 = vpop.permute.xlu0 %157
    %vm159 = vcmask 228544
    %160 = vst.msk [vmem:[#allocation0] sm:$0x1] %vm159, %v158
    %s161 = scalar_lea.vmem %s0, 5
    %v162 = vld [vmem:[%s161] sm:$0x1]
    %163 = vrot.lane.b32.xlu0 %v162, 20
    %v164 = vpop.permute.xlu0 %163
    %vm165 = vcmask 195744
    %166 = vst.msk [vmem:[#allocation0] sm:$0x1] %vm165, %v164
    %s167 = scalar_lea.vmem %s0, 4
    %v168 = vld [vmem:[%s167] sm:$0x1]
    %169 = vrot.lane.b32.xlu0 %v168, 16
    %v170 = vpop.permute.xlu0 %169
    %vm171 = vcmask 162944
    %172 = vst.msk [vmem:[#allocation0] sm:$0x1] %vm171, %v170
    %s173 = scalar_lea.vmem %s0, 3
    %v174 = vld [vmem:[%s173] sm:$0x1]
    %175 = vrot.lane.b32.xlu0 %v174, 12
    %v176 = vpop.permute.xlu0 %175
    %vm177 = vcmask 130144
    %178 = vst.msk [vmem:[#allocation0] sm:$0x1] %vm177, %v176
    %s179 = scalar_lea.vmem %s0, 2
    %v180 = vld [vmem:[%s179] sm:$0x1]
    %181 = vrot.lane.b32.xlu0 %v180, 8
    %v182 = vpop.permute.xlu0 %181
    %vm183 = vcmask 97344
    %184 = vst.msk [vmem:[#allocation0] sm:$0x1] %vm183, %v182
    %s185 = scalar_lea.vmem %s0, 1
    %v186 = vld [vmem:[%s185] sm:$0x1]
    %187 = vrot.lane.b32.xlu0 %v186, 4
    %v188 = vpop.permute.xlu0 %187
    %vm189 = vcmask 64544
    %190 = vst.msk [vmem:[#allocation0] sm:$0x1] %vm189, %v188
    %s192 = sshll.u32 1, 1
    %s193 = ssub.s32 %s192, 1
    %v195 = vld [vmem:[#allocation0] sm:%s193]
    %s196 = sshll.u32 1, 1
    %s197 = ssub.s32 %s196, 1
    %198 = vst [vmem:[%s1] sm:%s197] %v195

// kernel: rat_layer_forward.1
$region0: #{rat_layer_forward.1}
  #allocation0 [shape = 'u32[]', space=smem, size = 0x4, offset = 0x4, fixed_abs, tag = 'smem constant byte address 0x4 - core index']
  #allocation1 [shape = 'u32[144,128]{1,0:T(1,128)}', space=vmem, size = 0x12000, scoped, tag = 'internal scratch']
  %s0 = inlined_call_operand.vmem [shape: f32[2,8,128], index: 0, kind: input, shape index: {}]
  %s1 = inlined_call_operand.vmem [shape: f32[2,8,128], index: 1, kind: input, shape index: {}]
  %s2 = inlined_call_operand.vmem [shape: f32[128,96], index: 2, kind: input, shape index: {}]
  %s3 = inlined_call_operand.vmem [shape: f32[1,96], index: 3, kind: input, shape index: {}]
  %s4 = inlined_call_operand.vmem [shape: f32[1,96], index: 4, kind: input, shape index: {}]
  %s5 = inlined_call_operand.vmem [shape: f32[96,96], index: 5, kind: input, shape index: {}]
  %s6 = inlined_call_operand.vmem [shape: f32[1,96], index: 6, kind: input, shape index: {}]
  %s7 = inlined_call_operand.vmem [shape: f32[32,128], index: 7, kind: input, shape index: {}]
  %s8 = inlined_call_operand.vmem [shape: f32[1,128], index: 8, kind: input, shape index: {}]
  %s9 = inlined_call_operand.vmem [shape: f32[32,32], index: 9, kind: input, shape index: {}]
  %s10 = inlined_call_operand.vmem [shape: f32[1,32], index: 10, kind: input, shape index: {}]
  %s11 = inlined_call_operand.vmem [shape: f32[32,128], index: 11, kind: input, shape index: {}]
  %s12 = inlined_call_operand.vmem [shape: f32[128,64], index: 12, kind: input, shape index: {}]
  %s13 = inlined_call_operand.vmem [shape: f32[1,64], index: 13, kind: input, shape index: {}]
  %s14 = inlined_call_operand.vmem [shape: f32[1,64], index: 14, kind: input, shape index: {}]
  %s15 = inlined_call_operand.vmem [shape: f32[64,128], index: 15, kind: input, shape index: {}]
  %s16 = inlined_call_operand.vmem [shape: f32[64,128], index: 16, kind: input, shape index: {}]
  %s17 = inlined_call_operand.vmem [shape: f32[64,32], index: 17, kind: input, shape index: {}]
  %s18 = inlined_call_operand.vmem [shape: f32[1,32], index: 18, kind: input, shape index: {}]
  %s19 = inlined_call_operand.vmem [shape: f32[32,128], index: 19, kind: input, shape index: {}]
  %s20 = inlined_call_operand.vmem [shape: f32[2,8,128], index: 20, kind: output, shape index: {0}]
  %s21 = inlined_call_operand.vmem [shape: f32[2,8,128], index: 21, kind: output, shape index: {1}]
  %22 = xla_tuple %s20, %s21
  %s23 = sld [smem:[#allocation0]]
  $region121: #{rat_layer_forward.1} parent=0
    _
  %s25 = ssub.s32 1, %s23
  %s26 = scalar_select 0, %s25, %s23
  loop: start=0, step=1, limit=4
  $region2: #{rat_layer_forward.1} parent=0 // loop_pre_header
    _
  $region3: #{rat_layer_forward.1} parent=0 // loop_header
    %s28 = sphi 0, %s32
    %p29 = scmp.ge.s32.totalorder %s28, 4
    %s38 = sphi 0, %s40
    %s41 = sphi 0, %s38
    %s42 = sphi 0, %s41
    %s58 = sphi 0, %s42
    %s64 = sphi 0, %s66
    %s67 = sphi 0, %s64
    %s68 = sphi 0, %s67
    %s84 = sphi 0, %s68
    %s88 = sphi 0, %s88
    %s90 = sphi 0, %s88
    %s91 = sphi 0, %s90
    %s105 = sphi 0, %s91
    %s109 = sphi 0, %s109
    %s111 = sphi 0, %s109
    %s112 = sphi 0, %s111
    %s126 = sphi 0, %s112
    %s130 = sphi 0, %s130
    %s132 = sphi 0, %s130
    %s133 = sphi 0, %s132
    %s147 = sphi 0, %s133
    %s151 = sphi 0, %s151
    %s153 = sphi 0, %s151
    %s154 = sphi 0, %s153
    %s168 = sphi 0, %s154
    %s172 = sphi 0, %s172
    %s174 = sphi 0, %s172
    %s175 = sphi 0, %s174
    %s189 = sphi 0, %s175
    %s193 = sphi 0, %s193
    %s195 = sphi 0, %s193
    %s196 = sphi 0, %s195
    %s210 = sphi 0, %s196
    %s214 = sphi 0, %s214
    %s216 = sphi 0, %s214
    %s217 = sphi 0, %s216
    %s231 = sphi 0, %s217
    %s235 = sphi 0, %s235
    %s237 = sphi 0, %s235
    %s238 = sphi 0, %s237
    %s252 = sphi 0, %s238
    %s256 = sphi 0, %s256
    %s258 = sphi 0, %s256
    %s259 = sphi 0, %s258
    %s273 = sphi 0, %s259
    %s277 = sphi 0, %s277
    %s279 = sphi 0, %s277
    %s280 = sphi 0, %s279
    %s294 = sphi 0, %s280
    %s298 = sphi 0, %s298
    %s300 = sphi 0, %s298
    %s301 = sphi 0, %s300
    %s315 = sphi 0, %s301
    %s319 = sphi 0, %s319
    %s321 = sphi 0, %s319
    %s322 = sphi 0, %s321
    %s336 = sphi 0, %s322
    %s340 = sphi 0, %s340
    %s342 = sphi 0, %s340
    %s343 = sphi 0, %s342
    %s357 = sphi 0, %s343
    %s361 = sphi 0, %s361
    %s363 = sphi 0, %s361
    %s364 = sphi 0, %s363
    %s378 = sphi 0, %s364
    %s382 = sphi 0, %s382
    %s384 = sphi 0, %s382
    %s385 = sphi 0, %s384
    %s399 = sphi 0, %s385
    %s403 = sphi 0, %s403
    %s405 = sphi 0, %s403
    %s406 = sphi 0, %s405
    %s420 = sphi 0, %s406
    %s424 = sphi 0, %s424
    %s426 = sphi 0, %s424
    %s427 = sphi 0, %s426
    %s441 = sphi 0, %s427
    %s445 = sphi 0, %s445
    %s447 = sphi 0, %s445
    %s448 = sphi 0, %s447
    %s462 = sphi 0, %s448
    %s468 = sphi 0, %s470
    %s471 = sphi 0, %s468
    %s472 = sphi 0, %s471
    %s488 = sphi 0, %s472
    %s494 = sphi 0, %s496
    %s497 = sphi 0, %s494
    %s498 = sphi 0, %s497
    %s514 = sphi 0, %s498
  $region4: #{rat_layer_forward.1} parent=0 // loop_header_branch
    %31 = sbr.rel (%p29) target = $region8
  $region5: #{rat_layer_forward.1} parent=0 // loop_body
    %s33 = ssub.s32 %s28, 1
    %s34 = ssub.s32 %s28, 2
    %s35 = sadd.s32 %s28, 1
    %s36 = ssub.s32 %s28, %s35
    %p37 = scmp.eq.s32.totalorder %s36, 0
    %s39 = sadd.s32 %s38, 1
    %s40 = scalar_select %p37, %s38, %s39
    %p43 = pneg %p37
    %p44 = scmp.eq.s32.totalorder %s28, 1
    %p45 = por %p43, %p44
    %p46 = scmp.ne.s32.totalorder %s38, %s41
    %p47 = scmp.eq.s32.totalorder %s28, 0
    %p48 = por %p46, %p47
    %p49 = scmp.ne.s32.totalorder %s38, %s41
    %p50 = scmp.eq.s32.totalorder %s33, 1
    %p51 = por %p49, %p50
    %p52 = scmp.ne.s32.totalorder %s41, %s42
    %p53 = scmp.eq.s32.totalorder %s33, 0
    %p54 = por %p52, %p53
    %p55 = scmp.ne.s32.totalorder %s41, %s42
    %p56 = scmp.eq.s32.totalorder %s34, 1
    %p57 = por %p55, %p56
    %p59 = scmp.ne.s32.totalorder %s42, %s58
    %p60 = scmp.eq.s32.totalorder %s34, 0
    %p61 = por %p59, %p60
    %s62 = ssub.s32 %s28, %s35
    %p63 = scmp.eq.s32.totalorder %s62, 0
    %s65 = sadd.s32 %s64, 1
    %s66 = scalar_select %p63, %s64, %s65
    %p69 = pneg %p63
    %p70 = scmp.eq.s32.totalorder %s28, 1
    %p71 = por %p69, %p70
    %p72 = scmp.ne.s32.totalorder %s64, %s67
    %p73 = scmp.eq.s32.totalorder %s28, 0
    %p74 = por %p72, %p73
    %p75 = scmp.ne.s32.totalorder %s64, %s67
    %p76 = scmp.eq.s32.totalorder %s33, 1
    %p77 = por %p75, %p76
    %p78 = scmp.ne.s32.totalorder %s67, %s68
    %p79 = scmp.eq.s32.totalorder %s33, 0
    %p80 = por %p78, %p79
    %p81 = scmp.ne.s32.totalorder %s67, %s68
    %p82 = scmp.eq.s32.totalorder %s34, 1
    %p83 = por %p81, %p82
    %p85 = scmp.ne.s32.totalorder %s68, %s84
    %p86 = scmp.eq.s32.totalorder %s34, 0
    %p87 = por %p85, %p86
    %s89 = sadd.s32 %s88, 1
    %p92 = scmp.eq.s32.totalorder %s28, 1
    %p93 = scmp.ne.s32.totalorder %s88, %s90
    %p94 = scmp.eq.s32.totalorder %s28, 0
    %p95 = por %p93, %p94
    %p96 = scmp.ne.s32.totalorder %s88, %s90
    %p97 = scmp.eq.s32.totalorder %s33, 1
    %p98 = por %p96, %p97
    %p99 = scmp.ne.s32.totalorder %s90, %s91
    %p100 = scmp.eq.s32.totalorder %s33, 0
    %p101 = por %p99, %p100
    %p102 = scmp.ne.s32.totalorder %s90, %s91
    %p103 = scmp.eq.s32.totalorder %s34, 1
    %p104 = por %p102, %p103
    %p106 = scmp.ne.s32.totalorder %s91, %s105
    %p107 = scmp.eq.s32.totalorder %s34, 0
    %p108 = por %p106, %p107
    %s110 = sadd.s32 %s109, 1
    %p113 = scmp.eq.s32.totalorder %s28, 1
    %p114 = scmp.ne.s32.totalorder %s109, %s111
    %p115 = scmp.eq.s32.totalorder %s28, 0
    %p116 = por %p114, %p115
    %p117 = scmp.ne.s32.totalorder %s109, %s111
    %p118 = scmp.eq.s32.totalorder %s33, 1
    %p119 = por %p117, %p118
    %p120 = scmp.ne.s32.totalorder %s111, %s112
    %p121 = scmp.eq.s32.totalorder %s33, 0
    %p122 = por %p120, %p121
    %p123 = scmp.ne.s32.totalorder %s111, %s112
    %p124 = scmp.eq.s32.totalorder %s34, 1
    %p125 = por %p123, %p124
    %p127 = scmp.ne.s32.totalorder %s112, %s126
    %p128 = scmp.eq.s32.totalorder %s34, 0
    %p129 = por %p127, %p128
    %s131 = sadd.s32 %s130, 1
    %p134 = scmp.eq.s32.totalorder %s28, 1
    %p135 = scmp.ne.s32.totalorder %s130, %s132
    %p136 = scmp.eq.s32.totalorder %s28, 0
    %p137 = por %p135, %p136
    %p138 = scmp.ne.s32.totalorder %s130, %s132
    %p139 = scmp.eq.s32.totalorder %s33, 1
    %p140 = por %p138, %p139
    %p141 = scmp.ne.s32.totalorder %s132, %s133
    %p142 = scmp.eq.s32.totalorder %s33, 0
    %p143 = por %p141, %p142
    %p144 = scmp.ne.s32.totalorder %s132, %s133
    %p145 = scmp.eq.s32.totalorder %s34, 1
    %p146 = por %p144, %p145
    %p148 = scmp.ne.s32.totalorder %s133, %s147
    %p149 = scmp.eq.s32.totalorder %s34, 0
    %p150 = por %p148, %p149
    %s152 = sadd.s32 %s151, 1
    %p155 = scmp.eq.s32.totalorder %s28, 1
    %p156 = scmp.ne.s32.totalorder %s151, %s153
    %p157 = scmp.eq.s32.totalorder %s28, 0
    %p158 = por %p156, %p157
    %p159 = scmp.ne.s32.totalorder %s151, %s153
    %p160 = scmp.eq.s32.totalorder %s33, 1
    %p161 = por %p159, %p160
    %p162 = scmp.ne.s32.totalorder %s153, %s154
    %p163 = scmp.eq.s32.totalorder %s33, 0
    %p164 = por %p162, %p163
    %p165 = scmp.ne.s32.totalorder %s153, %s154
    %p166 = scmp.eq.s32.totalorder %s34, 1
    %p167 = por %p165, %p166
    %p169 = scmp.ne.s32.totalorder %s154, %s168
    %p170 = scmp.eq.s32.totalorder %s34, 0
    %p171 = por %p169, %p170
    %s173 = sadd.s32 %s172, 1
    %p176 = scmp.eq.s32.totalorder %s28, 1
    %p177 = scmp.ne.s32.totalorder %s172, %s174
    %p178 = scmp.eq.s32.totalorder %s28, 0
    %p179 = por %p177, %p178
    %p180 = scmp.ne.s32.totalorder %s172, %s174
    %p181 = scmp.eq.s32.totalorder %s33, 1
    %p182 = por %p180, %p181
    %p183 = scmp.ne.s32.totalorder %s174, %s175
    %p184 = scmp.eq.s32.totalorder %s33, 0
    %p185 = por %p183, %p184
    %p186 = scmp.ne.s32.totalorder %s174, %s175
    %p187 = scmp.eq.s32.totalorder %s34, 1
    %p188 = por %p186, %p187
    %p190 = scmp.ne.s32.totalorder %s175, %s189
    %p191 = scmp.eq.s32.totalorder %s34, 0
    %p192 = por %p190, %p191
    %s194 = sadd.s32 %s193, 1
    %p197 = scmp.eq.s32.totalorder %s28, 1
    %p198 = scmp.ne.s32.totalorder %s193, %s195
    %p199 = scmp.eq.s32.totalorder %s28, 0
    %p200 = por %p198, %p199
    %p201 = scmp.ne.s32.totalorder %s193, %s195
    %p202 = scmp.eq.s32.totalorder %s33, 1
    %p203 = por %p201, %p202
    %p204 = scmp.ne.s32.totalorder %s195, %s196
    %p205 = scmp.eq.s32.totalorder %s33, 0
    %p206 = por %p204, %p205
    %p207 = scmp.ne.s32.totalorder %s195, %s196
    %p208 = scmp.eq.s32.totalorder %s34, 1
    %p209 = por %p207, %p208
    %p211 = scmp.ne.s32.totalorder %s196, %s210
    %p212 = scmp.eq.s32.totalorder %s34, 0
    %p213 = por %p211, %p212
    %s215 = sadd.s32 %s214, 1
    %p218 = scmp.eq.s32.totalorder %s28, 1
    %p219 = scmp.ne.s32.totalorder %s214, %s216
    %p220 = scmp.eq.s32.totalorder %s28, 0
    %p221 = por %p219, %p220
    %p222 = scmp.ne.s32.totalorder %s214, %s216
    %p223 = scmp.eq.s32.totalorder %s33, 1
    %p224 = por %p222, %p223
    %p225 = scmp.ne.s32.totalorder %s216, %s217
    %p226 = scmp.eq.s32.totalorder %s33, 0
    %p227 = por %p225, %p226
    %p228 = scmp.ne.s32.totalorder %s216, %s217
    %p229 = scmp.eq.s32.totalorder %s34, 1
    %p230 = por %p228, %p229
    %p232 = scmp.ne.s32.totalorder %s217, %s231
    %p233 = scmp.eq.s32.totalorder %s34, 0
    %p234 = por %p232, %p233
    %s236 = sadd.s32 %s235, 1
    %p239 = scmp.eq.s32.totalorder %s28, 1
    %p240 = scmp.ne.s32.totalorder %s235, %s237
    %p241 = scmp.eq.s32.totalorder %s28, 0
    %p242 = por %p240, %p241
    %p243 = scmp.ne.s32.totalorder %s235, %s237
    %p244 = scmp.eq.s32.totalorder %s33, 1
    %p245 = por %p243, %p244
    %p246 = scmp.ne.s32.totalorder %s237, %s238
    %p247 = scmp.eq.s32.totalorder %s33, 0
    %p248 = por %p246, %p247
    %p249 = scmp.ne.s32.totalorder %s237, %s238
    %p250 = scmp.eq.s32.totalorder %s34, 1
    %p251 = por %p249, %p250
    %p253 = scmp.ne.s32.totalorder %s238, %s252
    %p254 = scmp.eq.s32.totalorder %s34, 0
    %p255 = por %p253, %p254
    %s257 = sadd.s32 %s256, 1
    %p260 = scmp.eq.s32.totalorder %s28, 1
    %p261 = scmp.ne.s32.totalorder %s256, %s258
    %p262 = scmp.eq.s32.totalorder %s28, 0
    %p263 = por %p261, %p262
    %p264 = scmp.ne.s32.totalorder %s256, %s258
    %p265 = scmp.eq.s32.totalorder %s33, 1
    %p266 = por %p264, %p265
    %p267 = scmp.ne.s32.totalorder %s258, %s259
    %p268 = scmp.eq.s32.totalorder %s33, 0
    %p269 = por %p267, %p268
    %p270 = scmp.ne.s32.totalorder %s258, %s259
    %p271 = scmp.eq.s32.totalorder %s34, 1
    %p272 = por %p270, %p271
    %p274 = scmp.ne.s32.totalorder %s259, %s273
    %p275 = scmp.eq.s32.totalorder %s34, 0
    %p276 = por %p274, %p275
    %s278 = sadd.s32 %s277, 1
    %p281 = scmp.eq.s32.totalorder %s28, 1
    %p282 = scmp.ne.s32.totalorder %s277, %s279
    %p283 = scmp.eq.s32.totalorder %s28, 0
    %p284 = por %p282, %p283
    %p285 = scmp.ne.s32.totalorder %s277, %s279
    %p286 = scmp.eq.s32.totalorder %s33, 1
    %p287 = por %p285, %p286
    %p288 = scmp.ne.s32.totalorder %s279, %s280
    %p289 = scmp.eq.s32.totalorder %s33, 0
    %p290 = por %p288, %p289
    %p291 = scmp.ne.s32.totalorder %s279, %s280
    %p292 = scmp.eq.s32.totalorder %s34, 1
    %p293 = por %p291, %p292
    %p295 = scmp.ne.s32.totalorder %s280, %s294
    %p296 = scmp.eq.s32.totalorder %s34, 0
    %p297 = por %p295, %p296
    %s299 = sadd.s32 %s298, 1
    %p302 = scmp.eq.s32.totalorder %s28, 1
    %p303 = scmp.ne.s32.totalorder %s298, %s300
    %p304 = scmp.eq.s32.totalorder %s28, 0
    %p305 = por %p303, %p304
    %p306 = scmp.ne.s32.totalorder %s298, %s300
    %p307 = scmp.eq.s32.totalorder %s33, 1
    %p308 = por %p306, %p307
    %p309 = scmp.ne.s32.totalorder %s300, %s301
    %p310 = scmp.eq.s32.totalorder %s33, 0
    %p311 = por %p309, %p310
    %p312 = scmp.ne.s32.totalorder %s300, %s301
    %p313 = scmp.eq.s32.totalorder %s34, 1
    %p314 = por %p312, %p313
    %p316 = scmp.ne.s32.totalorder %s301, %s315
    %p317 = scmp.eq.s32.totalorder %s34, 0
    %p318 = por %p316, %p317
    %s320 = sadd.s32 %s319, 1
    %p323 = scmp.eq.s32.totalorder %s28, 1
    %p324 = scmp.ne.s32.totalorder %s319, %s321
    %p325 = scmp.eq.s32.totalorder %s28, 0
    %p326 = por %p324, %p325
    %p327 = scmp.ne.s32.totalorder %s319, %s321
    %p328 = scmp.eq.s32.totalorder %s33, 1
    %p329 = por %p327, %p328
    %p330 = scmp.ne.s32.totalorder %s321, %s322
    %p331 = scmp.eq.s32.totalorder %s33, 0
    %p332 = por %p330, %p331
    %p333 = scmp.ne.s32.totalorder %s321, %s322
    %p334 = scmp.eq.s32.totalorder %s34, 1
    %p335 = por %p333, %p334
    %p337 = scmp.ne.s32.totalorder %s322, %s336
    %p338 = scmp.eq.s32.totalorder %s34, 0
    %p339 = por %p337, %p338
    %s341 = sadd.s32 %s340, 1
    %p344 = scmp.eq.s32.totalorder %s28, 1
    %p345 = scmp.ne.s32.totalorder %s340, %s342
    %p346 = scmp.eq.s32.totalorder %s28, 0
    %p347 = por %p345, %p346
    %p348 = scmp.ne.s32.totalorder %s340, %s342
    %p349 = scmp.eq.s32.totalorder %s33, 1
    %p350 = por %p348, %p349
    %p351 = scmp.ne.s32.totalorder %s342, %s343
    %p352 = scmp.eq.s32.totalorder %s33, 0
    %p353 = por %p351, %p352
    %p354 = scmp.ne.s32.totalorder %s342, %s343
    %p355 = scmp.eq.s32.totalorder %s34, 1
    %p356 = por %p354, %p355
    %p358 = scmp.ne.s32.totalorder %s343, %s357
    %p359 = scmp.eq.s32.totalorder %s34, 0
    %p360 = por %p358, %p359
    %s362 = sadd.s32 %s361, 1
    %p365 = scmp.eq.s32.totalorder %s28, 1
    %p366 = scmp.ne.s32.totalorder %s361, %s363
    %p367 = scmp.eq.s32.totalorder %s28, 0
    %p368 = por %p366, %p367
    %p369 = scmp.ne.s32.totalorder %s361, %s363
    %p370 = scmp.eq.s32.totalorder %s33, 1
    %p371 = por %p369, %p370
    %p372 = scmp.ne.s32.totalorder %s363, %s364
    %p373 = scmp.eq.s32.totalorder %s33, 0
    %p374 = por %p372, %p373
    %p375 = scmp.ne.s32.totalorder %s363, %s364
    %p376 = scmp.eq.s32.totalorder %s34, 1
    %p377 = por %p375, %p376
    %p379 = scmp.ne.s32.totalorder %s364, %s378
    %p380 = scmp.eq.s32.totalorder %s34, 0
    %p381 = por %p379, %p380
    %s383 = sadd.s32 %s382, 1
    %p386 = scmp.eq.s32.totalorder %s28, 1
    %p387 = scmp.ne.s32.totalorder %s382, %s384
    %p388 = scmp.eq.s32.totalorder %s28, 0
    %p389 = por %p387, %p388
    %p390 = scmp.ne.s32.totalorder %s382, %s384
    %p391 = scmp.eq.s32.totalorder %s33, 1
    %p392 = por %p390, %p391
    %p393 = scmp.ne.s32.totalorder %s384, %s385
    %p394 = scmp.eq.s32.totalorder %s33, 0
    %p395 = por %p393, %p394
    %p396 = scmp.ne.s32.totalorder %s384, %s385
    %p397 = scmp.eq.s32.totalorder %s34, 1
    %p398 = por %p396, %p397
    %p400 = scmp.ne.s32.totalorder %s385, %s399
    %p401 = scmp.eq.s32.totalorder %s34, 0
    %p402 = por %p400, %p401
    %s404 = sadd.s32 %s403, 1
    %p407 = scmp.eq.s32.totalorder %s28, 1
    %p408 = scmp.ne.s32.totalorder %s403, %s405
    %p409 = scmp.eq.s32.totalorder %s28, 0
    %p410 = por %p408, %p409
    %p411 = scmp.ne.s32.totalorder %s403, %s405
    %p412 = scmp.eq.s32.totalorder %s33, 1
    %p413 = por %p411, %p412
    %p414 = scmp.ne.s32.totalorder %s405, %s406
    %p415 = scmp.eq.s32.totalorder %s33, 0
    %p416 = por %p414, %p415
    %p417 = scmp.ne.s32.totalorder %s405, %s406
    %p418 = scmp.eq.s32.totalorder %s34, 1
    %p419 = por %p417, %p418
    %p421 = scmp.ne.s32.totalorder %s406, %s420
    %p422 = scmp.eq.s32.totalorder %s34, 0
    %p423 = por %p421, %p422
    %s425 = sadd.s32 %s424, 1
    %p428 = scmp.eq.s32.totalorder %s28, 1
    %p429 = scmp.ne.s32.totalorder %s424, %s426
    %p430 = scmp.eq.s32.totalorder %s28, 0
    %p431 = por %p429, %p430
    %p432 = scmp.ne.s32.totalorder %s424, %s426
    %p433 = scmp.eq.s32.totalorder %s33, 1
    %p434 = por %p432, %p433
    %p435 = scmp.ne.s32.totalorder %s426, %s427
    %p436 = scmp.eq.s32.totalorder %s33, 0
    %p437 = por %p435, %p436
    %p438 = scmp.ne.s32.totalorder %s426, %s427
    %p439 = scmp.eq.s32.totalorder %s34, 1
    %p440 = por %p438, %p439
    %p442 = scmp.ne.s32.totalorder %s427, %s441
    %p443 = scmp.eq.s32.totalorder %s34, 0
    %p444 = por %p442, %p443
    %s446 = sadd.s32 %s445, 1
    %p449 = scmp.eq.s32.totalorder %s28, 1
    %p450 = scmp.ne.s32.totalorder %s445, %s447
    %p451 = scmp.eq.s32.totalorder %s28, 0
    %p452 = por %p450, %p451
    %p453 = scmp.ne.s32.totalorder %s445, %s447
    %p454 = scmp.eq.s32.totalorder %s33, 1
    %p455 = por %p453, %p454
    %p456 = scmp.ne.s32.totalorder %s447, %s448
    %p457 = scmp.eq.s32.totalorder %s33, 0
    %p458 = por %p456, %p457
    %p459 = scmp.ne.s32.totalorder %s447, %s448
    %p460 = scmp.eq.s32.totalorder %s34, 1
    %p461 = por %p459, %p460
    %p463 = scmp.ne.s32.totalorder %s448, %s462
    %p464 = scmp.eq.s32.totalorder %s34, 0
    %p465 = por %p463, %p464
    %s466 = ssub.s32 %s28, %s35
    %p467 = scmp.eq.s32.totalorder %s466, 0
    %s469 = sadd.s32 %s468, 1
    %s470 = scalar_select %p467, %s468, %s469
    %p473 = pneg %p467
    %p474 = scmp.eq.s32.totalorder %s28, 1
    %p475 = por %p473, %p474
    %p476 = scmp.ne.s32.totalorder %s468, %s471
    %p477 = scmp.eq.s32.totalorder %s28, 0
    %p478 = por %p476, %p477
    %p479 = scmp.ne.s32.totalorder %s468, %s471
    %p480 = scmp.eq.s32.totalorder %s33, 1
    %p481 = por %p479, %p480
    %p482 = scmp.ne.s32.totalorder %s471, %s472
    %p483 = scmp.eq.s32.totalorder %s33, 0
    %p484 = por %p482, %p483
    %p485 = scmp.ne.s32.totalorder %s471, %s472
    %p486 = scmp.eq.s32.totalorder %s34, 1
    %p487 = por %p485, %p486
    %p489 = scmp.ne.s32.totalorder %s472, %s488
    %p490 = scmp.eq.s32.totalorder %s34, 0
    %p491 = por %p489, %p490
    %s492 = ssub.s32 %s28, %s35
    %p493 = scmp.eq.s32.totalorder %s492, 0
    %s495 = sadd.s32 %s494, 1
    %s496 = scalar_select %p493, %s494, %s495
    %p499 = pneg %p493
    %p500 = scmp.eq.s32.totalorder %s28, 1
    %p501 = por %p499, %p500
    %p502 = scmp.ne.s32.totalorder %s494, %s497
    %p503 = scmp.eq.s32.totalorder %s28, 0
    %p504 = por %p502, %p503
    %p505 = scmp.ne.s32.totalorder %s494, %s497
    %p506 = scmp.eq.s32.totalorder %s33, 1
    %p507 = por %p505, %p506
    %p508 = scmp.ne.s32.totalorder %s497, %s498
    %p509 = scmp.eq.s32.totalorder %s33, 0
    %p510 = por %p508, %p509
    %p511 = scmp.ne.s32.totalorder %s497, %s498
    %p512 = scmp.eq.s32.totalorder %s34, 1
    %p513 = por %p511, %p512
    %p515 = scmp.ne.s32.totalorder %s498, %s514
    %p516 = scmp.eq.s32.totalorder %s34, 0
    %p517 = por %p515, %p516
    %p518 = scmp.le.s32.totalorder 1, %s28
    %p519 = scmp.lt.s32.totalorder %s28, 3
    %p520 = pnand %p518, %p519
    %p521 = pneg %p520
    // Predicated region
    $region9: #{rat_layer_forward.1} parent=5 // pred_check
      _
    $region10: #{rat_layer_forward.1} parent=5 // pred_check_branch
      %523 = sbr.rel (%p520) target = $region12
    $region11: #{rat_layer_forward.1} parent=5 // pred_region
      %s524 = ssub.s32 %s28, 1
      // Predicated region
      $region13: #{rat_layer_forward.1} parent=11 // pred_check
        %p525 = pneg %p101
      $region14: #{rat_layer_forward.1} parent=11 // pred_check_branch
        %527 = sbr.rel (%p525) target = $region16
      $region15: #{rat_layer_forward.1} parent=11 // pred_region
        _
      $region16: #{rat_layer_forward.1} parent=11 // pred_fallthru
        _
      // Predicated region
      $region17: #{rat_layer_forward.1} parent=11 // pred_check
        %p528 = pneg %p122
      $region18: #{rat_layer_forward.1} parent=11 // pred_check_branch
        %530 = sbr.rel (%p528) target = $region20
      $region19: #{rat_layer_forward.1} parent=11 // pred_region
        _
      $region20: #{rat_layer_forward.1} parent=11 // pred_fallthru
        _
      // Predicated region
      $region21: #{rat_layer_forward.1} parent=11 // pred_check
        %p531 = pneg %p143
      $region22: #{rat_layer_forward.1} parent=11 // pred_check_branch
        %533 = sbr.rel (%p531) target = $region24
      $region23: #{rat_layer_forward.1} parent=11 // pred_region
        _
      $region24: #{rat_layer_forward.1} parent=11 // pred_fallthru
        _
      // Predicated region
      $region25: #{rat_layer_forward.1} parent=11 // pred_check
        %p534 = pneg %p164
      $region26: #{rat_layer_forward.1} parent=11 // pred_check_branch
        %536 = sbr.rel (%p534) target = $region28
      $region27: #{rat_layer_forward.1} parent=11 // pred_region
        _
      $region28: #{rat_layer_forward.1} parent=11 // pred_fallthru
        _
      // Predicated region
      $region29: #{rat_layer_forward.1} parent=11 // pred_check
        %p537 = pneg %p185
      $region30: #{rat_layer_forward.1} parent=11 // pred_check_branch
        %539 = sbr.rel (%p537) target = $region32
      $region31: #{rat_layer_forward.1} parent=11 // pred_region
        _
      $region32: #{rat_layer_forward.1} parent=11 // pred_fallthru
        _
      // Predicated region
      $region33: #{rat_layer_forward.1} parent=11 // pred_check
        %p540 = pneg %p206
      $region34: #{rat_layer_forward.1} parent=11 // pred_check_branch
        %542 = sbr.rel (%p540) target = $region36
      $region35: #{rat_layer_forward.1} parent=11 // pred_region
        _
      $region36: #{rat_layer_forward.1} parent=11 // pred_fallthru
        _
      // Predicated region
      $region37: #{rat_layer_forward.1} parent=11 // pred_check
        %p543 = pneg %p227
      $region38: #{rat_layer_forward.1} parent=11 // pred_check_branch
        %545 = sbr.rel (%p543) target = $region40
      $region39: #{rat_layer_forward.1} parent=11 // pred_region
        _
      $region40: #{rat_layer_forward.1} parent=11 // pred_fallthru
        _
      // Predicated region
      $region41: #{rat_layer_forward.1} parent=11 // pred_check
        %p546 = pneg %p248
      $region42: #{rat_layer_forward.1} parent=11 // pred_check_branch
        %548 = sbr.rel (%p546) target = $region44
      $region43: #{rat_layer_forward.1} parent=11 // pred_region
        _
      $region44: #{rat_layer_forward.1} parent=11 // pred_fallthru
        _
      // Predicated region
      $region45: #{rat_layer_forward.1} parent=11 // pred_check
        %p549 = pneg %p269
      $region46: #{rat_layer_forward.1} parent=11 // pred_check_branch
        %551 = sbr.rel (%p549) target = $region48
      $region47: #{rat_layer_forward.1} parent=11 // pred_region
        _
      $region48: #{rat_layer_forward.1} parent=11 // pred_fallthru
        _
      // Predicated region
      $region49: #{rat_layer_forward.1} parent=11 // pred_check
        %p552 = pneg %p290
      $region50: #{rat_layer_forward.1} parent=11 // pred_check_branch
        %554 = sbr.rel (%p552) target = $region52
      $region51: #{rat_layer_forward.1} parent=11 // pred_region
        _
      $region52: #{rat_layer_forward.1} parent=11 // pred_fallthru
        _
      // Predicated region
      $region53: #{rat_layer_forward.1} parent=11 // pred_check
        %p555 = pneg %p311
      $region54: #{rat_layer_forward.1} parent=11 // pred_check_branch
        %557 = sbr.rel (%p555) target = $region56
      $region55: #{rat_layer_forward.1} parent=11 // pred_region
        _
      $region56: #{rat_layer_forward.1} parent=11 // pred_fallthru
        _
      // Predicated region
      $region57: #{rat_layer_forward.1} parent=11 // pred_check
        %p558 = pneg %p332
      $region58: #{rat_layer_forward.1} parent=11 // pred_check_branch
        %560 = sbr.rel (%p558) target = $region60
      $region59: #{rat_layer_forward.1} parent=11 // pred_region
        _
      $region60: #{rat_layer_forward.1} parent=11 // pred_fallthru
        _
      // Predicated region
      $region61: #{rat_layer_forward.1} parent=11 // pred_check
        %p561 = pneg %p353
      $region62: #{rat_layer_forward.1} parent=11 // pred_check_branch
        %563 = sbr.rel (%p561) target = $region64
      $region63: #{rat_layer_forward.1} parent=11 // pred_region
        _
      $region64: #{rat_layer_forward.1} parent=11 // pred_fallthru
        _
      // Predicated region
      $region65: #{rat_layer_forward.1} parent=11 // pred_check
        %p564 = pneg %p374
      $region66: #{rat_layer_forward.1} parent=11 // pred_check_branch
        %566 = sbr.rel (%p564) target = $region68
      $region67: #{rat_layer_forward.1} parent=11 // pred_region
        _
      $region68: #{rat_layer_forward.1} parent=11 // pred_fallthru
        _
      // Predicated region
      $region69: #{rat_layer_forward.1} parent=11 // pred_check
        %p567 = pneg %p395
      $region70: #{rat_layer_forward.1} parent=11 // pred_check_branch
        %569 = sbr.rel (%p567) target = $region72
      $region71: #{rat_layer_forward.1} parent=11 // pred_region
        _
      $region72: #{rat_layer_forward.1} parent=11 // pred_fallthru
        _
      // Predicated region
      $region73: #{rat_layer_forward.1} parent=11 // pred_check
        %p570 = pneg %p416
      $region74: #{rat_layer_forward.1} parent=11 // pred_check_branch
        %572 = sbr.rel (%p570) target = $region76
      $region75: #{rat_layer_forward.1} parent=11 // pred_region
        _
      $region76: #{rat_layer_forward.1} parent=11 // pred_fallthru
        _
      // Predicated region
      $region77: #{rat_layer_forward.1} parent=11 // pred_check
        %p573 = pneg %p437
      $region78: #{rat_layer_forward.1} parent=11 // pred_check_branch
        %575 = sbr.rel (%p573) target = $region80
      $region79: #{rat_layer_forward.1} parent=11 // pred_region
        _
      $region80: #{rat_layer_forward.1} parent=11 // pred_fallthru
        _
      // Predicated region
      $region81: #{rat_layer_forward.1} parent=11 // pred_check
        %p576 = pneg %p458
      $region82: #{rat_layer_forward.1} parent=11 // pred_check_branch
        %578 = sbr.rel (%p576) target = $region84
      $region83: #{rat_layer_forward.1} parent=11 // pred_region
        _
      $region84: #{rat_layer_forward.1} parent=11 // pred_fallthru
        _
    $region12: #{rat_layer_forward.1} parent=5 // pred_fallthru
      _
    %p579 = scmp.lt.s32.totalorder %s28, 2
    // Predicated region
    $region85: #{rat_layer_forward.1} parent=5 // pred_check
      %p580 = pneg %p579
    $region86: #{rat_layer_forward.1} parent=5 // pred_check_branch
      %582 = sbr.rel (%p580) target = $region88
    $region87: #{rat_layer_forward.1} parent=5 // pred_region
      // Predicated region
      $region89: #{rat_layer_forward.1} parent=87 // pred_check
        %p583 = pneg %p48
      $region90: #{rat_layer_forward.1} parent=87 // pred_check_branch
        %585 = sbr.rel (%p583) target = $region92
      $region91: #{rat_layer_forward.1} parent=87 // pred_region
        %p586 = scmp.lt.s32.totalorder %s28, 1
        %s587 = scalar_select %p586, %s28, 1
        %s588 = smul.addr %s587, 8
        %s589 = scalar_lea.vmem %s0, %s588
      $region92: #{rat_layer_forward.1} parent=87 // pred_fallthru
        _
      // Predicated region
      $region93: #{rat_layer_forward.1} parent=87 // pred_check
        %p590 = pneg %p74
      $region94: #{rat_layer_forward.1} parent=87 // pred_check_branch
        %592 = sbr.rel (%p590) target = $region96
      $region95: #{rat_layer_forward.1} parent=87 // pred_region
        %p593 = scmp.lt.s32.totalorder %s28, 1
        %s594 = scalar_select %p593, %s28, 1
        %s595 = smul.addr %s594, 8
        %s596 = scalar_lea.vmem %s1, %s595
      $region96: #{rat_layer_forward.1} parent=87 // pred_fallthru
        _
    $region88: #{rat_layer_forward.1} parent=5 // pred_fallthru
      _
    %p597 = scmp.le.s32.totalorder 1, %s28
    %p598 = scmp.lt.s32.totalorder %s28, 3
    %p599 = pnand %p597, %p598
    %p600 = pneg %p599
    // Predicated region
    $region97: #{rat_layer_forward.1} parent=5 // pred_check
      _
    $region98: #{rat_layer_forward.1} parent=5 // pred_check_branch
      %602 = sbr.rel (%p599) target = $region100
    $region99: #{rat_layer_forward.1} parent=5 // pred_region
      %s603 = ssub.s32 %s28, 1
      %p604 = scmp.lt.s32.totalorder %s33, 1
      %s605 = scalar_select %p604, %s33, 1
      %s606 = smul.addr %s605, 8
      %s607 = scalar_lea.vmem %s0, %s606
      %p608 = pneg %p54
      %p609 = pneg %p51
      %p610 = scmp.lt.s32.totalorder %s33, 1
      %s611 = scalar_select %p610, %s33, 1
      %s612 = smul.addr %s611, 8
      %s613 = scalar_lea.vmem %s1, %s612
      %p614 = pneg %p80
      %p615 = pneg %p77
      %p616 = pneg %p101
      %p617 = pneg %p98
      %p618 = pneg %p122
      %p619 = pneg %p119
      %p620 = pneg %p143
      %p621 = pneg %p140
      %p622 = pneg %p164
      %p623 = pneg %p161
      %p624 = pneg %p185
      %p625 = pneg %p182
      %p626 = pneg %p206
      %p627 = pneg %p203
      %p628 = pneg %p227
      %p629 = pneg %p224
      %p630 = pneg %p248
      %p631 = pneg %p245
      %p632 = pneg %p269
      %p633 = pneg %p266
      %p634 = pneg %p290
      %p635 = pneg %p287
      %p636 = pneg %p311
      %p637 = pneg %p308
      %p638 = pneg %p332
      %p639 = pneg %p329
      %p640 = pneg %p353
      %p641 = pneg %p350
      %p642 = pneg %p374
      %p643 = pneg %p371
      %p644 = pneg %p395
      %p645 = pneg %p392
      %p646 = pneg %p416
      %p647 = pneg %p413
      %p648 = pneg %p437
      %p649 = pneg %p434
      %p650 = pneg %p458
      %p651 = pneg %p455
      %p652 = pneg %p484
      %p653 = pneg %p481
      %p654 = scmp.lt.s32.totalorder %s33, 1
      %s655 = scalar_select %p654, %s33, 1
      %s656 = smul.addr %s655, 8
      %s657 = scalar_lea.vmem %s20, %s656
      %p658 = pneg %p510
      %p659 = pneg %p507
      %p660 = scmp.lt.s32.totalorder %s33, 1
      %s661 = scalar_select %p660, %s33, 1
      %s662 = smul.addr %s661, 8
      %s663 = scalar_lea.vmem %s21, %s662
      %p664 = scmp.lt.s32.totalorder %s33, 1
      %s665 = scalar_select %p664, %s33, 1
      %s666 = smul.addr %s665, 8
      %s667 = scalar_lea.vmem %s0, %s666
      %p668 = scmp.lt.s32.totalorder %s33, 1
      %s669 = scalar_select %p668, %s33, 1
      %s670 = smul.addr %s669, 8
      %s671 = scalar_lea.vmem %s1, %s670
      %p672 = scmp.lt.s32.totalorder %s33, 1
      %s673 = scalar_select %p672, %s33, 1
      %s674 = smul.addr %s673, 8
      %s675 = scalar_lea.vmem %s20, %s674
      %p676 = scmp.lt.s32.totalorder %s33, 1
      %s677 = scalar_select %p676, %s33, 1
      %s678 = smul.addr %s677, 8
      %s679 = scalar_lea.vmem %s21, %s678
      %v680 = vld [vmem:[%s667] sm:$0xff]
      %v681 = vld [vmem:[%s671] sm:$0xff]
      %v682 = vld [vmem:[%s2] sm:$0xff]
      %v683 = vld [vmem:[%s2 + $0x8] sm:$0xff]
      %v684 = vld [vmem:[%s2 + $0x10] sm:$0xff]
      %v685 = vld [vmem:[%s2 + $0x18] sm:$0xff]
      %v686 = vld [vmem:[%s2 + $0x20] sm:$0xff]
      %v687 = vld [vmem:[%s2 + $0x28] sm:$0xff]
      %v688 = vld [vmem:[%s2 + $0x30] sm:$0xff]
      %v689 = vld [vmem:[%s2 + $0x38] sm:$0xff]
      %v690 = vld [vmem:[%s2 + $0x40] sm:$0xff]
      %v691 = vld [vmem:[%s2 + $0x48] sm:$0xff]
      %v692 = vld [vmem:[%s2 + $0x50] sm:$0xff]
      %v693 = vld [vmem:[%s2 + $0x58] sm:$0xff]
      %v694 = vld [vmem:[%s2 + $0x60] sm:$0xff]
      %v695 = vld [vmem:[%s2 + $0x68] sm:$0xff]
      %v696 = vld [vmem:[%s2 + $0x70] sm:$0xff]
      %v697 = vld [vmem:[%s2 + $0x78] sm:$0xff]
      %698 = vmatprep.subr.mxu0 0.0
      %699 = vmatpush1.msra.mxu0 %v697
      %700 = vmatprep.subr.mxu0 0.0
      %701 = vmatpush1.msra.mxu0 %v696
      %702 = vmatprep.subr.mxu0 0.0
      %703 = vmatpush1.msra.mxu0 %v695
      %704 = vmatprep.subr.mxu0 0.0
      %705 = vmatpush1.msra.mxu0 %v694
      %706 = vmatprep.subr.mxu0 0.0
      %707 = vmatpush1.msra.mxu0 %v693
      %708 = vmatprep.subr.mxu0 0.0
      %709 = vmatpush1.msra.mxu0 %v692
      %710 = vmatprep.subr.mxu0 0.0
      %711 = vmatpush1.msra.mxu0 %v691
      %712 = vmatprep.subr.mxu0 0.0
      %713 = vmatpush1.msra.mxu0 %v690
      %714 = vmatprep.subr.mxu0 0.0
      %715 = vmatpush1.msra.mxu0 %v689
      %716 = vmatprep.subr.mxu0 0.0
      %717 = vmatpush1.msra.mxu0 %v688
      %718 = vmatprep.subr.mxu0 0.0
      %719 = vmatpush1.msra.mxu0 %v687
      %720 = vmatprep.subr.mxu0 0.0
      %721 = vmatpush1.msra.mxu0 %v686
      %722 = vmatprep.subr.mxu0 0.0
      %723 = vmatpush1.msra.mxu0 %v685
      %724 = vmatprep.subr.mxu0 0.0
      %725 = vmatpush1.msra.mxu0 %v684
      %726 = vmatprep.subr.mxu0 0.0
      %727 = vmatpush1.msra.mxu0 %v683
      %728 = vmatprep.subr.mxu0 0.0
      %729 = vmatpush1.msra.mxu0 %v682
      %730 = vmatprep.subr.mxu0 0.0
      %731 = vmatpush2.msra.mxu0 0.0
      %732 = vmatprep.subr.mxu0 0.0
      %733 = vmatpush2.msra.mxu0 0.0
      %734 = vmatprep.subr.mxu0 0.0
      %735 = vmatpush2.msra.mxu0 0.0
      %736 = vmatprep.subr.mxu0 0.0
      %737 = vmatpush2.msra.mxu0 0.0
      %738 = vmatprep.subr.mxu0 0.0
      %739 = vmatpush2.msra.mxu0 0.0
      %740 = vmatprep.subr.mxu0 0.0
      %741 = vmatpush2.msra.mxu0 0.0
      %742 = vmatprep.subr.mxu0 0.0
      %743 = vmatpush2.msra.mxu0 0.0
      %744 = vmatprep.subr.mxu0 0.0
      %745 = vmatpush2.msra.mxu0 0.0
      %746 = vmatprep.subr.mxu0 0.0
      %747 = vmatpush2.msra.mxu0 0.0
      %748 = vmatprep.subr.mxu0 0.0
      %749 = vmatpush2.msra.mxu0 0.0
      %750 = vmatprep.subr.mxu0 0.0
      %751 = vmatpush2.msra.mxu0 0.0
      %752 = vmatprep.subr.mxu0 0.0
      %753 = vmatpush2.msra.mxu0 0.0
      %754 = vmatprep.subr.mxu0 0.0
      %755 = vmatpush2.msra.mxu0 0.0
      %756 = vmatprep.subr.mxu0 0.0
      %757 = vmatpush2.msra.mxu0 0.0
      %758 = vmatprep.subr.mxu0 0.0
      %759 = vmatpush2.msra.mxu0 0.0
      %760 = vmatprep.subr.mxu0 0.0
      %761 = vmatpush2.msra.mxu0 0.0
      %762 = vmatprep.mubr.f32.mxu0 0.0
      %763 = vmatmul.mubr.f32.gmra.mxu0 %v680
      %v764 = vpop.f32.mrf.mxu0
      %v765 = vadd.f32 0.0, %v764
      %v766 = vpop.f32.mrf.mxu0
      %767 = vmatprep.mubr.f32.mxu0 0.0
      %768 = vmatmul.mubr.f32.gmra.mxu0 %v681
      %v769 = vpop.f32.mrf.mxu0
      %v770 = vadd.f32 0.0, %v769
      %v771 = vpop.f32.mrf.mxu0
      %772 = vdwg.mxu0
      %v773 = vadd.f32 %v770, 1.0
      %v774 = vrcp.pop %v773
      %v775 = vmul.f32 %v765, %v774
      %vm776 = vcmask 261120
      %v777 = vsel %vm776, %v775, 0.0
      %778 = vadd.xlane.f32.xlu0 %v777
      %v779 = vpop.xlane.xlu0 %778
      %v780 = vrcp.pop 32.0
      %v781 = vmul.f32 %v779, %v780
      %v782 = vsub.f32 %v775, %v781
      %v783 = vmul.f32 %v782, %v782
      %v784 = vsel %vm776, %v783, 0.0
      %785 = vadd.xlane.f32.xlu0 %v784
      %v786 = vpop.xlane.xlu0 %785
      %v787 = vmul.f32 %v786, %v780
      %v788 = vadd.f32 %v787, 1e-05
      %v789 = vrsqrt.pop %v788
      %v790 = vmul.f32 %v782, %v789
      %792 = vrot.lane.b32.xlu0 %v775, 96
      %v793 = vpop.permute.xlu0 %792
      %v795 = vsel %vm776, %v793, 0.0
      %796 = vadd.xlane.f32.xlu0 %v795
      %v797 = vpop.xlane.xlu0 %796
      %v798 = vmul.f32 %v797, %v780
      %v799 = vsub.f32 %v775, %v798
      %v800 = vmul.f32 %v799, %v799
      %802 = vrot.lane.b32.xlu0 %v800, 96
      %v803 = vpop.permute.xlu0 %802
      %v805 = vsel %vm776, %v803, 0.0
      %806 = vadd.xlane.f32.xlu0 %v805
      %v807 = vpop.xlane.xlu0 %806
      %v808 = vmul.f32 %v807, %v780
      %v809 = vadd.f32 %v808, 1e-05
      %v810 = vrsqrt.pop %v809
      %v811 = vmul.f32 %v799, %v810
      %812 = vrot.lane.b32.xlu0 %v775, 64
      %v813 = vpop.permute.xlu0 %812
      %v815 = vsel %vm776, %v813, 0.0
      %816 = vadd.xlane.f32.xlu0 %v815
      %v817 = vpop.xlane.xlu0 %816
      %v818 = vmul.f32 %v817, %v780
      %v819 = vsub.f32 %v775, %v818
      %v820 = vmul.f32 %v819, %v819
      %822 = vrot.lane.b32.xlu0 %v820, 64
      %v823 = vpop.permute.xlu0 %822
      %v825 = vsel %vm776, %v823, 0.0
      %826 = vadd.xlane.f32.xlu0 %v825
      %v827 = vpop.xlane.xlu0 %826
      %v828 = vmul.f32 %v827, %v780
      %v829 = vadd.f32 %v828, 1e-05
      %v830 = vrsqrt.pop %v829
      %v831 = vmul.f32 %v819, %v830
      %v832 = vsel %vm776, %v790, %v811
      %vm833 = vcmask 523264
      %v834 = vsel %vm833, %v832, %v831
      %v835 = vld [vmem:[%s3] sm:$0x1]
      %v837 = vlaneseq
      %v838 = vshrl.u32 %v837, 7
      %v839 = vsub.s32 0, %v838
      %v840 = vrot.slane %v835, %v839
      %v842 = vmul.f32 %v834, %v840
      %v843 = vld [vmem:[%s4] sm:$0x1]
      %v845 = vlaneseq
      %v846 = vshrl.u32 %v845, 7
      %v847 = vsub.s32 0, %v846
      %v848 = vrot.slane %v843, %v847
      %v850 = vadd.f32 %v842, %v848
      %v851 = vld [vmem:[%s5] sm:$0xff]
      %v852 = vld [vmem:[%s5 + $0x8] sm:$0xff]
      %v853 = vld [vmem:[%s5 + $0x10] sm:$0xff]
      %v854 = vld [vmem:[%s5 + $0x18] sm:$0xff]
      %v855 = vld [vmem:[%s5 + $0x20] sm:$0xff]
      %v856 = vld [vmem:[%s5 + $0x28] sm:$0xff]
      %v857 = vld [vmem:[%s5 + $0x30] sm:$0xff]
      %v858 = vld [vmem:[%s5 + $0x38] sm:$0xff]
      %v859 = vld [vmem:[%s5 + $0x40] sm:$0xff]
      %v860 = vld [vmem:[%s5 + $0x48] sm:$0xff]
      %v861 = vld [vmem:[%s5 + $0x50] sm:$0xff]
      %v862 = vld [vmem:[%s5 + $0x58] sm:$0xff]
      %v863 = vld [vmem:[%s6] sm:$0x1]
      %v865 = vlaneseq
      %v866 = vshrl.u32 %v865, 7
      %v867 = vsub.s32 0, %v866
      %v868 = vrot.slane %v863, %v867
      %vm870 = vcmask 785408
      %v872 = vsel %vm870, %v850, 0
      %874 = vmatprep.subr.mxu0 0.0
      %875 = vmatpush1.msra.mxu0 0.0
      %876 = vmatprep.subr.mxu0 0.0
      %877 = vmatpush1.msra.mxu0 0.0
      %878 = vmatprep.subr.mxu0 0.0
      %879 = vmatpush1.msra.mxu0 0.0
      %880 = vmatprep.subr.mxu0 0.0
      %881 = vmatpush1.msra.mxu0 0.0
      %882 = vmatprep.subr.mxu0 0.0
      %883 = vmatpush1.msra.mxu0 %v862
      %884 = vmatprep.subr.mxu0 0.0
      %885 = vmatpush1.msra.mxu0 %v861
      %886 = vmatprep.subr.mxu0 0.0
      %887 = vmatpush1.msra.mxu0 %v860
      %888 = vmatprep.subr.mxu0 0.0
      %889 = vmatpush1.msra.mxu0 %v859
      %890 = vmatprep.subr.mxu0 0.0
      %891 = vmatpush1.msra.mxu0 %v858
      %892 = vmatprep.subr.mxu0 0.0
      %893 = vmatpush1.msra.mxu0 %v857
      %894 = vmatprep.subr.mxu0 0.0
      %895 = vmatpush1.msra.mxu0 %v856
      %896 = vmatprep.subr.mxu0 0.0
      %897 = vmatpush1.msra.mxu0 %v855
      %898 = vmatprep.subr.mxu0 0.0
      %899 = vmatpush1.msra.mxu0 %v854
      %900 = vmatprep.subr.mxu0 0.0
      %901 = vmatpush1.msra.mxu0 %v853
      %902 = vmatprep.subr.mxu0 0.0
      %903 = vmatpush1.msra.mxu0 %v852
      %904 = vmatprep.subr.mxu0 0.0
      %905 = vmatpush1.msra.mxu0 %v851
      %906 = vmatprep.subr.mxu0 0.0
      %907 = vmatpush2.msra.mxu0 0.0
      %908 = vmatprep.subr.mxu0 0.0
      %909 = vmatpush2.msra.mxu0 0.0
      %910 = vmatprep.subr.mxu0 0.0
      %911 = vmatpush2.msra.mxu0 0.0
      %912 = vmatprep.subr.mxu0 0.0
      %913 = vmatpush2.msra.mxu0 0.0
      %914 = vmatprep.subr.mxu0 0.0
      %915 = vmatpush2.msra.mxu0 0.0
      %916 = vmatprep.subr.mxu0 0.0
      %917 = vmatpush2.msra.mxu0 0.0
      %918 = vmatprep.subr.mxu0 0.0
      %919 = vmatpush2.msra.mxu0 0.0
      %920 = vmatprep.subr.mxu0 0.0
      %921 = vmatpush2.msra.mxu0 0.0
      %922 = vmatprep.subr.mxu0 0.0
      %923 = vmatpush2.msra.mxu0 0.0
      %924 = vmatprep.subr.mxu0 0.0
      %925 = vmatpush2.msra.mxu0 0.0
      %926 = vmatprep.subr.mxu0 0.0
      %927 = vmatpush2.msra.mxu0 0.0
      %928 = vmatprep.subr.mxu0 0.0
      %929 = vmatpush2.msra.mxu0 0.0
      %930 = vmatprep.subr.mxu0 0.0
      %931 = vmatpush2.msra.mxu0 0.0
      %932 = vmatprep.subr.mxu0 0.0
      %933 = vmatpush2.msra.mxu0 0.0
      %934 = vmatprep.subr.mxu0 0.0
      %935 = vmatpush2.msra.mxu0 0.0
      %936 = vmatprep.subr.mxu0 0.0
      %937 = vmatpush2.msra.mxu0 0.0
      %938 = vmatprep.mubr.f32.mxu0 0.0
      %939 = vmatmul.mubr.f32.gmra.mxu0 %v872
      %v940 = vpop.f32.mrf.mxu0
      %v941 = vadd.f32 %v868, %v940
      %v942 = vpop.f32.mrf.mxu0
      %943 = vdwg.mxu0
      %945 = vrot.lane.b32.xlu0 %v941, 120
      %v946 = vpop.permute.xlu0 %945
      %947 = vrot.lane.b32.xlu0 %v941, 112
      %v948 = vpop.permute.xlu0 %947
      %949 = vrot.lane.b32.xlu0 %v941, 104
      %v950 = vpop.permute.xlu0 %949
      %951 = vrot.lane.b32.xlu0 %v941, 96
      %v952 = vpop.permute.xlu0 %951
      %vm953 = vcmask 64512
      %v954 = vsel %vm953, %v941, 0
      %v956 = vsel %vm953, %v952, 0
      %958 = vmatprep.subr.mxu0 0.0
      %959 = vmatpush1.xpose.msra.mxu0 0.0
      %960 = vmatprep.subr.mxu0 0.0
      %961 = vmatpush1.xpose.msra.mxu0 0.0
      %962 = vmatprep.subr.mxu0 0.0
      %963 = vmatpush1.xpose.msra.mxu0 0.0
      %964 = vmatprep.subr.mxu0 0.0
      %965 = vmatpush1.xpose.msra.mxu0 0.0
      %966 = vmatprep.subr.mxu0 0.0
      %967 = vmatpush1.xpose.msra.mxu0 0.0
      %968 = vmatprep.subr.mxu0 0.0
      %969 = vmatpush1.xpose.msra.mxu0 0.0
      %970 = vmatprep.subr.mxu0 0.0
      %971 = vmatpush1.xpose.msra.mxu0 0.0
      %972 = vmatprep.subr.mxu0 0.0
      %973 = vmatpush1.xpose.msra.mxu0 0.0
      %974 = vmatprep.subr.mxu0 0.0
      %975 = vmatpush1.xpose.msra.mxu0 0.0
      %976 = vmatprep.subr.mxu0 0.0
      %977 = vmatpush1.xpose.msra.mxu0 0.0
      %978 = vmatprep.subr.mxu0 0.0
      %979 = vmatpush1.xpose.msra.mxu0 0.0
      %980 = vmatprep.subr.mxu0 0.0
      %981 = vmatpush1.xpose.msra.mxu0 0.0
      %982 = vmatprep.subr.mxu0 0.0
      %983 = vmatpush1.xpose.msra.mxu0 0.0
      %984 = vmatprep.subr.mxu0 0.0
      %985 = vmatpush1.xpose.msra.mxu0 0.0
      %986 = vmatprep.subr.mxu0 0.0
      %987 = vmatpush1.xpose.msra.mxu0 0.0
      %988 = vmatprep.subr.mxu0 0.0
      %989 = vmatpush1.xpose.msra.mxu0 %v956
      %990 = vmatprep.subr.mxu0 0.0
      %991 = vmatpush2.xpose.msra.mxu0 0.0
      %992 = vmatprep.subr.mxu0 0.0
      %993 = vmatpush2.xpose.msra.mxu0 0.0
      %994 = vmatprep.subr.mxu0 0.0
      %995 = vmatpush2.xpose.msra.mxu0 0.0
      %996 = vmatprep.subr.mxu0 0.0
      %997 = vmatpush2.xpose.msra.mxu0 0.0
      %998 = vmatprep.subr.mxu0 0.0
      %999 = vmatpush2.xpose.msra.mxu0 0.0
      %1000 = vmatprep.subr.mxu0 0.0
      %1001 = vmatpush2.xpose.msra.mxu0 0.0
      %1002 = vmatprep.subr.mxu0 0.0
      %1003 = vmatpush2.xpose.msra.mxu0 0.0
      %1004 = vmatprep.subr.mxu0 0.0
      %1005 = vmatpush2.xpose.msra.mxu0 0.0
      %1006 = vmatprep.subr.mxu0 0.0
      %1007 = vmatpush2.xpose.msra.mxu0 0.0
      %1008 = vmatprep.subr.mxu0 0.0
      %1009 = vmatpush2.xpose.msra.mxu0 0.0
      %1010 = vmatprep.subr.mxu0 0.0
      %1011 = vmatpush2.xpose.msra.mxu0 0.0
      %1012 = vmatprep.subr.mxu0 0.0
      %1013 = vmatpush2.xpose.msra.mxu0 0.0
      %1014 = vmatprep.subr.mxu0 0.0
      %1015 = vmatpush2.xpose.msra.mxu0 0.0
      %1016 = vmatprep.subr.mxu0 0.0
      %1017 = vmatpush2.xpose.msra.mxu0 0.0
      %1018 = vmatprep.subr.mxu0 0.0
      %1019 = vmatpush2.xpose.msra.mxu0 0.0
      %1020 = vmatprep.subr.mxu0 0.0
      %1021 = vmatpush2.xpose.msra.mxu0 0.0
      %1022 = vmatprep.mubr.f32.mxu0 0.0
      %1023 = vmatmul.mubr.f32.gmra.mxu0 %v954
      %v1024 = vpop.f32.mrf.mxu0
      %v1025 = vadd.f32 0.0, %v1024
      %v1026 = vpop.f32.mrf.mxu0
      %1027 = vdwg.mxu0
      %1028 = vrot.lane.b32.xlu0 %v946, 96
      %v1029 = vpop.permute.xlu0 %1028
      %v1030 = vsel %vm953, %v946, 0
      %v1032 = vsel %vm953, %v1029, 0
      %1034 = vmatprep.subr.mxu0 0.0
      %1035 = vmatpush1.xpose.msra.mxu0 0.0
      %1036 = vmatprep.subr.mxu0 0.0
      %1037 = vmatpush1.xpose.msra.mxu0 0.0
      %1038 = vmatprep.subr.mxu0 0.0
      %1039 = vmatpush1.xpose.msra.mxu0 0.0
      %1040 = vmatprep.subr.mxu0 0.0
      %1041 = vmatpush1.xpose.msra.mxu0 0.0
      %1042 = vmatprep.subr.mxu0 0.0
      %1043 = vmatpush1.xpose.msra.mxu0 0.0
      %1044 = vmatprep.subr.mxu0 0.0
      %1045 = vmatpush1.xpose.msra.mxu0 0.0
      %1046 = vmatprep.subr.mxu0 0.0
      %1047 = vmatpush1.xpose.msra.mxu0 0.0
      %1048 = vmatprep.subr.mxu0 0.0
      %1049 = vmatpush1.xpose.msra.mxu0 0.0
      %1050 = vmatprep.subr.mxu0 0.0
      %1051 = vmatpush1.xpose.msra.mxu0 0.0
      %1052 = vmatprep.subr.mxu0 0.0
      %1053 = vmatpush1.xpose.msra.mxu0 0.0
      %1054 = vmatprep.subr.mxu0 0.0
      %1055 = vmatpush1.xpose.msra.mxu0 0.0
      %1056 = vmatprep.subr.mxu0 0.0
      %1057 = vmatpush1.xpose.msra.mxu0 0.0
      %1058 = vmatprep.subr.mxu0 0.0
      %1059 = vmatpush1.xpose.msra.mxu0 0.0
      %1060 = vmatprep.subr.mxu0 0.0
      %1061 = vmatpush1.xpose.msra.mxu0 0.0
      %1062 = vmatprep.subr.mxu0 0.0
      %1063 = vmatpush1.xpose.msra.mxu0 0.0
      %1064 = vmatprep.subr.mxu0 0.0
      %1065 = vmatpush1.xpose.msra.mxu0 %v1032
      %1066 = vmatprep.subr.mxu0 0.0
      %1067 = vmatpush2.xpose.msra.mxu0 0.0
      %1068 = vmatprep.subr.mxu0 0.0
      %1069 = vmatpush2.xpose.msra.mxu0 0.0
      %1070 = vmatprep.subr.mxu0 0.0
      %1071 = vmatpush2.xpose.msra.mxu0 0.0
      %1072 = vmatprep.subr.mxu0 0.0
      %1073 = vmatpush2.xpose.msra.mxu0 0.0
      %1074 = vmatprep.subr.mxu0 0.0
      %1075 = vmatpush2.xpose.msra.mxu0 0.0
      %1076 = vmatprep.subr.mxu0 0.0
      %1077 = vmatpush2.xpose.msra.mxu0 0.0
      %1078 = vmatprep.subr.mxu0 0.0
      %1079 = vmatpush2.xpose.msra.mxu0 0.0
      %1080 = vmatprep.subr.mxu0 0.0
      %1081 = vmatpush2.xpose.msra.mxu0 0.0
      %1082 = vmatprep.subr.mxu0 0.0
      %1083 = vmatpush2.xpose.msra.mxu0 0.0
      %1084 = vmatprep.subr.mxu0 0.0
      %1085 = vmatpush2.xpose.msra.mxu0 0.0
      %1086 = vmatprep.subr.mxu0 0.0
      %1087 = vmatpush2.xpose.msra.mxu0 0.0
      %1088 = vmatprep.subr.mxu0 0.0
      %1089 = vmatpush2.xpose.msra.mxu0 0.0
      %1090 = vmatprep.subr.mxu0 0.0
      %1091 = vmatpush2.xpose.msra.mxu0 0.0
      %1092 = vmatprep.subr.mxu0 0.0
      %1093 = vmatpush2.xpose.msra.mxu0 0.0
      %1094 = vmatprep.subr.mxu0 0.0
      %1095 = vmatpush2.xpose.msra.mxu0 0.0
      %1096 = vmatprep.subr.mxu0 0.0
      %1097 = vmatpush2.xpose.msra.mxu0 0.0
      %1098 = vmatprep.mubr.f32.mxu0 0.0
      %1099 = vmatmul.mubr.f32.gmra.mxu0 %v1030
      %v1100 = vpop.f32.mrf.mxu0
      %v1101 = vadd.f32 0.0, %v1100
      %v1102 = vpop.f32.mrf.mxu0
      %1103 = vdwg.mxu0
      %1104 = vrot.lane.b32.xlu0 %v948, 96
      %v1105 = vpop.permute.xlu0 %1104
      %v1106 = vsel %vm953, %v948, 0
      %v1108 = vsel %vm953, %v1105, 0
      %1110 = vmatprep.subr.mxu0 0.0
      %1111 = vmatpush1.xpose.msra.mxu0 0.0
      %1112 = vmatprep.subr.mxu0 0.0
      %1113 = vmatpush1.xpose.msra.mxu0 0.0
      %1114 = vmatprep.subr.mxu0 0.0
      %1115 = vmatpush1.xpose.msra.mxu0 0.0
      %1116 = vmatprep.subr.mxu0 0.0
      %1117 = vmatpush1.xpose.msra.mxu0 0.0
      %1118 = vmatprep.subr.mxu0 0.0
      %1119 = vmatpush1.xpose.msra.mxu0 0.0
      %1120 = vmatprep.subr.mxu0 0.0
      %1121 = vmatpush1.xpose.msra.mxu0 0.0
      %1122 = vmatprep.subr.mxu0 0.0
      %1123 = vmatpush1.xpose.msra.mxu0 0.0
      %1124 = vmatprep.subr.mxu0 0.0
      %1125 = vmatpush1.xpose.msra.mxu0 0.0
      %1126 = vmatprep.subr.mxu0 0.0
      %1127 = vmatpush1.xpose.msra.mxu0 0.0
      %1128 = vmatprep.subr.mxu0 0.0
      %1129 = vmatpush1.xpose.msra.mxu0 0.0
      %1130 = vmatprep.subr.mxu0 0.0
      %1131 = vmatpush1.xpose.msra.mxu0 0.0
      %1132 = vmatprep.subr.mxu0 0.0
      %1133 = vmatpush1.xpose.msra.mxu0 0.0
      %1134 = vmatprep.subr.mxu0 0.0
      %1135 = vmatpush1.xpose.msra.mxu0 0.0
      %1136 = vmatprep.subr.mxu0 0.0
      %1137 = vmatpush1.xpose.msra.mxu0 0.0
      %1138 = vmatprep.subr.mxu0 0.0
      %1139 = vmatpush1.xpose.msra.mxu0 0.0
      %1140 = vmatprep.subr.mxu0 0.0
      %1141 = vmatpush1.xpose.msra.mxu0 %v1108
      %1142 = vmatprep.subr.mxu0 0.0
      %1143 = vmatpush2.xpose.msra.mxu0 0.0
      %1144 = vmatprep.subr.mxu0 0.0
      %1145 = vmatpush2.xpose.msra.mxu0 0.0
      %1146 = vmatprep.subr.mxu0 0.0
      %1147 = vmatpush2.xpose.msra.mxu0 0.0
      %1148 = vmatprep.subr.mxu0 0.0
      %1149 = vmatpush2.xpose.msra.mxu0 0.0
      %1150 = vmatprep.subr.mxu0 0.0
      %1151 = vmatpush2.xpose.msra.mxu0 0.0
      %1152 = vmatprep.subr.mxu0 0.0
      %1153 = vmatpush2.xpose.msra.mxu0 0.0
      %1154 = vmatprep.subr.mxu0 0.0
      %1155 = vmatpush2.xpose.msra.mxu0 0.0
      %1156 = vmatprep.subr.mxu0 0.0
      %1157 = vmatpush2.xpose.msra.mxu0 0.0
      %1158 = vmatprep.subr.mxu0 0.0
      %1159 = vmatpush2.xpose.msra.mxu0 0.0
      %1160 = vmatprep.subr.mxu0 0.0
      %1161 = vmatpush2.xpose.msra.mxu0 0.0
      %1162 = vmatprep.subr.mxu0 0.0
      %1163 = vmatpush2.xpose.msra.mxu0 0.0
      %1164 = vmatprep.subr.mxu0 0.0
      %1165 = vmatpush2.xpose.msra.mxu0 0.0
      %1166 = vmatprep.subr.mxu0 0.0
      %1167 = vmatpush2.xpose.msra.mxu0 0.0
      %1168 = vmatprep.subr.mxu0 0.0
      %1169 = vmatpush2.xpose.msra.mxu0 0.0
      %1170 = vmatprep.subr.mxu0 0.0
      %1171 = vmatpush2.xpose.msra.mxu0 0.0
      %1172 = vmatprep.subr.mxu0 0.0
      %1173 = vmatpush2.xpose.msra.mxu0 0.0
      %1174 = vmatprep.mubr.f32.mxu0 0.0
      %1175 = vmatmul.mubr.f32.gmra.mxu0 %v1106
      %v1176 = vpop.f32.mrf.mxu0
      %v1177 = vadd.f32 0.0, %v1176
      %v1178 = vpop.f32.mrf.mxu0
      %1179 = vdwg.mxu0
      %1180 = vrot.lane.b32.xlu0 %v950, 96
      %v1181 = vpop.permute.xlu0 %1180
      %v1182 = vsel %vm953, %v950, 0
      %v1184 = vsel %vm953, %v1181, 0
      %1186 = vmatprep.subr.mxu0 0.0
      %1187 = vmatpush1.xpose.msra.mxu0 0.0
      %1188 = vmatprep.subr.mxu0 0.0
      %1189 = vmatpush1.xpose.msra.mxu0 0.0
      %1190 = vmatprep.subr.mxu0 0.0
      %1191 = vmatpush1.xpose.msra.mxu0 0.0
      %1192 = vmatprep.subr.mxu0 0.0
      %1193 = vmatpush1.xpose.msra.mxu0 0.0
      %1194 = vmatprep.subr.mxu0 0.0
      %1195 = vmatpush1.xpose.msra.mxu0 0.0
      %1196 = vmatprep.subr.mxu0 0.0
      %1197 = vmatpush1.xpose.msra.mxu0 0.0
      %1198 = vmatprep.subr.mxu0 0.0
      %1199 = vmatpush1.xpose.msra.mxu0 0.0
      %1200 = vmatprep.subr.mxu0 0.0
      %1201 = vmatpush1.xpose.msra.mxu0 0.0
      %1202 = vmatprep.subr.mxu0 0.0
      %1203 = vmatpush1.xpose.msra.mxu0 0.0
      %1204 = vmatprep.subr.mxu0 0.0
      %1205 = vmatpush1.xpose.msra.mxu0 0.0
      %1206 = vmatprep.subr.mxu0 0.0
      %1207 = vmatpush1.xpose.msra.mxu0 0.0
      %1208 = vmatprep.subr.mxu0 0.0
      %1209 = vmatpush1.xpose.msra.mxu0 0.0
      %1210 = vmatprep.subr.mxu0 0.0
      %1211 = vmatpush1.xpose.msra.mxu0 0.0
      %1212 = vmatprep.subr.mxu0 0.0
      %1213 = vmatpush1.xpose.msra.mxu0 0.0
      %1214 = vmatprep.subr.mxu0 0.0
      %1215 = vmatpush1.xpose.msra.mxu0 0.0
      %1216 = vmatprep.subr.mxu0 0.0
      %1217 = vmatpush1.xpose.msra.mxu0 %v1184
      %1218 = vmatprep.subr.mxu0 0.0
      %1219 = vmatpush2.xpose.msra.mxu0 0.0
      %1220 = vmatprep.subr.mxu0 0.0
      %1221 = vmatpush2.xpose.msra.mxu0 0.0
      %1222 = vmatprep.subr.mxu0 0.0
      %1223 = vmatpush2.xpose.msra.mxu0 0.0
      %1224 = vmatprep.subr.mxu0 0.0
      %1225 = vmatpush2.xpose.msra.mxu0 0.0
      %1226 = vmatprep.subr.mxu0 0.0
      %1227 = vmatpush2.xpose.msra.mxu0 0.0
      %1228 = vmatprep.subr.mxu0 0.0
      %1229 = vmatpush2.xpose.msra.mxu0 0.0
      %1230 = vmatprep.subr.mxu0 0.0
      %1231 = vmatpush2.xpose.msra.mxu0 0.0
      %1232 = vmatprep.subr.mxu0 0.0
      %1233 = vmatpush2.xpose.msra.mxu0 0.0
      %1234 = vmatprep.subr.mxu0 0.0
      %1235 = vmatpush2.xpose.msra.mxu0 0.0
      %1236 = vmatprep.subr.mxu0 0.0
      %1237 = vmatpush2.xpose.msra.mxu0 0.0
      %1238 = vmatprep.subr.mxu0 0.0
      %1239 = vmatpush2.xpose.msra.mxu0 0.0
      %1240 = vmatprep.subr.mxu0 0.0
      %1241 = vmatpush2.xpose.msra.mxu0 0.0
      %1242 = vmatprep.subr.mxu0 0.0
      %1243 = vmatpush2.xpose.msra.mxu0 0.0
      %1244 = vmatprep.subr.mxu0 0.0
      %1245 = vmatpush2.xpose.msra.mxu0 0.0
      %1246 = vmatprep.subr.mxu0 0.0
      %1247 = vmatpush2.xpose.msra.mxu0 0.0
      %1248 = vmatprep.subr.mxu0 0.0
      %1249 = vmatpush2.xpose.msra.mxu0 0.0
      %1250 = vmatprep.mubr.f32.mxu0 0.0
      %1251 = vmatmul.mubr.f32.gmra.mxu0 %v1182
      %v1252 = vpop.f32.mrf.mxu0
      %v1253 = vadd.f32 0.0, %v1252
      %v1254 = vpop.f32.mrf.mxu0
      %1255 = vdwg.mxu0
      %v1256 = vmul.f32 %v1025, 0.35355338
      %v1257 = vmul.f32 %v1101, 0.35355338
      %v1258 = vmul.f32 %v1177, 0.35355338
      %v1259 = vmul.f32 %v1253, 0.35355338
      %v1260 = vlaneseq
      %v1261 = vshrl.u32 %v1260, 7
      %v1262 = vlaneseq
      %v1263 = vand.u32 %v1262, 127
      %vm1264 = vcmp.le.s32.totalorder %v1263, %v1261
      %v1265 = vsel %vm1264, 1, 0
      %vm1266 = vcmp.eq.s32.totalorder %v1265, 1
      %v1267 = vsel %vm1266, %v1256, -1e+30
      %v1268 = vsel %vm1266, %v1257, -1e+30
      %v1269 = vsel %vm1266, %v1258, -1e+30
      %v1270 = vsel %vm1266, %v1259, -1e+30
      %v1271 = vsel %vm953, %v1267, -inf
      %1272 = vmax.xlane.f32.xlu0 %v1271
      %v1273 = vpop.xlane.xlu0 %1272
      %v1274 = vsel %vm953, %v1268, -inf
      %1275 = vmax.xlane.f32.xlu0 %v1274
      %v1276 = vpop.xlane.xlu0 %1275
      %v1277 = vsel %vm953, %v1269, -inf
      %1278 = vmax.xlane.f32.xlu0 %v1277
      %v1279 = vpop.xlane.xlu0 %1278
      %v1280 = vsel %vm953, %v1270, -inf
      %1281 = vmax.xlane.f32.xlu0 %v1280
      %v1282 = vpop.xlane.xlu0 %1281
      %v1283 = vsub.f32 %v1267, %v1273
      %v1284 = vsub.f32 %v1268, %v1276
      %v1285 = vsub.f32 %v1269, %v1279
      %v1286 = vsub.f32 %v1270, %v1282
      %v1287 = vmul.f32 %v1283, 1.442695
      %v1288 = vpow.pop %v1287
      %v1289 = vmul.f32 %v1284, 1.442695
      %v1290 = vpow.pop %v1289
      %v1291 = vmul.f32 %v1285, 1.442695
      %v1292 = vpow.pop %v1291
      %v1293 = vmul.f32 %v1286, 1.442695
      %v1294 = vpow.pop %v1293
      %v1295 = vsel %vm953, %v1288, 0.0
      %1296 = vadd.xlane.f32.xlu0 %v1295
      %v1297 = vpop.xlane.xlu0 %1296
      %v1298 = vsel %vm953, %v1290, 0.0
      %1299 = vadd.xlane.f32.xlu0 %v1298
      %v1300 = vpop.xlane.xlu0 %1299
      %v1301 = vsel %vm953, %v1292, 0.0
      %1302 = vadd.xlane.f32.xlu0 %v1301
      %v1303 = vpop.xlane.xlu0 %1302
      %v1304 = vsel %vm953, %v1294, 0.0
      %1305 = vadd.xlane.f32.xlu0 %v1304
      %v1306 = vpop.xlane.xlu0 %1305
      %v1307 = vrcp.pop %v1297
      %v1308 = vmul.f32 %v1288, %v1307
      %v1309 = vrcp.pop %v1300
      %v1310 = vmul.f32 %v1290, %v1309
      %v1311 = vrcp.pop %v1303
      %v1312 = vmul.f32 %v1292, %v1311
      %v1313 = vrcp.pop %v1306
      %v1314 = vmul.f32 %v1294, %v1313
      %1315 = vrot.lane.b32.xlu0 %v941, 64
      %v1316 = vpop.permute.xlu0 %1315
      %v1319 = vsel %vm953, %v1308, 0
      %1321 = vmatprep.subr.mxu0 0.0
      %1322 = vmatpush1.msra.mxu0 0.0
      %1323 = vmatprep.subr.mxu0 0.0
      %1324 = vmatpush1.msra.mxu0 0.0
      %1325 = vmatprep.subr.mxu0 0.0
      %1326 = vmatpush1.msra.mxu0 0.0
      %1327 = vmatprep.subr.mxu0 0.0
      %1328 = vmatpush1.msra.mxu0 0.0
      %1329 = vmatprep.subr.mxu0 0.0
      %1330 = vmatpush1.msra.mxu0 0.0
      %1331 = vmatprep.subr.mxu0 0.0
      %1332 = vmatpush1.msra.mxu0 0.0
      %1333 = vmatprep.subr.mxu0 0.0
      %1334 = vmatpush1.msra.mxu0 0.0
      %1335 = vmatprep.subr.mxu0 0.0
      %1336 = vmatpush1.msra.mxu0 0.0
      %1337 = vmatprep.subr.mxu0 0.0
      %1338 = vmatpush1.msra.mxu0 0.0
      %1339 = vmatprep.subr.mxu0 0.0
      %1340 = vmatpush1.msra.mxu0 0.0
      %1341 = vmatprep.subr.mxu0 0.0
      %1342 = vmatpush1.msra.mxu0 0.0
      %1343 = vmatprep.subr.mxu0 0.0
      %1344 = vmatpush1.msra.mxu0 0.0
      %1345 = vmatprep.subr.mxu0 0.0
      %1346 = vmatpush1.msra.mxu0 0.0
      %1347 = vmatprep.subr.mxu0 0.0
      %1348 = vmatpush1.msra.mxu0 0.0
      %1349 = vmatprep.subr.mxu0 0.0
      %1350 = vmatpush1.msra.mxu0 0.0
      %1351 = vmatprep.subr.mxu0 0.0
      %1352 = vmatpush1.msra.mxu0 %v1316
      %1353 = vmatprep.subr.mxu0 0.0
      %1354 = vmatpush2.msra.mxu0 0.0
      %1355 = vmatprep.subr.mxu0 0.0
      %1356 = vmatpush2.msra.mxu0 0.0
      %1357 = vmatprep.subr.mxu0 0.0
      %1358 = vmatpush2.msra.mxu0 0.0
      %1359 = vmatprep.subr.mxu0 0.0
      %1360 = vmatpush2.msra.mxu0 0.0
      %1361 = vmatprep.subr.mxu0 0.0
      %1362 = vmatpush2.msra.mxu0 0.0
      %1363 = vmatprep.subr.mxu0 0.0
      %1364 = vmatpush2.msra.mxu0 0.0
      %1365 = vmatprep.subr.mxu0 0.0
      %1366 = vmatpush2.msra.mxu0 0.0
      %1367 = vmatprep.subr.mxu0 0.0
      %1368 = vmatpush2.msra.mxu0 0.0
      %1369 = vmatprep.subr.mxu0 0.0
      %1370 = vmatpush2.msra.mxu0 0.0
      %1371 = vmatprep.subr.mxu0 0.0
      %1372 = vmatpush2.msra.mxu0 0.0
      %1373 = vmatprep.subr.mxu0 0.0
      %1374 = vmatpush2.msra.mxu0 0.0
      %1375 = vmatprep.subr.mxu0 0.0
      %1376 = vmatpush2.msra.mxu0 0.0
      %1377 = vmatprep.subr.mxu0 0.0
      %1378 = vmatpush2.msra.mxu0 0.0
      %1379 = vmatprep.subr.mxu0 0.0
      %1380 = vmatpush2.msra.mxu0 0.0
      %1381 = vmatprep.subr.mxu0 0.0
      %1382 = vmatpush2.msra.mxu0 0.0
      %1383 = vmatprep.subr.mxu0 0.0
      %1384 = vmatpush2.msra.mxu0 0.0
      %1385 = vmatprep.mubr.f32.mxu0 0.0
      %1386 = vmatmul.mubr.f32.gmra.mxu0 %v1319
      %v1387 = vpop.f32.mrf.mxu0
      %v1388 = vadd.f32 0.0, %v1387
      %v1389 = vpop.f32.mrf.mxu0
      %1390 = vdwg.mxu0
      %1391 = vrot.lane.b32.xlu0 %v946, 64
      %v1392 = vpop.permute.xlu0 %1391
      %v1395 = vsel %vm953, %v1310, 0
      %1397 = vmatprep.subr.mxu0 0.0
      %1398 = vmatpush1.msra.mxu0 0.0
      %1399 = vmatprep.subr.mxu0 0.0
      %1400 = vmatpush1.msra.mxu0 0.0
      %1401 = vmatprep.subr.mxu0 0.0
      %1402 = vmatpush1.msra.mxu0 0.0
      %1403 = vmatprep.subr.mxu0 0.0
      %1404 = vmatpush1.msra.mxu0 0.0
      %1405 = vmatprep.subr.mxu0 0.0
      %1406 = vmatpush1.msra.mxu0 0.0
      %1407 = vmatprep.subr.mxu0 0.0
      %1408 = vmatpush1.msra.mxu0 0.0
      %1409 = vmatprep.subr.mxu0 0.0
      %1410 = vmatpush1.msra.mxu0 0.0
      %1411 = vmatprep.subr.mxu0 0.0
      %1412 = vmatpush1.msra.mxu0 0.0
      %1413 = vmatprep.subr.mxu0 0.0
      %1414 = vmatpush1.msra.mxu0 0.0
      %1415 = vmatprep.subr.mxu0 0.0
      %1416 = vmatpush1.msra.mxu0 0.0
      %1417 = vmatprep.subr.mxu0 0.0
      %1418 = vmatpush1.msra.mxu0 0.0
      %1419 = vmatprep.subr.mxu0 0.0
      %1420 = vmatpush1.msra.mxu0 0.0
      %1421 = vmatprep.subr.mxu0 0.0
      %1422 = vmatpush1.msra.mxu0 0.0
      %1423 = vmatprep.subr.mxu0 0.0
      %1424 = vmatpush1.msra.mxu0 0.0
      %1425 = vmatprep.subr.mxu0 0.0
      %1426 = vmatpush1.msra.mxu0 0.0
      %1427 = vmatprep.subr.mxu0 0.0
      %1428 = vmatpush1.msra.mxu0 %v1392
      %1429 = vmatprep.subr.mxu0 0.0
      %1430 = vmatpush2.msra.mxu0 0.0
      %1431 = vmatprep.subr.mxu0 0.0
      %1432 = vmatpush2.msra.mxu0 0.0
      %1433 = vmatprep.subr.mxu0 0.0
      %1434 = vmatpush2.msra.mxu0 0.0
      %1435 = vmatprep.subr.mxu0 0.0
      %1436 = vmatpush2.msra.mxu0 0.0
      %1437 = vmatprep.subr.mxu0 0.0
      %1438 = vmatpush2.msra.mxu0 0.0
      %1439 = vmatprep.subr.mxu0 0.0
      %1440 = vmatpush2.msra.mxu0 0.0
      %1441 = vmatprep.subr.mxu0 0.0
      %1442 = vmatpush2.msra.mxu0 0.0
      %1443 = vmatprep.subr.mxu0 0.0
      %1444 = vmatpush2.msra.mxu0 0.0
      %1445 = vmatprep.subr.mxu0 0.0
      %1446 = vmatpush2.msra.mxu0 0.0
      %1447 = vmatprep.subr.mxu0 0.0
      %1448 = vmatpush2.msra.mxu0 0.0
      %1449 = vmatprep.subr.mxu0 0.0
      %1450 = vmatpush2.msra.mxu0 0.0
      %1451 = vmatprep.subr.mxu0 0.0
      %1452 = vmatpush2.msra.mxu0 0.0
      %1453 = vmatprep.subr.mxu0 0.0
      %1454 = vmatpush2.msra.mxu0 0.0
      %1455 = vmatprep.subr.mxu0 0.0
      %1456 = vmatpush2.msra.mxu0 0.0
      %1457 = vmatprep.subr.mxu0 0.0
      %1458 = vmatpush2.msra.mxu0 0.0
      %1459 = vmatprep.subr.mxu0 0.0
      %1460 = vmatpush2.msra.mxu0 0.0
      %1461 = vmatprep.mubr.f32.mxu0 0.0
      %1462 = vmatmul.mubr.f32.gmra.mxu0 %v1395
      %v1463 = vpop.f32.mrf.mxu0
      %v1464 = vadd.f32 0.0, %v1463
      %v1465 = vpop.f32.mrf.mxu0
      %1466 = vdwg.mxu0
      %1467 = vrot.lane.b32.xlu0 %v948, 64
      %v1468 = vpop.permute.xlu0 %1467
      %v1471 = vsel %vm953, %v1312, 0
      %1473 = vmatprep.subr.mxu0 0.0
      %1474 = vmatpush1.msra.mxu0 0.0
      %1475 = vmatprep.subr.mxu0 0.0
      %1476 = vmatpush1.msra.mxu0 0.0
      %1477 = vmatprep.subr.mxu0 0.0
      %1478 = vmatpush1.msra.mxu0 0.0
      %1479 = vmatprep.subr.mxu0 0.0
      %1480 = vmatpush1.msra.mxu0 0.0
      %1481 = vmatprep.subr.mxu0 0.0
      %1482 = vmatpush1.msra.mxu0 0.0
      %1483 = vmatprep.subr.mxu0 0.0
      %1484 = vmatpush1.msra.mxu0 0.0
      %1485 = vmatprep.subr.mxu0 0.0
      %1486 = vmatpush1.msra.mxu0 0.0
      %1487 = vmatprep.subr.mxu0 0.0
      %1488 = vmatpush1.msra.mxu0 0.0
      %1489 = vmatprep.subr.mxu0 0.0
      %1490 = vmatpush1.msra.mxu0 0.0
      %1491 = vmatprep.subr.mxu0 0.0
      %1492 = vmatpush1.msra.mxu0 0.0
      %1493 = vmatprep.subr.mxu0 0.0
      %1494 = vmatpush1.msra.mxu0 0.0
      %1495 = vmatprep.subr.mxu0 0.0
      %1496 = vmatpush1.msra.mxu0 0.0
      %1497 = vmatprep.subr.mxu0 0.0
      %1498 = vmatpush1.msra.mxu0 0.0
      %1499 = vmatprep.subr.mxu0 0.0
      %1500 = vmatpush1.msra.mxu0 0.0
      %1501 = vmatprep.subr.mxu0 0.0
      %1502 = vmatpush1.msra.mxu0 0.0
      %1503 = vmatprep.subr.mxu0 0.0
      %1504 = vmatpush1.msra.mxu0 %v1468
      %1505 = vmatprep.subr.mxu0 0.0
      %1506 = vmatpush2.msra.mxu0 0.0
      %1507 = vmatprep.subr.mxu0 0.0
      %1508 = vmatpush2.msra.mxu0 0.0
      %1509 = vmatprep.subr.mxu0 0.0
      %1510 = vmatpush2.msra.mxu0 0.0
      %1511 = vmatprep.subr.mxu0 0.0
      %1512 = vmatpush2.msra.mxu0 0.0
      %1513 = vmatprep.subr.mxu0 0.0
      %1514 = vmatpush2.msra.mxu0 0.0
      %1515 = vmatprep.subr.mxu0 0.0
      %1516 = vmatpush2.msra.mxu0 0.0
      %1517 = vmatprep.subr.mxu0 0.0
      %1518 = vmatpush2.msra.mxu0 0.0
      %1519 = vmatprep.subr.mxu0 0.0
      %1520 = vmatpush2.msra.mxu0 0.0
      %1521 = vmatprep.subr.mxu0 0.0
      %1522 = vmatpush2.msra.mxu0 0.0
      %1523 = vmatprep.subr.mxu0 0.0
      %1524 = vmatpush2.msra.mxu0 0.0
      %1525 = vmatprep.subr.mxu0 0.0
      %1526 = vmatpush2.msra.mxu0 0.0
      %1527 = vmatprep.subr.mxu0 0.0
      %1528 = vmatpush2.msra.mxu0 0.0
      %1529 = vmatprep.subr.mxu0 0.0
      %1530 = vmatpush2.msra.mxu0 0.0
      %1531 = vmatprep.subr.mxu0 0.0
      %1532 = vmatpush2.msra.mxu0 0.0
      %1533 = vmatprep.subr.mxu0 0.0
      %1534 = vmatpush2.msra.mxu0 0.0
      %1535 = vmatprep.subr.mxu0 0.0
      %1536 = vmatpush2.msra.mxu0 0.0
      %1537 = vmatprep.mubr.f32.mxu0 0.0
      %1538 = vmatmul.mubr.f32.gmra.mxu0 %v1471
      %v1539 = vpop.f32.mrf.mxu0
      %v1540 = vadd.f32 0.0, %v1539
      %v1541 = vpop.f32.mrf.mxu0
      %1542 = vdwg.mxu0
      %1543 = vrot.lane.b32.xlu0 %v950, 64
      %v1544 = vpop.permute.xlu0 %1543
      %v1547 = vsel %vm953, %v1314, 0
      %1549 = vmatprep.subr.mxu0 0.0
      %1550 = vmatpush1.msra.mxu0 0.0
      %1551 = vmatprep.subr.mxu0 0.0
      %1552 = vmatpush1.msra.mxu0 0.0
      %1553 = vmatprep.subr.mxu0 0.0
      %1554 = vmatpush1.msra.mxu0 0.0
      %1555 = vmatprep.subr.mxu0 0.0
      %1556 = vmatpush1.msra.mxu0 0.0
      %1557 = vmatprep.subr.mxu0 0.0
      %1558 = vmatpush1.msra.mxu0 0.0
      %1559 = vmatprep.subr.mxu0 0.0
      %1560 = vmatpush1.msra.mxu0 0.0
      %1561 = vmatprep.subr.mxu0 0.0
      %1562 = vmatpush1.msra.mxu0 0.0
      %1563 = vmatprep.subr.mxu0 0.0
      %1564 = vmatpush1.msra.mxu0 0.0
      %1565 = vmatprep.subr.mxu0 0.0
      %1566 = vmatpush1.msra.mxu0 0.0
      %1567 = vmatprep.subr.mxu0 0.0
      %1568 = vmatpush1.msra.mxu0 0.0
      %1569 = vmatprep.subr.mxu0 0.0
      %1570 = vmatpush1.msra.mxu0 0.0
      %1571 = vmatprep.subr.mxu0 0.0
      %1572 = vmatpush1.msra.mxu0 0.0
      %1573 = vmatprep.subr.mxu0 0.0
      %1574 = vmatpush1.msra.mxu0 0.0
      %1575 = vmatprep.subr.mxu0 0.0
      %1576 = vmatpush1.msra.mxu0 0.0
      %1577 = vmatprep.subr.mxu0 0.0
      %1578 = vmatpush1.msra.mxu0 0.0
      %1579 = vmatprep.subr.mxu0 0.0
      %1580 = vmatpush1.msra.mxu0 %v1544
      %1581 = vmatprep.subr.mxu0 0.0
      %1582 = vmatpush2.msra.mxu0 0.0
      %1583 = vmatprep.subr.mxu0 0.0
      %1584 = vmatpush2.msra.mxu0 0.0
      %1585 = vmatprep.subr.mxu0 0.0
      %1586 = vmatpush2.msra.mxu0 0.0
      %1587 = vmatprep.subr.mxu0 0.0
      %1588 = vmatpush2.msra.mxu0 0.0
      %1589 = vmatprep.subr.mxu0 0.0
      %1590 = vmatpush2.msra.mxu0 0.0
      %1591 = vmatprep.subr.mxu0 0.0
      %1592 = vmatpush2.msra.mxu0 0.0
      %1593 = vmatprep.subr.mxu0 0.0
      %1594 = vmatpush2.msra.mxu0 0.0
      %1595 = vmatprep.subr.mxu0 0.0
      %1596 = vmatpush2.msra.mxu0 0.0
      %1597 = vmatprep.subr.mxu0 0.0
      %1598 = vmatpush2.msra.mxu0 0.0
      %1599 = vmatprep.subr.mxu0 0.0
      %1600 = vmatpush2.msra.mxu0 0.0
      %1601 = vmatprep.subr.mxu0 0.0
      %1602 = vmatpush2.msra.mxu0 0.0
      %1603 = vmatprep.subr.mxu0 0.0
      %1604 = vmatpush2.msra.mxu0 0.0
      %1605 = vmatprep.subr.mxu0 0.0
      %1606 = vmatpush2.msra.mxu0 0.0
      %1607 = vmatprep.subr.mxu0 0.0
      %1608 = vmatpush2.msra.mxu0 0.0
      %1609 = vmatprep.subr.mxu0 0.0
      %1610 = vmatpush2.msra.mxu0 0.0
      %1611 = vmatprep.subr.mxu0 0.0
      %1612 = vmatpush2.msra.mxu0 0.0
      %1613 = vmatprep.mubr.f32.mxu0 0.0
      %1614 = vmatmul.mubr.f32.gmra.mxu0 %v1547
      %v1615 = vpop.f32.mrf.mxu0
      %v1616 = vadd.f32 0.0, %v1615
      %v1617 = vpop.f32.mrf.mxu0
      %1618 = vdwg.mxu0
      %1620 = vrot.lane.b32.xlu0 %v1464, 8
      %v1621 = vpop.permute.xlu0 %1620
      %1624 = vrot.lane.b32.xlu0 %v1540, 16
      %v1625 = vpop.permute.xlu0 %1624
      %1628 = vrot.lane.b32.xlu0 %v1616, 24
      %v1629 = vpop.permute.xlu0 %1628
      %v1631 = vsel %vm953, %v1388, %v1621
      %vm1632 = vcmask 130048
      %v1633 = vsel %vm1632, %v1631, %v1625
      %vm1634 = vcmask 195584
      %v1635 = vsel %vm1634, %v1633, %v1629
      %v1636 = vld [vmem:[%s9] sm:$0xff]
      %v1637 = vld [vmem:[%s9 + $0x8] sm:$0xff]
      %v1638 = vld [vmem:[%s9 + $0x10] sm:$0xff]
      %v1639 = vld [vmem:[%s9 + $0x18] sm:$0xff]
      %v1640 = vld [vmem:[%s10] sm:$0x1]
      %v1642 = vlaneseq
      %v1643 = vshrl.u32 %v1642, 7
      %v1644 = vsub.s32 0, %v1643
      %v1645 = vrot.slane %v1640, %v1644
      %v1648 = vsel %vm776, %v1635, 0
      %1650 = vmatprep.subr.mxu0 0.0
      %1651 = vmatpush1.msra.mxu0 0.0
      %1652 = vmatprep.subr.mxu0 0.0
      %1653 = vmatpush1.msra.mxu0 0.0
      %1654 = vmatprep.subr.mxu0 0.0
      %1655 = vmatpush1.msra.mxu0 0.0
      %1656 = vmatprep.subr.mxu0 0.0
      %1657 = vmatpush1.msra.mxu0 0.0
      %1658 = vmatprep.subr.mxu0 0.0
      %1659 = vmatpush1.msra.mxu0 0.0
      %1660 = vmatprep.subr.mxu0 0.0
      %1661 = vmatpush1.msra.mxu0 0.0
      %1662 = vmatprep.subr.mxu0 0.0
      %1663 = vmatpush1.msra.mxu0 0.0
      %1664 = vmatprep.subr.mxu0 0.0
      %1665 = vmatpush1.msra.mxu0 0.0
      %1666 = vmatprep.subr.mxu0 0.0
      %1667 = vmatpush1.msra.mxu0 0.0
      %1668 = vmatprep.subr.mxu0 0.0
      %1669 = vmatpush1.msra.mxu0 0.0
      %1670 = vmatprep.subr.mxu0 0.0
      %1671 = vmatpush1.msra.mxu0 0.0
      %1672 = vmatprep.subr.mxu0 0.0
      %1673 = vmatpush1.msra.mxu0 0.0
      %1674 = vmatprep.subr.mxu0 0.0
      %1675 = vmatpush1.msra.mxu0 %v1639
      %1676 = vmatprep.subr.mxu0 0.0
      %1677 = vmatpush1.msra.mxu0 %v1638
      %1678 = vmatprep.subr.mxu0 0.0
      %1679 = vmatpush1.msra.mxu0 %v1637
      %1680 = vmatprep.subr.mxu0 0.0
      %1681 = vmatpush1.msra.mxu0 %v1636
      %1682 = vmatprep.subr.mxu0 0.0
      %1683 = vmatpush2.msra.mxu0 0.0
      %1684 = vmatprep.subr.mxu0 0.0
      %1685 = vmatpush2.msra.mxu0 0.0
      %1686 = vmatprep.subr.mxu0 0.0
      %1687 = vmatpush2.msra.mxu0 0.0
      %1688 = vmatprep.subr.mxu0 0.0
      %1689 = vmatpush2.msra.mxu0 0.0
      %1690 = vmatprep.subr.mxu0 0.0
      %1691 = vmatpush2.msra.mxu0 0.0
      %1692 = vmatprep.subr.mxu0 0.0
      %1693 = vmatpush2.msra.mxu0 0.0
      %1694 = vmatprep.subr.mxu0 0.0
      %1695 = vmatpush2.msra.mxu0 0.0
      %1696 = vmatprep.subr.mxu0 0.0
      %1697 = vmatpush2.msra.mxu0 0.0
      %1698 = vmatprep.subr.mxu0 0.0
      %1699 = vmatpush2.msra.mxu0 0.0
      %1700 = vmatprep.subr.mxu0 0.0
      %1701 = vmatpush2.msra.mxu0 0.0
      %1702 = vmatprep.subr.mxu0 0.0
      %1703 = vmatpush2.msra.mxu0 0.0
      %1704 = vmatprep.subr.mxu0 0.0
      %1705 = vmatpush2.msra.mxu0 0.0
      %1706 = vmatprep.subr.mxu0 0.0
      %1707 = vmatpush2.msra.mxu0 0.0
      %1708 = vmatprep.subr.mxu0 0.0
      %1709 = vmatpush2.msra.mxu0 0.0
      %1710 = vmatprep.subr.mxu0 0.0
      %1711 = vmatpush2.msra.mxu0 0.0
      %1712 = vmatprep.subr.mxu0 0.0
      %1713 = vmatpush2.msra.mxu0 0.0
      %1714 = vmatprep.mubr.f32.mxu0 0.0
      %1715 = vmatmul.mubr.f32.gmra.mxu0 %v1648
      %v1716 = vpop.f32.mrf.mxu0
      %v1717 = vadd.f32 %v1645, %v1716
      %v1718 = vpop.f32.mrf.mxu0
      %1719 = vdwg.mxu0
      %v1720 = vmax.f32 %v1717, 0.0
      %v1721 = vand.u32 2147483647, %v1717
      %v1722 = vsub.f32 0.0, %v1721
      %v1723 = vmul.f32 %v1722, 1.442695
      %v1724 = vpow.pop %v1723
      %v1725 = vadd.f32 %v1724, 1.0
      %v1726 = vlog2.pop %v1725
      %v1727 = vmul.f32 %v1726, 0.6931472
      %v1728 = vmul.f32 -0.5, %v1724
      %v1729 = vadd.f32 %v1728, 1.0
      %v1730 = vmul.f32 %v1729, %v1724
      %v1731 = vand.u32 2147483647, %v1724
      %vm1732 = vcmp.lt.f32.partialorder %v1731, 0.0004427343
      %v1733 = vsel %vm1732, %v1730, %v1727
      %v1734 = vadd.f32 %v1720, %v1733
      %v1735 = vld [vmem:[%s11] sm:$0xff]
      %v1736 = vld [vmem:[%s11 + $0x8] sm:$0xff]
      %v1737 = vld [vmem:[%s11 + $0x10] sm:$0xff]
      %v1738 = vld [vmem:[%s11 + $0x18] sm:$0xff]
      %v1740 = vsel %vm776, %v1734, 0
      %1742 = vmatprep.subr.mxu0 0.0
      %1743 = vmatpush1.msra.mxu0 0.0
      %1744 = vmatprep.subr.mxu0 0.0
      %1745 = vmatpush1.msra.mxu0 0.0
      %1746 = vmatprep.subr.mxu0 0.0
      %1747 = vmatpush1.msra.mxu0 0.0
      %1748 = vmatprep.subr.mxu0 0.0
      %1749 = vmatpush1.msra.mxu0 0.0
      %1750 = vmatprep.subr.mxu0 0.0
      %1751 = vmatpush1.msra.mxu0 0.0
      %1752 = vmatprep.subr.mxu0 0.0
      %1753 = vmatpush1.msra.mxu0 0.0
      %1754 = vmatprep.subr.mxu0 0.0
      %1755 = vmatpush1.msra.mxu0 0.0
      %1756 = vmatprep.subr.mxu0 0.0
      %1757 = vmatpush1.msra.mxu0 0.0
      %1758 = vmatprep.subr.mxu0 0.0
      %1759 = vmatpush1.msra.mxu0 0.0
      %1760 = vmatprep.subr.mxu0 0.0
      %1761 = vmatpush1.msra.mxu0 0.0
      %1762 = vmatprep.subr.mxu0 0.0
      %1763 = vmatpush1.msra.mxu0 0.0
      %1764 = vmatprep.subr.mxu0 0.0
      %1765 = vmatpush1.msra.mxu0 0.0
      %1766 = vmatprep.subr.mxu0 0.0
      %1767 = vmatpush1.msra.mxu0 %v1738
      %1768 = vmatprep.subr.mxu0 0.0
      %1769 = vmatpush1.msra.mxu0 %v1737
      %1770 = vmatprep.subr.mxu0 0.0
      %1771 = vmatpush1.msra.mxu0 %v1736
      %1772 = vmatprep.subr.mxu0 0.0
      %1773 = vmatpush1.msra.mxu0 %v1735
      %1774 = vmatprep.subr.mxu0 0.0
      %1775 = vmatpush2.msra.mxu0 0.0
      %1776 = vmatprep.subr.mxu0 0.0
      %1777 = vmatpush2.msra.mxu0 0.0
      %1778 = vmatprep.subr.mxu0 0.0
      %1779 = vmatpush2.msra.mxu0 0.0
      %1780 = vmatprep.subr.mxu0 0.0
      %1781 = vmatpush2.msra.mxu0 0.0
      %1782 = vmatprep.subr.mxu0 0.0
      %1783 = vmatpush2.msra.mxu0 0.0
      %1784 = vmatprep.subr.mxu0 0.0
      %1785 = vmatpush2.msra.mxu0 0.0
      %1786 = vmatprep.subr.mxu0 0.0
      %1787 = vmatpush2.msra.mxu0 0.0
      %1788 = vmatprep.subr.mxu0 0.0
      %1789 = vmatpush2.msra.mxu0 0.0
      %1790 = vmatprep.subr.mxu0 0.0
      %1791 = vmatpush2.msra.mxu0 0.0
      %1792 = vmatprep.subr.mxu0 0.0
      %1793 = vmatpush2.msra.mxu0 0.0
      %1794 = vmatprep.subr.mxu0 0.0
      %1795 = vmatpush2.msra.mxu0 0.0
      %1796 = vmatprep.subr.mxu0 0.0
      %1797 = vmatpush2.msra.mxu0 0.0
      %1798 = vmatprep.subr.mxu0 0.0
      %1799 = vmatpush2.msra.mxu0 0.0
      %1800 = vmatprep.subr.mxu0 0.0
      %1801 = vmatpush2.msra.mxu0 0.0
      %1802 = vmatprep.subr.mxu0 0.0
      %1803 = vmatpush2.msra.mxu0 0.0
      %1804 = vmatprep.subr.mxu0 0.0
      %1805 = vmatpush2.msra.mxu0 0.0
      %1806 = vmatprep.mubr.f32.mxu0 0.0
      %1807 = vmatmul.mubr.f32.gmra.mxu0 %v1740
      %v1808 = vpop.f32.mrf.mxu0
      %v1809 = vadd.f32 0.0, %v1808
      %v1810 = vpop.f32.mrf.mxu0
      %1811 = vdwg.mxu0
      %v1812 = vld [vmem:[%s7] sm:$0xff]
      %v1813 = vld [vmem:[%s7 + $0x8] sm:$0xff]
      %v1814 = vld [vmem:[%s7 + $0x10] sm:$0xff]
      %v1815 = vld [vmem:[%s7 + $0x18] sm:$0xff]
      %v1816 = vld [vmem:[%s8] sm:$0x1]
      %v1818 = vlaneseq
      %v1819 = vshrl.u32 %v1818, 7
      %v1820 = vsub.s32 0, %v1819
      %v1821 = vrot.slane %v1816, %v1820
      %1823 = vmatprep.subr.mxu0 0.0
      %1824 = vmatpush1.msra.mxu0 0.0
      %1825 = vmatprep.subr.mxu0 0.0
      %1826 = vmatpush1.msra.mxu0 0.0
      %1827 = vmatprep.subr.mxu0 0.0
      %1828 = vmatpush1.msra.mxu0 0.0
      %1829 = vmatprep.subr.mxu0 0.0
      %1830 = vmatpush1.msra.mxu0 0.0
      %1831 = vmatprep.subr.mxu0 0.0
      %1832 = vmatpush1.msra.mxu0 0.0
      %1833 = vmatprep.subr.mxu0 0.0
      %1834 = vmatpush1.msra.mxu0 0.0
      %1835 = vmatprep.subr.mxu0 0.0
      %1836 = vmatpush1.msra.mxu0 0.0
      %1837 = vmatprep.subr.mxu0 0.0
      %1838 = vmatpush1.msra.mxu0 0.0
      %1839 = vmatprep.subr.mxu0 0.0
      %1840 = vmatpush1.msra.mxu0 0.0
      %1841 = vmatprep.subr.mxu0 0.0
      %1842 = vmatpush1.msra.mxu0 0.0
      %1843 = vmatprep.subr.mxu0 0.0
      %1844 = vmatpush1.msra.mxu0 0.0
      %1845 = vmatprep.subr.mxu0 0.0
      %1846 = vmatpush1.msra.mxu0 0.0
      %1847 = vmatprep.subr.mxu0 0.0
      %1848 = vmatpush1.msra.mxu0 %v1815
      %1849 = vmatprep.subr.mxu0 0.0
      %1850 = vmatpush1.msra.mxu0 %v1814
      %1851 = vmatprep.subr.mxu0 0.0
      %1852 = vmatpush1.msra.mxu0 %v1813
      %1853 = vmatprep.subr.mxu0 0.0
      %1854 = vmatpush1.msra.mxu0 %v1812
      %1855 = vmatprep.subr.mxu0 0.0
      %1856 = vmatpush2.msra.mxu0 0.0
      %1857 = vmatprep.subr.mxu0 0.0
      %1858 = vmatpush2.msra.mxu0 0.0
      %1859 = vmatprep.subr.mxu0 0.0
      %1860 = vmatpush2.msra.mxu0 0.0
      %1861 = vmatprep.subr.mxu0 0.0
      %1862 = vmatpush2.msra.mxu0 0.0
      %1863 = vmatprep.subr.mxu0 0.0
      %1864 = vmatpush2.msra.mxu0 0.0
      %1865 = vmatprep.subr.mxu0 0.0
      %1866 = vmatpush2.msra.mxu0 0.0
      %1867 = vmatprep.subr.mxu0 0.0
      %1868 = vmatpush2.msra.mxu0 0.0
      %1869 = vmatprep.subr.mxu0 0.0
      %1870 = vmatpush2.msra.mxu0 0.0
      %1871 = vmatprep.subr.mxu0 0.0
      %1872 = vmatpush2.msra.mxu0 0.0
      %1873 = vmatprep.subr.mxu0 0.0
      %1874 = vmatpush2.msra.mxu0 0.0
      %1875 = vmatprep.subr.mxu0 0.0
      %1876 = vmatpush2.msra.mxu0 0.0
      %1877 = vmatprep.subr.mxu0 0.0
      %1878 = vmatpush2.msra.mxu0 0.0
      %1879 = vmatprep.subr.mxu0 0.0
      %1880 = vmatpush2.msra.mxu0 0.0
      %1881 = vmatprep.subr.mxu0 0.0
      %1882 = vmatpush2.msra.mxu0 0.0
      %1883 = vmatprep.subr.mxu0 0.0
      %1884 = vmatpush2.msra.mxu0 0.0
      %1885 = vmatprep.subr.mxu0 0.0
      %1886 = vmatpush2.msra.mxu0 0.0
      %1887 = vmatprep.mubr.f32.mxu0 0.0
      %1888 = vmatmul.mubr.f32.gmra.mxu0 %v1648
      %v1889 = vpop.f32.mrf.mxu0
      %v1890 = vadd.f32 %v1821, %v1889
      %v1891 = vpop.f32.mrf.mxu0
      %1892 = vdwg.mxu0
      %v1893 = vmul.f32 %v1890, %v1809
      %v1894 = vadd.f32 %v680, %v1893
      %v1895 = vadd.f32 %v681, %v1809
      %v1896 = vld [vmem:[%s12] sm:$0xff]
      %v1897 = vld [vmem:[%s12 + $0x8] sm:$0xff]
      %v1898 = vld [vmem:[%s12 + $0x10] sm:$0xff]
      %v1899 = vld [vmem:[%s12 + $0x18] sm:$0xff]
      %v1900 = vld [vmem:[%s12 + $0x20] sm:$0xff]
      %v1901 = vld [vmem:[%s12 + $0x28] sm:$0xff]
      %v1902 = vld [vmem:[%s12 + $0x30] sm:$0xff]
      %v1903 = vld [vmem:[%s12 + $0x38] sm:$0xff]
      %v1904 = vld [vmem:[%s12 + $0x40] sm:$0xff]
      %v1905 = vld [vmem:[%s12 + $0x48] sm:$0xff]
      %v1906 = vld [vmem:[%s12 + $0x50] sm:$0xff]
      %v1907 = vld [vmem:[%s12 + $0x58] sm:$0xff]
      %v1908 = vld [vmem:[%s12 + $0x60] sm:$0xff]
      %v1909 = vld [vmem:[%s12 + $0x68] sm:$0xff]
      %v1910 = vld [vmem:[%s12 + $0x70] sm:$0xff]
      %v1911 = vld [vmem:[%s12 + $0x78] sm:$0xff]
      %1912 = vmatprep.subr.mxu0 0.0
      %1913 = vmatpush1.msra.mxu0 %v1911
      %1914 = vmatprep.subr.mxu0 0.0
      %1915 = vmatpush1.msra.mxu0 %v1910
      %1916 = vmatprep.subr.mxu0 0.0
      %1917 = vmatpush1.msra.mxu0 %v1909
      %1918 = vmatprep.subr.mxu0 0.0
      %1919 = vmatpush1.msra.mxu0 %v1908
      %1920 = vmatprep.subr.mxu0 0.0
      %1921 = vmatpush1.msra.mxu0 %v1907
      %1922 = vmatprep.subr.mxu0 0.0
      %1923 = vmatpush1.msra.mxu0 %v1906
      %1924 = vmatprep.subr.mxu0 0.0
      %1925 = vmatpush1.msra.mxu0 %v1905
      %1926 = vmatprep.subr.mxu0 0.0
      %1927 = vmatpush1.msra.mxu0 %v1904
      %1928 = vmatprep.subr.mxu0 0.0
      %1929 = vmatpush1.msra.mxu0 %v1903
      %1930 = vmatprep.subr.mxu0 0.0
      %1931 = vmatpush1.msra.mxu0 %v1902
      %1932 = vmatprep.subr.mxu0 0.0
      %1933 = vmatpush1.msra.mxu0 %v1901
      %1934 = vmatprep.subr.mxu0 0.0
      %1935 = vmatpush1.msra.mxu0 %v1900
      %1936 = vmatprep.subr.mxu0 0.0
      %1937 = vmatpush1.msra.mxu0 %v1899
      %1938 = vmatprep.subr.mxu0 0.0
      %1939 = vmatpush1.msra.mxu0 %v1898
      %1940 = vmatprep.subr.mxu0 0.0
      %1941 = vmatpush1.msra.mxu0 %v1897
      %1942 = vmatprep.subr.mxu0 0.0
      %1943 = vmatpush1.msra.mxu0 %v1896
      %1944 = vmatprep.subr.mxu0 0.0
      %1945 = vmatpush2.msra.mxu0 0.0
      %1946 = vmatprep.subr.mxu0 0.0
      %1947 = vmatpush2.msra.mxu0 0.0
      %1948 = vmatprep.subr.mxu0 0.0
      %1949 = vmatpush2.msra.mxu0 0.0
      %1950 = vmatprep.subr.mxu0 0.0
      %1951 = vmatpush2.msra.mxu0 0.0
      %1952 = vmatprep.subr.mxu0 0.0
      %1953 = vmatpush2.msra.mxu0 0.0
      %1954 = vmatprep.subr.mxu0 0.0
      %1955 = vmatpush2.msra.mxu0 0.0
      %1956 = vmatprep.subr.mxu0 0.0
      %1957 = vmatpush2.msra.mxu0 0.0
      %1958 = vmatprep.subr.mxu0 0.0
      %1959 = vmatpush2.msra.mxu0 0.0
      %1960 = vmatprep.subr.mxu0 0.0
      %1961 = vmatpush2.msra.mxu0 0.0
      %1962 = vmatprep.subr.mxu0 0.0
      %1963 = vmatpush2.msra.mxu0 0.0
      %1964 = vmatprep.subr.mxu0 0.0
      %1965 = vmatpush2.msra.mxu0 0.0
      %1966 = vmatprep.subr.mxu0 0.0
      %1967 = vmatpush2.msra.mxu0 0.0
      %1968 = vmatprep.subr.mxu0 0.0
      %1969 = vmatpush2.msra.mxu0 0.0
      %1970 = vmatprep.subr.mxu0 0.0
      %1971 = vmatpush2.msra.mxu0 0.0
      %1972 = vmatprep.subr.mxu0 0.0
      %1973 = vmatpush2.msra.mxu0 0.0
      %1974 = vmatprep.subr.mxu0 0.0
      %1975 = vmatpush2.msra.mxu0 0.0
      %1976 = vmatprep.mubr.f32.mxu0 0.0
      %1977 = vmatmul.mubr.f32.gmra.mxu0 %v1894
      %v1978 = vpop.f32.mrf.mxu0
      %v1979 = vadd.f32 0.0, %v1978
      %v1980 = vpop.f32.mrf.mxu0
      %1981 = vmatprep.mubr.f32.mxu0 0.0
      %1982 = vmatmul.mubr.f32.gmra.mxu0 %v1895
      %v1983 = vpop.f32.mrf.mxu0
      %v1984 = vadd.f32 0.0, %v1983
      %v1985 = vpop.f32.mrf.mxu0
      %1986 = vdwg.mxu0
      %v1987 = vadd.f32 %v1984, 1.0
      %v1988 = vrcp.pop %v1987
      %v1989 = vmul.f32 %v1979, %v1988
      %v1990 = vsel %vm776, %v1989, 0.0
      %1991 = vadd.xlane.f32.xlu0 %v1990
      %v1992 = vpop.xlane.xlu0 %1991
      %v1993 = vmul.f32 %v1992, %v780
      %v1994 = vsub.f32 %v1989, %v1993
      %v1995 = vmul.f32 %v1994, %v1994
      %v1996 = vsel %vm776, %v1995, 0.0
      %1997 = vadd.xlane.f32.xlu0 %v1996
      %v1998 = vpop.xlane.xlu0 %1997
      %v1999 = vmul.f32 %v1998, %v780
      %v2000 = vadd.f32 %v1999, 1e-05
      %v2001 = vrsqrt.pop %v2000
      %v2002 = vmul.f32 %v1994, %v2001
      %2004 = vrot.lane.b32.xlu0 %v1989, 96
      %v2005 = vpop.permute.xlu0 %2004
      %v2007 = vsel %vm776, %v2005, 0.0
      %2008 = vadd.xlane.f32.xlu0 %v2007
      %v2009 = vpop.xlane.xlu0 %2008
      %v2010 = vmul.f32 %v2009, %v780
      %v2011 = vsub.f32 %v1989, %v2010
      %v2012 = vmul.f32 %v2011, %v2011
      %2014 = vrot.lane.b32.xlu0 %v2012, 96
      %v2015 = vpop.permute.xlu0 %2014
      %v2017 = vsel %vm776, %v2015, 0.0
      %2018 = vadd.xlane.f32.xlu0 %v2017
      %v2019 = vpop.xlane.xlu0 %2018
      %v2020 = vmul.f32 %v2019, %v780
      %v2021 = vadd.f32 %v2020, 1e-05
      %v2022 = vrsqrt.pop %v2021
      %v2023 = vmul.f32 %v2011, %v2022
      %v2024 = vsel %vm776, %v2002, %v2023
      %v2025 = vld [vmem:[%s13] sm:$0x1]
      %v2027 = vlaneseq
      %v2028 = vshrl.u32 %v2027, 7
      %v2029 = vsub.s32 0, %v2028
      %v2030 = vrot.slane %v2025, %v2029
      %v2032 = vmul.f32 %v2024, %v2030
      %v2033 = vld [vmem:[%s14] sm:$0x1]
      %v2035 = vlaneseq
      %v2036 = vshrl.u32 %v2035, 7
      %v2037 = vsub.s32 0, %v2036
      %v2038 = vrot.slane %v2033, %v2037
      %v2040 = vadd.f32 %v2032, %v2038
      %v2041 = vld [vmem:[%s15] sm:$0xff]
      %v2042 = vld [vmem:[%s15 + $0x8] sm:$0xff]
      %v2043 = vld [vmem:[%s15 + $0x10] sm:$0xff]
      %v2044 = vld [vmem:[%s15 + $0x18] sm:$0xff]
      %v2045 = vld [vmem:[%s15 + $0x20] sm:$0xff]
      %v2046 = vld [vmem:[%s15 + $0x28] sm:$0xff]
      %v2047 = vld [vmem:[%s15 + $0x30] sm:$0xff]
      %v2048 = vld [vmem:[%s15 + $0x38] sm:$0xff]
      %v2050 = vsel %vm833, %v2040, 0
      %2052 = vmatprep.subr.mxu0 0.0
      %2053 = vmatpush1.msra.mxu0 0.0
      %2054 = vmatprep.subr.mxu0 0.0
      %2055 = vmatpush1.msra.mxu0 0.0
      %2056 = vmatprep.subr.mxu0 0.0
      %2057 = vmatpush1.msra.mxu0 0.0
      %2058 = vmatprep.subr.mxu0 0.0
      %2059 = vmatpush1.msra.mxu0 0.0
      %2060 = vmatprep.subr.mxu0 0.0
      %2061 = vmatpush1.msra.mxu0 0.0
      %2062 = vmatprep.subr.mxu0 0.0
      %2063 = vmatpush1.msra.mxu0 0.0
      %2064 = vmatprep.subr.mxu0 0.0
      %2065 = vmatpush1.msra.mxu0 0.0
      %2066 = vmatprep.subr.mxu0 0.0
      %2067 = vmatpush1.msra.mxu0 0.0
      %2068 = vmatprep.subr.mxu0 0.0
      %2069 = vmatpush1.msra.mxu0 %v2048
      %2070 = vmatprep.subr.mxu0 0.0
      %2071 = vmatpush1.msra.mxu0 %v2047
      %2072 = vmatprep.subr.mxu0 0.0
      %2073 = vmatpush1.msra.mxu0 %v2046
      %2074 = vmatprep.subr.mxu0 0.0
      %2075 = vmatpush1.msra.mxu0 %v2045
      %2076 = vmatprep.subr.mxu0 0.0
      %2077 = vmatpush1.msra.mxu0 %v2044
      %2078 = vmatprep.subr.mxu0 0.0
      %2079 = vmatpush1.msra.mxu0 %v2043
      %2080 = vmatprep.subr.mxu0 0.0
      %2081 = vmatpush1.msra.mxu0 %v2042
      %2082 = vmatprep.subr.mxu0 0.0
      %2083 = vmatpush1.msra.mxu0 %v2041
      %2084 = vmatprep.subr.mxu0 0.0
      %2085 = vmatpush2.msra.mxu0 0.0
      %2086 = vmatprep.subr.mxu0 0.0
      %2087 = vmatpush2.msra.mxu0 0.0
      %2088 = vmatprep.subr.mxu0 0.0
      %2089 = vmatpush2.msra.mxu0 0.0
      %2090 = vmatprep.subr.mxu0 0.0
      %2091 = vmatpush2.msra.mxu0 0.0
      %2092 = vmatprep.subr.mxu0 0.0
      %2093 = vmatpush2.msra.mxu0 0.0
      %2094 = vmatprep.subr.mxu0 0.0
      %2095 = vmatpush2.msra.mxu0 0.0
      %2096 = vmatprep.subr.mxu0 0.0
      %2097 = vmatpush2.msra.mxu0 0.0
      %2098 = vmatprep.subr.mxu0 0.0
      %2099 = vmatpush2.msra.mxu0 0.0
      %2100 = vmatprep.subr.mxu0 0.0
      %2101 = vmatpush2.msra.mxu0 0.0
      %2102 = vmatprep.subr.mxu0 0.0
      %2103 = vmatpush2.msra.mxu0 0.0
      %2104 = vmatprep.subr.mxu0 0.0
      %2105 = vmatpush2.msra.mxu0 0.0
      %2106 = vmatprep.subr.mxu0 0.0
      %2107 = vmatpush2.msra.mxu0 0.0
      %2108 = vmatprep.subr.mxu0 0.0
      %2109 = vmatpush2.msra.mxu0 0.0
      %2110 = vmatprep.subr.mxu0 0.0
      %2111 = vmatpush2.msra.mxu0 0.0
      %2112 = vmatprep.subr.mxu0 0.0
      %2113 = vmatpush2.msra.mxu0 0.0
      %2114 = vmatprep.subr.mxu0 0.0
      %2115 = vmatpush2.msra.mxu0 0.0
      %2116 = vmatprep.mubr.f32.mxu0 0.0
      %2117 = vmatmul.mubr.f32.gmra.mxu0 %v2050
      %v2118 = vpop.f32.mrf.mxu0
      %v2119 = vadd.f32 0.0, %v2118
      %v2120 = vpop.f32.mrf.mxu0
      %2121 = vdwg.mxu0
      %v2122 = vsub.f32 0.0, %v2119
      %v2123 = vmul.f32 %v2122, 1.442695
      %v2124 = vpow.pop %v2123
      %v2125 = vadd.f32 %v2124, 1.0
      %v2126 = vrcp.pop %v2125
      %v2127 = vmul.f32 %v2119, %v2126
      %2129 = vrot.lane.b32.xlu0 %v2119, 64
      %v2130 = vpop.permute.xlu0 %2129
      %v2132 = vmul.f32 %v2127, %v2130
      %v2133 = vld [vmem:[%s17] sm:$0xff]
      %v2134 = vld [vmem:[%s17 + $0x8] sm:$0xff]
      %v2135 = vld [vmem:[%s17 + $0x10] sm:$0xff]
      %v2136 = vld [vmem:[%s17 + $0x18] sm:$0xff]
      %v2137 = vld [vmem:[%s17 + $0x20] sm:$0xff]
      %v2138 = vld [vmem:[%s17 + $0x28] sm:$0xff]
      %v2139 = vld [vmem:[%s17 + $0x30] sm:$0xff]
      %v2140 = vld [vmem:[%s17 + $0x38] sm:$0xff]
      %v2141 = vld [vmem:[%s18] sm:$0x1]
      %v2143 = vlaneseq
      %v2144 = vshrl.u32 %v2143, 7
      %v2145 = vsub.s32 0, %v2144
      %v2146 = vrot.slane %v2141, %v2145
      %v2149 = vsel %vm833, %v2132, 0
      %2151 = vmatprep.subr.mxu0 0.0
      %2152 = vmatpush1.msra.mxu0 0.0
      %2153 = vmatprep.subr.mxu0 0.0
      %2154 = vmatpush1.msra.mxu0 0.0
      %2155 = vmatprep.subr.mxu0 0.0
      %2156 = vmatpush1.msra.mxu0 0.0
      %2157 = vmatprep.subr.mxu0 0.0
      %2158 = vmatpush1.msra.mxu0 0.0
      %2159 = vmatprep.subr.mxu0 0.0
      %2160 = vmatpush1.msra.mxu0 0.0
      %2161 = vmatprep.subr.mxu0 0.0
      %2162 = vmatpush1.msra.mxu0 0.0
      %2163 = vmatprep.subr.mxu0 0.0
      %2164 = vmatpush1.msra.mxu0 0.0
      %2165 = vmatprep.subr.mxu0 0.0
      %2166 = vmatpush1.msra.mxu0 0.0
      %2167 = vmatprep.subr.mxu0 0.0
      %2168 = vmatpush1.msra.mxu0 %v2140
      %2169 = vmatprep.subr.mxu0 0.0
      %2170 = vmatpush1.msra.mxu0 %v2139
      %2171 = vmatprep.subr.mxu0 0.0
      %2172 = vmatpush1.msra.mxu0 %v2138
      %2173 = vmatprep.subr.mxu0 0.0
      %2174 = vmatpush1.msra.mxu0 %v2137
      %2175 = vmatprep.subr.mxu0 0.0
      %2176 = vmatpush1.msra.mxu0 %v2136
      %2177 = vmatprep.subr.mxu0 0.0
      %2178 = vmatpush1.msra.mxu0 %v2135
      %2179 = vmatprep.subr.mxu0 0.0
      %2180 = vmatpush1.msra.mxu0 %v2134
      %2181 = vmatprep.subr.mxu0 0.0
      %2182 = vmatpush1.msra.mxu0 %v2133
      %2183 = vmatprep.subr.mxu0 0.0
      %2184 = vmatpush2.msra.mxu0 0.0
      %2185 = vmatprep.subr.mxu0 0.0
      %2186 = vmatpush2.msra.mxu0 0.0
      %2187 = vmatprep.subr.mxu0 0.0
      %2188 = vmatpush2.msra.mxu0 0.0
      %2189 = vmatprep.subr.mxu0 0.0
      %2190 = vmatpush2.msra.mxu0 0.0
      %2191 = vmatprep.subr.mxu0 0.0
      %2192 = vmatpush2.msra.mxu0 0.0
      %2193 = vmatprep.subr.mxu0 0.0
      %2194 = vmatpush2.msra.mxu0 0.0
      %2195 = vmatprep.subr.mxu0 0.0
      %2196 = vmatpush2.msra.mxu0 0.0
      %2197 = vmatprep.subr.mxu0 0.0
      %2198 = vmatpush2.msra.mxu0 0.0
      %2199 = vmatprep.subr.mxu0 0.0
      %2200 = vmatpush2.msra.mxu0 0.0
      %2201 = vmatprep.subr.mxu0 0.0
      %2202 = vmatpush2.msra.mxu0 0.0
      %2203 = vmatprep.subr.mxu0 0.0
      %2204 = vmatpush2.msra.mxu0 0.0
      %2205 = vmatprep.subr.mxu0 0.0
      %2206 = vmatpush2.msra.mxu0 0.0
      %2207 = vmatprep.subr.mxu0 0.0
      %2208 = vmatpush2.msra.mxu0 0.0
      %2209 = vmatprep.subr.mxu0 0.0
      %2210 = vmatpush2.msra.mxu0 0.0
      %2211 = vmatprep.subr.mxu0 0.0
      %2212 = vmatpush2.msra.mxu0 0.0
      %2213 = vmatprep.subr.mxu0 0.0
      %2214 = vmatpush2.msra.mxu0 0.0
      %2215 = vmatprep.mubr.f32.mxu0 0.0
      %2216 = vmatmul.mubr.f32.gmra.mxu0 %v2149
      %v2217 = vpop.f32.mrf.mxu0
      %v2218 = vadd.f32 %v2146, %v2217
      %v2219 = vpop.f32.mrf.mxu0
      %2220 = vdwg.mxu0
      %v2221 = vmax.f32 %v2218, 0.0
      %v2222 = vand.u32 2147483647, %v2218
      %v2223 = vsub.f32 0.0, %v2222
      %v2224 = vmul.f32 %v2223, 1.442695
      %v2225 = vpow.pop %v2224
      %v2226 = vadd.f32 %v2225, 1.0
      %v2227 = vlog2.pop %v2226
      %v2228 = vmul.f32 %v2227, 0.6931472
      %v2229 = vmul.f32 -0.5, %v2225
      %v2230 = vadd.f32 %v2229, 1.0
      %v2231 = vmul.f32 %v2230, %v2225
      %v2232 = vand.u32 2147483647, %v2225
      %vm2233 = vcmp.lt.f32.partialorder %v2232, 0.0004427343
      %v2234 = vsel %vm2233, %v2231, %v2228
      %v2235 = vadd.f32 %v2221, %v2234
      %v2236 = vld [vmem:[%s19] sm:$0xff]
      %v2237 = vld [vmem:[%s19 + $0x8] sm:$0xff]
      %v2238 = vld [vmem:[%s19 + $0x10] sm:$0xff]
      %v2239 = vld [vmem:[%s19 + $0x18] sm:$0xff]
      %v2241 = vsel %vm776, %v2235, 0
      %2243 = vmatprep.subr.mxu0 0.0
      %2244 = vmatpush1.msra.mxu0 0.0
      %2245 = vmatprep.subr.mxu0 0.0
      %2246 = vmatpush1.msra.mxu0 0.0
      %2247 = vmatprep.subr.mxu0 0.0
      %2248 = vmatpush1.msra.mxu0 0.0
      %2249 = vmatprep.subr.mxu0 0.0
      %2250 = vmatpush1.msra.mxu0 0.0
      %2251 = vmatprep.subr.mxu0 0.0
      %2252 = vmatpush1.msra.mxu0 0.0
      %2253 = vmatprep.subr.mxu0 0.0
      %2254 = vmatpush1.msra.mxu0 0.0
      %2255 = vmatprep.subr.mxu0 0.0
      %2256 = vmatpush1.msra.mxu0 0.0
      %2257 = vmatprep.subr.mxu0 0.0
      %2258 = vmatpush1.msra.mxu0 0.0
      %2259 = vmatprep.subr.mxu0 0.0
      %2260 = vmatpush1.msra.mxu0 0.0
      %2261 = vmatprep.subr.mxu0 0.0
      %2262 = vmatpush1.msra.mxu0 0.0
      %2263 = vmatprep.subr.mxu0 0.0
      %2264 = vmatpush1.msra.mxu0 0.0
      %2265 = vmatprep.subr.mxu0 0.0
      %2266 = vmatpush1.msra.mxu0 0.0
      %2267 = vmatprep.subr.mxu0 0.0
      %2268 = vmatpush1.msra.mxu0 %v2239
      %2269 = vmatprep.subr.mxu0 0.0
      %2270 = vmatpush1.msra.mxu0 %v2238
      %2271 = vmatprep.subr.mxu0 0.0
      %2272 = vmatpush1.msra.mxu0 %v2237
      %2273 = vmatprep.subr.mxu0 0.0
      %2274 = vmatpush1.msra.mxu0 %v2236
      %2275 = vmatprep.subr.mxu0 0.0
      %2276 = vmatpush2.msra.mxu0 0.0
      %2277 = vmatprep.subr.mxu0 0.0
      %2278 = vmatpush2.msra.mxu0 0.0
      %2279 = vmatprep.subr.mxu0 0.0
      %2280 = vmatpush2.msra.mxu0 0.0
      %2281 = vmatprep.subr.mxu0 0.0
      %2282 = vmatpush2.msra.mxu0 0.0
      %2283 = vmatprep.subr.mxu0 0.0
      %2284 = vmatpush2.msra.mxu0 0.0
      %2285 = vmatprep.subr.mxu0 0.0
      %2286 = vmatpush2.msra.mxu0 0.0
      %2287 = vmatprep.subr.mxu0 0.0
      %2288 = vmatpush2.msra.mxu0 0.0
      %2289 = vmatprep.subr.mxu0 0.0
      %2290 = vmatpush2.msra.mxu0 0.0
      %2291 = vmatprep.subr.mxu0 0.0
      %2292 = vmatpush2.msra.mxu0 0.0
      %2293 = vmatprep.subr.mxu0 0.0
      %2294 = vmatpush2.msra.mxu0 0.0
      %2295 = vmatprep.subr.mxu0 0.0
      %2296 = vmatpush2.msra.mxu0 0.0
      %2297 = vmatprep.subr.mxu0 0.0
      %2298 = vmatpush2.msra.mxu0 0.0
      %2299 = vmatprep.subr.mxu0 0.0
      %2300 = vmatpush2.msra.mxu0 0.0
      %2301 = vmatprep.subr.mxu0 0.0
      %2302 = vmatpush2.msra.mxu0 0.0
      %2303 = vmatprep.subr.mxu0 0.0
      %2304 = vmatpush2.msra.mxu0 0.0
      %2305 = vmatprep.subr.mxu0 0.0
      %2306 = vmatpush2.msra.mxu0 0.0
      %2307 = vmatprep.mubr.f32.mxu0 0.0
      %2308 = vmatmul.mubr.f32.gmra.mxu0 %v2241
      %v2309 = vpop.f32.mrf.mxu0
      %v2310 = vadd.f32 0.0, %v2309
      %v2311 = vpop.f32.mrf.mxu0
      %2312 = vdwg.mxu0
      %v2313 = vld [vmem:[%s16] sm:$0xff]
      %v2314 = vld [vmem:[%s16 + $0x8] sm:$0xff]
      %v2315 = vld [vmem:[%s16 + $0x10] sm:$0xff]
      %v2316 = vld [vmem:[%s16 + $0x18] sm:$0xff]
      %v2317 = vld [vmem:[%s16 + $0x20] sm:$0xff]
      %v2318 = vld [vmem:[%s16 + $0x28] sm:$0xff]
      %v2319 = vld [vmem:[%s16 + $0x30] sm:$0xff]
      %v2320 = vld [vmem:[%s16 + $0x38] sm:$0xff]
      %2321 = vmatprep.subr.mxu0 0.0
      %2322 = vmatpush1.msra.mxu0 0.0
      %2323 = vmatprep.subr.mxu0 0.0
      %2324 = vmatpush1.msra.mxu0 0.0
      %2325 = vmatprep.subr.mxu0 0.0
      %2326 = vmatpush1.msra.mxu0 0.0
      %2327 = vmatprep.subr.mxu0 0.0
      %2328 = vmatpush1.msra.mxu0 0.0
      %2329 = vmatprep.subr.mxu0 0.0
      %2330 = vmatpush1.msra.mxu0 0.0
      %2331 = vmatprep.subr.mxu0 0.0
      %2332 = vmatpush1.msra.mxu0 0.0
      %2333 = vmatprep.subr.mxu0 0.0
      %2334 = vmatpush1.msra.mxu0 0.0
      %2335 = vmatprep.subr.mxu0 0.0
      %2336 = vmatpush1.msra.mxu0 0.0
      %2337 = vmatprep.subr.mxu0 0.0
      %2338 = vmatpush1.msra.mxu0 %v2320
      %2339 = vmatprep.subr.mxu0 0.0
      %2340 = vmatpush1.msra.mxu0 %v2319
      %2341 = vmatprep.subr.mxu0 0.0
      %2342 = vmatpush1.msra.mxu0 %v2318
      %2343 = vmatprep.subr.mxu0 0.0
      %2344 = vmatpush1.msra.mxu0 %v2317
      %2345 = vmatprep.subr.mxu0 0.0
      %2346 = vmatpush1.msra.mxu0 %v2316
      %2347 = vmatprep.subr.mxu0 0.0
      %2348 = vmatpush1.msra.mxu0 %v2315
      %2349 = vmatprep.subr.mxu0 0.0
      %2350 = vmatpush1.msra.mxu0 %v2314
      %2351 = vmatprep.subr.mxu0 0.0
      %2352 = vmatpush1.msra.mxu0 %v2313
      %2353 = vmatprep.subr.mxu0 0.0
      %2354 = vmatpush2.msra.mxu0 0.0
      %2355 = vmatprep.subr.mxu0 0.0
      %2356 = vmatpush2.msra.mxu0 0.0
      %2357 = vmatprep.subr.mxu0 0.0
      %2358 = vmatpush2.msra.mxu0 0.0
      %2359 = vmatprep.subr.mxu0 0.0
      %2360 = vmatpush2.msra.mxu0 0.0
      %2361 = vmatprep.subr.mxu0 0.0
      %2362 = vmatpush2.msra.mxu0 0.0
      %2363 = vmatprep.subr.mxu0 0.0
      %2364 = vmatpush2.msra.mxu0 0.0
      %2365 = vmatprep.subr.mxu0 0.0
      %2366 = vmatpush2.msra.mxu0 0.0
      %2367 = vmatprep.subr.mxu0 0.0
      %2368 = vmatpush2.msra.mxu0 0.0
      %2369 = vmatprep.subr.mxu0 0.0
      %2370 = vmatpush2.msra.mxu0 0.0
      %2371 = vmatprep.subr.mxu0 0.0
      %2372 = vmatpush2.msra.mxu0 0.0
      %2373 = vmatprep.subr.mxu0 0.0
      %2374 = vmatpush2.msra.mxu0 0.0
      %2375 = vmatprep.subr.mxu0 0.0
      %2376 = vmatpush2.msra.mxu0 0.0
      %2377 = vmatprep.subr.mxu0 0.0
      %2378 = vmatpush2.msra.mxu0 0.0
      %2379 = vmatprep.subr.mxu0 0.0
      %2380 = vmatpush2.msra.mxu0 0.0
      %2381 = vmatprep.subr.mxu0 0.0
      %2382 = vmatpush2.msra.mxu0 0.0
      %2383 = vmatprep.subr.mxu0 0.0
      %2384 = vmatpush2.msra.mxu0 0.0
      %2385 = vmatprep.mubr.f32.mxu0 0.0
      %2386 = vmatmul.mubr.f32.gmra.mxu0 %v2149
      %v2387 = vpop.f32.mrf.mxu0
      %v2388 = vadd.f32 0.0, %v2387
      %v2389 = vpop.f32.mrf.mxu0
      %2390 = vdwg.mxu0
      %v2391 = vmul.f32 %v2388, %v2310
      %v2392 = vadd.f32 %v1894, %v2391
      %2393 = vst [vmem:[%s675] sm:$0xff] %v2392
      %v2394 = vadd.f32 %v1895, %v2310
      %2395 = vst [vmem:[%s679] sm:$0xff] %v2394
      %p2396 = scmp.lt.s32.totalorder %s33, 1
      %s2397 = scalar_select %p2396, %s33, 1
      %s2398 = smul.addr %s2397, 8
      %s2399 = scalar_lea.vmem %s20, %s2398
      %p2400 = scmp.lt.s32.totalorder %s33, 1
      %s2401 = scalar_select %p2400, %s33, 1
      %s2402 = smul.addr %s2401, 8
      %s2403 = scalar_lea.vmem %s21, %s2402
      // Predicated region
      $region101: #{rat_layer_forward.1} parent=99 // pred_check
        %p2404 = pneg %p481
      $region102: #{rat_layer_forward.1} parent=99 // pred_check_branch
        %2406 = sbr.rel (%p2404) target = $region104
      $region103: #{rat_layer_forward.1} parent=99 // pred_region
        _
      $region104: #{rat_layer_forward.1} parent=99 // pred_fallthru
        _
      // Predicated region
      $region105: #{rat_layer_forward.1} parent=99 // pred_check
        %p2407 = pneg %p507
      $region106: #{rat_layer_forward.1} parent=99 // pred_check_branch
        %2409 = sbr.rel (%p2407) target = $region108
      $region107: #{rat_layer_forward.1} parent=99 // pred_region
        _
      $region108: #{rat_layer_forward.1} parent=99 // pred_fallthru
        _
    $region100: #{rat_layer_forward.1} parent=5 // pred_fallthru
      _
    %p2410 = scmp.le.s32.totalorder 2, %s28
    // Predicated region
    $region109: #{rat_layer_forward.1} parent=5 // pred_check
      %p2411 = pneg %p2410
    $region110: #{rat_layer_forward.1} parent=5 // pred_check_branch
      %2413 = sbr.rel (%p2411) target = $region112
    $region111: #{rat_layer_forward.1} parent=5 // pred_region
      %s2414 = ssub.s32 %s28, 2
      // Predicated region
      $region113: #{rat_layer_forward.1} parent=111 // pred_check
        %p2415 = pneg %p487
      $region114: #{rat_layer_forward.1} parent=111 // pred_check_branch
        %2417 = sbr.rel (%p2415) target = $region116
      $region115: #{rat_layer_forward.1} parent=111 // pred_region
        %p2418 = scmp.lt.s32.totalorder %s34, 1
        %s2419 = scalar_select %p2418, %s34, 1
        %s2420 = smul.addr %s2419, 8
        %s2421 = scalar_lea.vmem %s20, %s2420
      $region116: #{rat_layer_forward.1} parent=111 // pred_fallthru
        _
      // Predicated region
      $region117: #{rat_layer_forward.1} parent=111 // pred_check
        %p2422 = pneg %p513
      $region118: #{rat_layer_forward.1} parent=111 // pred_check_branch
        %2424 = sbr.rel (%p2422) target = $region120
      $region119: #{rat_layer_forward.1} parent=111 // pred_region
        %p2425 = scmp.lt.s32.totalorder %s34, 1
        %s2426 = scalar_select %p2425, %s34, 1
        %s2427 = smul.addr %s2426, 8
        %s2428 = scalar_lea.vmem %s21, %s2427
      $region120: #{rat_layer_forward.1} parent=111 // pred_fallthru
        _
    $region112: #{rat_layer_forward.1} parent=5 // pred_fallthru
      _
  $region6: #{rat_layer_forward.1} parent=0 // loop_footer
    %s32 = sadd.s32 1, %s28
  $region7: #{rat_layer_forward.1} parent=0 // loop_footer_branch
    %27 = sbr.rel target = $region3
  $region8: #{rat_layer_forward.1} parent=0 // loop_exit
    _

</llo_original>
